<compile_context>
chip_gen: v6e
topology: v6e:2x2x1
jax: 0.10.0
libtpu: 0.0.40
codegen_flags: <defaults>
</compile_context>

<pallas_src>
import functools

import jax
import jax.numpy as jnp
from jax.experimental import pallas as pl
from jax.experimental.pallas import tpu as pltpu


def _round_up(x, m):
    return ((x + m - 1) // m) * m


# ---------------------------------------------------------------------------
# Kernel 1: fused tiled matmul   y = epi( pro(X) @ W + b [+ residual] )
#   pro (optional): relu(x * in_scale + in_shift)  per K-column
#   epi (optional): y * out_scale + out_shift, then optional ReLU
# ---------------------------------------------------------------------------
def _fused_matmul_kernel(*refs, in_relu, out_relu, has_in, has_out, has_res):
    x_ref, w_ref, b_ref = refs[0], refs[1], refs[2]
    idx = 3
    if has_in:
        isc_ref, ish_ref = refs[idx], refs[idx + 1]
        idx += 2
    if has_out:
        osc_ref, osh_ref = refs[idx], refs[idx + 1]
        idx += 2
    if has_res:
        res_ref = refs[idx]
        idx += 1
    o_ref, acc_ref = refs[idx], refs[idx + 1]

    k = pl.program_id(2)

    @pl.when(k == 0)
    def _():
        acc_ref[...] = jnp.zeros_like(acc_ref)

    xv = x_ref[...].astype(jnp.float32)
    if has_in:
        xv = xv * isc_ref[...] + ish_ref[...]
        if in_relu:
            xv = jnp.maximum(xv, 0.0)
    acc_ref[...] += jnp.dot(xv, w_ref[...], preferred_element_type=jnp.float32)

    @pl.when(k == pl.num_programs(2) - 1)
    def _():
        y = acc_ref[...] + b_ref[...]
        if has_res:
            y = y + res_ref[...].astype(jnp.float32)
        if has_out:
            y = y * osc_ref[...] + osh_ref[...]
        if out_relu:
            y = jnp.maximum(y, 0.0)
        o_ref[...] = y.astype(o_ref.dtype)


def fused_matmul_pallas(x, w, b, *, in_scale=None, in_shift=None, in_relu=False,
                        out_scale=None, out_shift=None, out_relu=False,
                        residual=None, tm=512, tn=256, tk=512):
    """x:(M,K) w:(K,N) b:(N,) [+ fused prologue/epilogue/residual] -> (M,N), f32 acc."""
    M, K = x.shape
    K2, N = w.shape
    assert K2 == K and b.shape == (N,)
    has_in = in_scale is not None
    has_out = out_scale is not None
    has_res = residual is not None

    tm = min(tm, _round_up(M, 8))       # sublane-aligned; single block when M is small
    tn = min(tn, _round_up(N, 128))     # lane-aligned
    tk = min(tk, _round_up(K, 128))
    Mp, Kp, Np = _round_up(M, tm), _round_up(K, tk), _round_up(N, tn)

    xp = jnp.pad(x, ((0, Mp - M), (0, Kp - K)))
    wp = jnp.pad(w, ((0, Kp - K), (0, Np - N)))
    bp = jnp.pad(b.astype(jnp.float32), (0, Np - N)).reshape(1, Np)

    inputs = [xp, wp, bp]
    in_specs = [
        pl.BlockSpec((tm, tk), lambda i, j, k: (i, k)),   # activation / patch tile
        pl.BlockSpec((tk, tn), lambda i, j, k: (k, j)),   # weight tile
        pl.BlockSpec((1, tn), lambda i, j, k: (0, j)),    # bias tile
    ]
    if has_in:
        inputs += [jnp.pad(in_scale.astype(jnp.float32), (0, Kp - K)).reshape(1, Kp),
                   jnp.pad(in_shift.astype(jnp.float32), (0, Kp - K)).reshape(1, Kp)]
        in_specs += [pl.BlockSpec((1, tk), lambda i, j, k: (0, k)),
                     pl.BlockSpec((1, tk), lambda i, j, k: (0, k))]
    if has_out:
        inputs += [jnp.pad(out_scale.astype(jnp.float32), (0, Np - N)).reshape(1, Np),
                   jnp.pad(out_shift.astype(jnp.float32), (0, Np - N)).reshape(1, Np)]
        in_specs += [pl.BlockSpec((1, tn), lambda i, j, k: (0, j)),
                     pl.BlockSpec((1, tn), lambda i, j, k: (0, j))]
    if has_res:
        inputs.append(jnp.pad(residual, ((0, Mp - M), (0, Np - N))))
        in_specs.append(pl.BlockSpec((tm, tn), lambda i, j, k: (i, j)))

    grid = (Mp // tm, Np // tn, Kp // tk)
    itemsize = 4
    cost = pl.CostEstimate(
        flops=2 * Mp * Kp * Np,
        transcendentals=0,
        bytes_accessed=itemsize * (Mp * Kp + Kp * Np + Np
                                   + Mp * Np * (2 if has_res else 1)))
    elems = 2 * (tm * tk + tk * tn + tn) + 3 * tm * tn
    elems += (2 * tm * tn if has_res else 0)
    elems += (4 * tk if has_in else 0) + (4 * tn if has_out else 0)
    vmem_limit = min(max(2 * itemsize * elems, 8 * 1024 * 1024), 32 * 1024 * 1024)

    kernel = functools.partial(_fused_matmul_kernel, in_relu=in_relu, out_relu=out_relu,
                               has_in=has_in, has_out=has_out, has_res=has_res)
    out = pl.pallas_call(
        kernel,
        out_shape=jax.ShapeDtypeStruct((Mp, Np), x.dtype),
        grid_spec=pltpu.PrefetchScalarGridSpec(
            num_scalar_prefetch=0,
            grid=grid,
            in_specs=in_specs,
            out_specs=pl.BlockSpec((tm, tn), lambda i, j, k: (i, j)),
            scratch_shapes=[pltpu.VMEM((tm, tn), jnp.float32)],
        ),
        compiler_params=pltpu.CompilerParams(
            dimension_semantics=("parallel", "parallel", "arbitrary"),
            vmem_limit_bytes=vmem_limit),
        cost_estimate=cost,
    )(*inputs)
    return out[:M, :N]


# ---------------------------------------------------------------------------
# Kernel 2: standalone inference-BatchNorm (+ optional ReLU), lane-dense layout
# ---------------------------------------------------------------------------
def _bn_act_kernel(x_ref, scale_ref, shift_ref, o_ref, *, relu):
    y = x_ref[...].astype(jnp.float32) * scale_ref[...] + shift_ref[...]
    if relu:
        y = jnp.maximum(y, 0.0)
    o_ref[...] = y.astype(o_ref.dtype)


def bn_act_pallas(x2d, scale, shift, *, relu, lane=1024, tm=256):
    M, C = x2d.shape
    scale = scale.astype(jnp.float32)
    shift = shift.astype(jnp.float32)

    if lane % C == 0:
        # Lane-dense path: flatten to (rows, 1024) so loads/stores use full 128 lanes.
        total = M * C
        rows = pl.cdiv(total, lane)
        tm_eff = min(tm, _round_up(rows, 8))
        rows_p = _round_up(rows, tm_eff)
        flat = jnp.pad(x2d.reshape(-1), (0, rows_p * lane - total)).reshape(rows_p, lane)
        sc = jnp.tile(scale, lane // C).reshape(1, lane)
        sh = jnp.tile(shift, lane // C).reshape(1, lane)
        out = pl.pallas_call(
            functools.partial(_bn_act_kernel, relu=relu),
            out_shape=jax.ShapeDtypeStruct((rows_p, lane), x2d.dtype),
            grid_spec=pltpu.PrefetchScalarGridSpec(
                num_scalar_prefetch=0,
                grid=(rows_p // tm_eff,),
                in_specs=[pl.BlockSpec((tm_eff, lane), lambda i: (i, 0)),
                          pl.BlockSpec((1, lane), lambda i: (0, 0)),
                          pl.BlockSpec((1, lane), lambda i: (0, 0))],
                out_specs=pl.BlockSpec((tm_eff, lane), lambda i: (i, 0)),
            ),
            compiler_params=pltpu.CompilerParams(dimension_semantics=("parallel",)),
        )(flat, sc, sh)
        return out.reshape(-1)[:total].reshape(M, C)

    # Fallback: channel-last blocking (C does not divide the lane width).
    tm_eff = min(tm, _round_up(M, 8))
    Mp = _round_up(M, tm_eff)
    xp = jnp.pad(x2d, ((0, Mp - M), (0, 0)))
    out = pl.pallas_call(
        functools.partial(_bn_act_kernel, relu=relu),
        out_shape=jax.ShapeDtypeStruct((Mp, C), x2d.dtype),
        grid_spec=pltpu.PrefetchScalarGridSpec(
            num_scalar_prefetch=0,
            grid=(Mp // tm_eff,),
            in_specs=[pl.BlockSpec((tm_eff, C), lambda i: (i, 0)),
                      pl.BlockSpec((1, C), lambda i: (0, 0)),
                      pl.BlockSpec((1, C), lambda i: (0, 0))],
            out_specs=pl.BlockSpec((tm_eff, C), lambda i: (i, 0)),
        ),
        compiler_params=pltpu.CompilerParams(dimension_semantics=("parallel",)),
    )(xp, scale.reshape(1, C), shift.reshape(1, C))
    return out[:M]


# ---------------------------------------------------------------------------
# Kernel 3: MaxPool2d(3, stride=3) as a lane-dense 9-tap max reduction
# ---------------------------------------------------------------------------
def _max9_kernel(t_ref, o_ref):
    m = t_ref[0]
    for i in range(1, 9):
        m = jnp.maximum(m, t_ref[i])
    o_ref[...] = m.astype(o_ref.dtype)


def maxpool3x3_pallas(x, *, lane=1024, tm=128):
    # x: (N, H, W, C) NHWC; kernel 3, stride 3, VALID  (== nn.MaxPool2d(3, stride=3))
    N, H, W, C = x.shape
    Ho, Wo = (H - 3) // 3 + 1, (W - 3) // 3 + 1
    M = N * Ho * Wo
    # Stride-3 slicing partitions the pooled region into 9 disjoint taps (no data blow-up).
    taps = jnp.stack(
        [x[:, dh:dh + 3 * Ho:3, dw:dw + 3 * Wo:3, :].reshape(-1)
         for dh in range(3) for dw in range(3)], axis=0)             # (9, M*C)
    total = M * C
    rows = pl.cdiv(total, lane)
    tm_eff = min(tm, _round_up(rows, 8))
    rows_p = _round_up(rows, tm_eff)
    tapsp = jnp.pad(taps, ((0, 0), (0, rows_p * lane - total))).reshape(9, rows_p, lane)
    out = pl.pallas_call(
        _max9_kernel,
        out_shape=jax.ShapeDtypeStruct((rows_p, lane), x.dtype),
        grid_spec=pltpu.PrefetchScalarGridSpec(
            num_scalar_prefetch=0,
            grid=(rows_p // tm_eff,),
            in_specs=[pl.BlockSpec((9, tm_eff, lane), lambda i: (0, i, 0))],
            out_specs=pl.BlockSpec((tm_eff, lane), lambda i: (i, 0)),
        ),
        compiler_params=pltpu.CompilerParams(dimension_semantics=("parallel",)),
    )(tapsp)
    return out.reshape(-1)[:total].reshape(N, Ho, Wo, C)


# ---------------------------------------------------------------------------
# Conv / BN wrappers (NHWC) built on the kernels above
# ---------------------------------------------------------------------------
def conv2d_same_pallas(x, w, b, *, in_scale=None, in_shift=None, in_relu=False,
                       out_scale=None, out_shift=None, out_relu=False, residual=None):
    """Stride-1 conv, 'same' padding (odd kernels).  x:(N,H,W,Cin) w:(kh,kw,Cin,Cout)."""
    N, H, W, Cin = x.shape
    kh, kw, Cin2, Cout = w.shape
    assert Cin2 == Cin
    res_m = None if residual is None else residual.reshape(-1, Cout)
    if kh == 1 and kw == 1:
        y = fused_matmul_pallas(
            x.reshape(-1, Cin), w.reshape(Cin, Cout), b,
            in_scale=in_scale, in_shift=in_shift, in_relu=in_relu,
            out_scale=out_scale, out_shift=out_shift, out_relu=out_relu,
            residual=res_m)
        return y.reshape(N, H, W, Cout)
    # Zero "same" padding must follow any input activation, so the BN+ReLU input
    # fusion is only valid for 1x1 convs; keep a standalone BN pass for 3x3.
    assert in_scale is None and in_shift is None and not in_relu
    ph, pw = (kh - 1) // 2, (kw - 1) // 2
    xp = jnp.pad(x, ((0, 0), (ph, ph), (pw, pw), (0, 0)))
    patches = jnp.concatenate(
        [xp[:, i:i + H, j:j + W, :] for i in range(kh) for j in range(kw)],
        axis=-1)                                                      # (N,H,W,kh*kw*Cin)
    y = fused_matmul_pallas(
        patches.reshape(-1, kh * kw * Cin), w.reshape(kh * kw * Cin, Cout), b,
        out_scale=out_scale, out_shift=out_shift, out_relu=out_relu, residual=res_m)
    return y.reshape(N, H, W, Cout)


def batchnorm_act_pallas(x, scale, shift, *, relu):
    N, H, W, C = x.shape
    return bn_act_pallas(x.reshape(-1, C), scale, shift, relu=relu).reshape(N, H, W, C)


def rconv3_forward(x, p, *, out_scale=None, out_shift=None):
    """feature=3 RConv: fused BN2+ReLU epilogue, fused residual (+x) and optional affine."""
    h = batchnorm_act_pallas(x, p["bn1_scale"], p["bn1_shift"], relu=True)
    h = conv2d_same_pallas(h, p["w1"], p["b1"],
                           out_scale=p["bn2_scale"], out_shift=p["bn2_shift"],
                           out_relu=True)
    return conv2d_same_pallas(h, p["w2"], p["b2"], residual=x,
                              out_scale=out_scale, out_shift=out_shift)


def rconv1_forward(x, p, *, out_scale=None, out_shift=None):
    """feature=1 RConv (1x1 convs): whole block is two fused matmul kernels."""
    h = conv2d_same_pallas(x, p["w1"], p["b1"],
                           in_scale=p["bn1_scale"], in_shift=p["bn1_shift"], in_relu=True,
                           out_scale=p["bn2_scale"], out_shift=p["bn2_shift"],
                           out_relu=True)
    return conv2d_same_pallas(h, p["w2"], p["b2"], residual=x,
                              out_scale=out_scale, out_shift=out_shift)


def convcoder_forward(x_nchw, params, hparams):
    n_layer = hparams["convcoder"]["n_layer"]
    n_id = hparams["convcoder"]["n_id"]
    x = jnp.transpose(x_nchw, (0, 2, 3, 1))                          # NCHW -> NHWC
    x = conv2d_same_pallas(x, params["conv1_w"], params["conv1_b"])
    for li in range(n_layer):            # deepcopy'd blocks share the same init params
        last = li == n_layer - 1         # fold ln_1 into the last block's conv epilogue
        x = rconv3_forward(x, params["rb1"],
                           out_scale=params["ln1_scale"] if last else None,
                           out_shift=params["ln1_shift"] if last else None)
    if n_layer == 0:
        x = batchnorm_act_pallas(x, params["ln1_scale"], params["ln1_shift"], relu=False)
    x = maxpool3x3_pallas(x)
    x = conv2d_same_pallas(x, params["conv2_w"], params["conv2_b"])
    c_out = x.shape[-1]
    ln2_scale = jnp.broadcast_to(params["ln2_scale"], (c_out,))
    ln2_shift = jnp.broadcast_to(params["ln2_shift"], (c_out,))
    for li in range(n_id):
        last = li == n_id - 1            # ln_2 is a single shared affine -> fuse it too
        x = rconv1_forward(x, params["rb2"],
                           out_scale=ln2_scale if last else None,
                           out_shift=ln2_shift if last else None)
    n = x.shape[0]
    # x.view(x.size(0), -1) is in NCHW element order; ln_2 was fused above (elementwise
    # with one shared scale/shift, so flatten order does not matter).
    flat = jnp.transpose(x, (0, 3, 1, 2)).reshape(n, -1)
    if n_id == 0:
        flat = bn_act_pallas(flat.reshape(-1, 1), params["ln2_scale"],
                             params["ln2_shift"], relu=False).reshape(n, -1)
    return flat


# ---------------------------------------------------------------------------
# Pure-JAX reference (independent path: lax.conv / reduce_window)
# ---------------------------------------------------------------------------
def _ref_conv(x, w, b, padding):
    y = jax.lax.conv_general_dilated(
        x, w, window_strides=(1, 1),
        padding=[(padding, padding), (padding, padding)],
        dimension_numbers=("NHWC", "HWIO", "NHWC"),
        precision=jax.lax.Precision.HIGHEST)
    return y + b


def _ref_bn_act(x, scale, shift, relu):
    y = x * scale + shift
    return jnp.maximum(y, 0.0) if relu else y


def _ref_rconv(x, p):
    h = _ref_bn_act(x, p["bn1_scale"], p["bn1_shift"], True)
    h = _ref_conv(h, p["w1"], p["b1"], (p["w1"].shape[0] - 1) // 2)
    h = _ref_bn_act(h, p["bn2_scale"], p["bn2_shift"], True)
    h = _ref_conv(h, p["w2"], p["b2"], (p["w2"].shape[0] - 1) // 2)
    return h


def convcoder_reference(x_nchw, params, hparams):
    x = jnp.transpose(x_nchw, (0, 2, 3, 1))
    x = _ref_conv(x, params["conv1_w"], params["conv1_b"], 1)
    for _ in range(hparams["convcoder"]["n_layer"]):
        x = _ref_rconv(x, params["rb1"]) + x
    x = _ref_bn_act(x, params["ln1_scale"], params["ln1_shift"], False)
    x = jax.lax.reduce_window(x, -jnp.inf, jax.lax.max,
                              (1, 3, 3, 1), (1, 3, 3, 1), "VALID")
    x = _ref_conv(x, params["conv2_w"], params["conv2_b"], 0)
    for _ in range(hparams["convcoder"]["n_id"]):
        x = _ref_rconv(x, params["rb2"]) + x
    n = x.shape[0]
    flat = jnp.transpose(x, (0, 3, 1, 2)).reshape(n, -1)
    return flat * params["ln2_scale"] + params["ln2_shift"]


# ---------------------------------------------------------------------------
# Deterministic parameter construction
# ---------------------------------------------------------------------------
def _bn_inference_params(key, c, eps=1e-5):
    k1, k2, k3, k4 = jax.random.split(key, 4)
    gamma = 1.0 + 0.1 * jax.random.normal(k1, (c,), jnp.float32)
    beta = 0.1 * jax.random.normal(k2, (c,), jnp.float32)
    rmean = 0.1 * jax.random.normal(k3, (c,), jnp.float32)
    rvar = 1.0 + 0.1 * jnp.abs(jax.random.normal(k4, (c,), jnp.float32))
    scale = gamma / jnp.sqrt(rvar + eps)
    shift = beta - rmean * scale
    return scale, shift


def _conv_params(key, kh, kw, cin, cout):
    kw_, kb_ = jax.random.split(key)
    fan_in = kh * kw * cin
    w = jax.random.normal(kw_, (kh, kw, cin, cout), jnp.float32) / jnp.sqrt(float(fan_in))
    b = 0.02 * jax.random.normal(kb_, (cout,), jnp.float32)
    return w, b


def _rconv_params(key, c, feat):
    k1, k2, k3, k4 = jax.random.split(key, 4)
    s1, t1 = _bn_inference_params(k1, c)
    w1, b1 = _conv_params(k2, feat, feat, c, c)
    s2, t2 = _bn_inference_params(k3, c)
    w2, b2 = _conv_params(k4, feat, feat, c, c)
    return dict(bn1_scale=s1, bn1_shift=t1, w1=w1, b1=b1,
                bn2_scale=s2, bn2_shift=t2, w2=w2, b2=b2)


def init_convcoder_params(key, hparams):
    fb = hparams["convcoder"]["f_base"]
    f2 = fb * hparams["convcoder"]["f_scale"]
    ks = jax.random.split(key, 6)
    conv1_w, conv1_b = _conv_params(ks[0], 3, 3, 3, fb)
    rb1 = _rconv_params(ks[1], fb, 3)        # copy.deepcopy -> shared init across n_layer
    ln1_scale, ln1_shift = _bn_inference_params(ks[2], fb)
    conv2_w, conv2_b = _conv_params(ks[3], 1, 1, fb, f2)
    rb2 = _rconv_params(ks[4], f2, 1)        # copy.deepcopy -> shared init across n_id
    ln2_scale, ln2_shift = _bn_inference_params(ks[5], 1)
    return dict(conv1_w=conv1_w, conv1_b=conv1_b, rb1=rb1,
                ln1_scale=ln1_scale, ln1_shift=ln1_shift,
                conv2_w=conv2_w, conv2_b=conv2_b, rb2=rb2,
                ln2_scale=ln2_scale, ln2_shift=ln2_shift)


if __name__ == "__main__":
    hparams = {
        "convcoder": {"n_layer": 2, "f_base": 16, "f_scale": 2, "n_id": 1},
        "gf_in": 32, "gf_n": 8,   # unused by forward()
    }
    key = jax.random.PRNGKey(0)
    kx, kp = jax.random.split(key)
    x = jax.random.normal(kx, (2, 3, 12, 12), dtype=jnp.float32)   # NCHW, like PyTorch
    params = init_convcoder_params(kp, hparams)

    fwd = jax.jit(lambda xx, pp: convcoder_forward(xx, pp, hparams))
    y = fwd(x, params)
    jax.block_until_ready(y)

    y_ref = convcoder_reference(x, params, hparams)
    fb = hparams["convcoder"]["f_base"]
    f2 = fb * hparams["convcoder"]["f_scale"]
    assert y.shape == (2, f2 * 4 * 4), y.shape
    assert jnp.allclose(y, y_ref, atol=2e-3, rtol=2e-3), \
        float(jnp.max(jnp.abs(y - y_ref)))

    print("KERNEL_OK")
</pallas_src>

<mosaic_0001>
module attributes {stable_mosaic.version = 11 : i64} {
  func.func @_fused_matmul_kernel(%arg0: i32, %arg1: i32, %arg2: i32, %arg3: memref<288x128xf32, #tpu.memory_space<vmem>>, %arg4: memref<128x128xf32, #tpu.memory_space<vmem>>, %arg5: memref<1x128xf32, #tpu.memory_space<vmem>>, %arg6: memref<288x128xf32, #tpu.memory_space<vmem>>, %arg7: memref<288x128xf32, #tpu.memory_space<vmem>>) attributes {dimension_semantics = [#tpu.dimension_semantics<parallel>, #tpu.dimension_semantics<parallel>, #tpu.dimension_semantics<arbitrary>], iteration_bounds = array<i64: 1, 1, 1>, scalar_prefetch = 0 : i64, scratch_operands = 1 : i64, tpu.core_type = #tpu.core_type<tc>, window_params = [{transform_indices = @transform_0, window_bounds = array<i64: 288, 128>}, {transform_indices = @transform_1, window_bounds = array<i64: 128, 128>}, {transform_indices = @transform_2, window_bounds = array<i64: 1, 128>}, {transform_indices = @transform_3, window_bounds = array<i64: 288, 128>}]} {
    %c0_i32 = arith.constant 0 : i32
    %0 = arith.cmpi eq, %arg2, %c0_i32 : i32
    %1 = arith.extui %0 : i1 to i32
    %c0_i32_0 = arith.constant 0 : i32
    %2 = arith.cmpi ne, %1, %c0_i32_0 : i32
    scf.if %2 {
      %cst_10 = arith.constant 0.000000e+00 : f32
      %12 = vector.broadcast %cst_10 : f32 to vector<288x128xf32>
      %c0_11 = arith.constant 0 : index
      %c0_12 = arith.constant 0 : index
      %13 = vector.load %arg7[%c0_11, %c0_12] : memref<288x128xf32, #tpu.memory_space<vmem>>, vector<288x128xf32>
      tpu.vector_store %arg7[%c0_11, %c0_12], %12 {strides = array<i32>} : memref<288x128xf32, #tpu.memory_space<vmem>>, vector<288x128xf32>,
    } else {
    }
    %c0 = arith.constant 0 : index
    %c0_1 = arith.constant 0 : index
    %3 = vector.load %arg3[%c0, %c0_1] : memref<288x128xf32, #tpu.memory_space<vmem>>, vector<288x128xf32>
    %c0_2 = arith.constant 0 : index
    %c0_3 = arith.constant 0 : index
    %4 = vector.load %arg7[%c0_2, %c0_3] : memref<288x128xf32, #tpu.memory_space<vmem>>, vector<288x128xf32>
    %c0_4 = arith.constant 0 : index
    %c0_5 = arith.constant 0 : index
    %5 = vector.load %arg4[%c0_4, %c0_5] : memref<128x128xf32, #tpu.memory_space<vmem>>, vector<128x128xf32>
    %cst = arith.constant dense<0.000000e+00> : vector<288x128xf32>
    %6 = tpu.matmul %3, %5, %cst {dimension_numbers = #tpu.dot_dimension_numbers<[1], [0], [0], [1], [0, 0, 1, 1], [], []>} : vector<288x128xf32>, vector<128x128xf32>, vector<288x128xf32> -> vector<288x128xf32>
    %7 = arith.addf %4, %6 : vector<288x128xf32>
    %c0_6 = arith.constant 0 : index
    %c0_7 = arith.constant 0 : index
    %8 = vector.load %arg7[%c0_6, %c0_7] : memref<288x128xf32, #tpu.memory_space<vmem>>, vector<288x128xf32>
    tpu.vector_store %arg7[%c0_6, %c0_7], %7 {strides = array<i32>} : memref<288x128xf32, #tpu.memory_space<vmem>>, vector<288x128xf32>,
    %c0_i32_8 = arith.constant 0 : i32
    %9 = arith.cmpi eq, %arg2, %c0_i32_8 : i32
    %10 = arith.extui %9 : i1 to i32
    %c0_i32_9 = arith.constant 0 : i32
    %11 = arith.cmpi ne, %10, %c0_i32_9 : i32
    scf.if %11 {
      %c0_10 = arith.constant 0 : index
      %c0_11 = arith.constant 0 : index
      %12 = vector.load %arg7[%c0_10, %c0_11] : memref<288x128xf32, #tpu.memory_space<vmem>>, vector<288x128xf32>
      %c0_12 = arith.constant 0 : index
      %c0_13 = arith.constant 0 : index
      %13 = vector.load %arg5[%c0_12, %c0_13] : memref<1x128xf32, #tpu.memory_space<vmem>>, vector<1x128xf32>
      %14 = vector.broadcast %13 : vector<1x128xf32> to vector<288x128xf32>
      %15 = arith.addf %12, %14 : vector<288x128xf32>
      %c0_14 = arith.constant 0 : index
      %c0_15 = arith.constant 0 : index
      %16 = vector.load %arg6[%c0_14, %c0_15] : memref<288x128xf32, #tpu.memory_space<vmem>>, vector<288x128xf32>
      tpu.vector_store %arg6[%c0_14, %c0_15], %15 {strides = array<i32>} : memref<288x128xf32, #tpu.memory_space<vmem>>, vector<288x128xf32>,
    } else {
    }
    return
  }
  func.func @transform_0(%arg0: i32, %arg1: i32, %arg2: i32) -> (i32, i32) {
    %c0_i32 = arith.constant 0 : i32
    return %arg0, %arg2 : i32, i32
  }
  func.func @transform_1(%arg0: i32, %arg1: i32, %arg2: i32) -> (i32, i32) {
    %c0_i32 = arith.constant 0 : i32
    return %arg2, %arg1 : i32, i32
  }
  func.func @transform_2(%arg0: i32, %arg1: i32, %arg2: i32) -> (i32, i32) {
    %c0_i32 = arith.constant 0 : i32
    %c0_i32_0 = arith.constant 0 : i32
    return %c0_i32, %arg1 : i32, i32
  }
  func.func @transform_3(%arg0: i32, %arg1: i32, %arg2: i32) -> (i32, i32) {
    %c0_i32 = arith.constant 0 : i32
    return %arg0, %arg1 : i32, i32
  }
}

module attributes {stable_mosaic.version = 11 : i64} {
  func.func @_bn_act_kernel(%arg0: i32, %arg1: memref<8x1024xf32, #tpu.memory_space<vmem>>, %arg2: memref<1x1024xf32, #tpu.memory_space<vmem>>, %arg3: memref<1x1024xf32, #tpu.memory_space<vmem>>, %arg4: memref<8x1024xf32, #tpu.memory_space<vmem>>) attributes {dimension_semantics = [#tpu.dimension_semantics<parallel>], iteration_bounds = array<i64: 1>, scalar_prefetch = 0 : i64, scratch_operands = 0 : i64, tpu.core_type = #tpu.core_type<tc>, window_params = [{transform_indices = @transform_0, window_bounds = array<i64: 8, 1024>}, {pipeline_mode = #tpu.pipeline_mode<synchronous>, transform_indices = @transform_1, window_bounds = array<i64: 1, 1024>}, {pipeline_mode = #tpu.pipeline_mode<synchronous>, transform_indices = @transform_2, window_bounds = array<i64: 1, 1024>}, {transform_indices = @transform_3, window_bounds = array<i64: 8, 1024>}]} {
    %c0 = arith.constant 0 : index
    %c0_0 = arith.constant 0 : index
    %0 = vector.load %arg1[%c0, %c0_0] : memref<8x1024xf32, #tpu.memory_space<vmem>>, vector<8x1024xf32>
    %c0_1 = arith.constant 0 : index
    %c0_2 = arith.constant 0 : index
    %1 = vector.load %arg2[%c0_1, %c0_2] : memref<1x1024xf32, #tpu.memory_space<vmem>>, vector<1x1024xf32>
    %2 = vector.broadcast %1 : vector<1x1024xf32> to vector<8x1024xf32>
    %3 = arith.mulf %0, %2 : vector<8x1024xf32>
    %c0_3 = arith.constant 0 : index
    %c0_4 = arith.constant 0 : index
    %4 = vector.load %arg3[%c0_3, %c0_4] : memref<1x1024xf32, #tpu.memory_space<vmem>>, vector<1x1024xf32>
    %5 = vector.broadcast %4 : vector<1x1024xf32> to vector<8x1024xf32>
    %6 = arith.addf %3, %5 : vector<8x1024xf32>
    %cst = arith.constant 0.000000e+00 : f32
    %7 = vector.broadcast %cst : f32 to vector<8x1024xf32>
    %8 = arith.maximumf %6, %7 : vector<8x1024xf32>
    %c0_5 = arith.constant 0 : index
    %c0_6 = arith.constant 0 : index
    %9 = vector.load %arg4[%c0_5, %c0_6] : memref<8x1024xf32, #tpu.memory_space<vmem>>, vector<8x1024xf32>
    tpu.vector_store %arg4[%c0_5, %c0_6], %8 {strides = array<i32>} : memref<8x1024xf32, #tpu.memory_space<vmem>>, vector<8x1024xf32>,
    return
  }
  func.func @transform_0(%arg0: i32) -> (i32, i32) {
    %c0_i32 = arith.constant 0 : i32
    %c0_i32_0 = arith.constant 0 : i32
    return %arg0, %c0_i32 : i32, i32
  }
  func.func @transform_1(%arg0: i32) -> (i32, i32) {
    %c0_i32 = arith.constant 0 : i32
    %c0_i32_0 = arith.constant 0 : i32
    %c0_i32_1 = arith.constant 0 : i32
    return %c0_i32, %c0_i32_0 : i32, i32
  }
  func.func @transform_2(%arg0: i32) -> (i32, i32) {
    %c0_i32 = arith.constant 0 : i32
    %c0_i32_0 = arith.constant 0 : i32
    %c0_i32_1 = arith.constant 0 : i32
    return %c0_i32, %c0_i32_0 : i32, i32
  }
  func.func @transform_3(%arg0: i32) -> (i32, i32) {
    %c0_i32 = arith.constant 0 : i32
    %c0_i32_0 = arith.constant 0 : i32
    return %arg0, %c0_i32 : i32, i32
  }
}

module attributes {stable_mosaic.version = 11 : i64} {
  func.func @_fused_matmul_kernel(%arg0: i32, %arg1: i32, %arg2: i32, %arg3: memref<288x256xf32, #tpu.memory_space<vmem>>, %arg4: memref<256x128xf32, #tpu.memory_space<vmem>>, %arg5: memref<1x128xf32, #tpu.memory_space<vmem>>, %arg6: memref<1x128xf32, #tpu.memory_space<vmem>>, %arg7: memref<1x128xf32, #tpu.memory_space<vmem>>, %arg8: memref<288x128xf32, #tpu.memory_space<vmem>>, %arg9: memref<288x128xf32, #tpu.memory_space<vmem>>) attributes {dimension_semantics = [#tpu.dimension_semantics<parallel>, #tpu.dimension_semantics<parallel>, #tpu.dimension_semantics<arbitrary>], iteration_bounds = array<i64: 1, 1, 1>, scalar_prefetch = 0 : i64, scratch_operands = 1 : i64, tpu.core_type = #tpu.core_type<tc>, window_params = [{transform_indices = @transform_0, window_bounds = array<i64: 288, 256>}, {transform_indices = @transform_1, window_bounds = array<i64: 256, 128>}, {transform_indices = @transform_2, window_bounds = array<i64: 1, 128>}, {transform_indices = @transform_3, window_bounds = array<i64: 1, 128>}, {transform_indices = @transform_4, window_bounds = array<i64: 1, 128>}, {transform_indices = @transform_5, window_bounds = array<i64: 288, 128>}]} {
    %c0_i32 = arith.constant 0 : i32
    %0 = arith.cmpi eq, %arg2, %c0_i32 : i32
    %1 = arith.extui %0 : i1 to i32
    %c0_i32_0 = arith.constant 0 : i32
    %2 = arith.cmpi ne, %1, %c0_i32_0 : i32
    scf.if %2 {
      %cst_10 = arith.constant 0.000000e+00 : f32
      %12 = vector.broadcast %cst_10 : f32 to vector<288x128xf32>
      %c0_11 = arith.constant 0 : index
      %c0_12 = arith.constant 0 : index
      %13 = vector.load %arg9[%c0_11, %c0_12] : memref<288x128xf32, #tpu.memory_space<vmem>>, vector<288x128xf32>
      tpu.vector_store %arg9[%c0_11, %c0_12], %12 {strides = array<i32>} : memref<288x128xf32, #tpu.memory_space<vmem>>, vector<288x128xf32>,
    } else {
    }
    %c0 = arith.constant 0 : index
    %c0_1 = arith.constant 0 : index
    %3 = vector.load %arg3[%c0, %c0_1] : memref<288x256xf32, #tpu.memory_space<vmem>>, vector<288x256xf32>
    %c0_2 = arith.constant 0 : index
    %c0_3 = arith.constant 0 : index
    %4 = vector.load %arg9[%c0_2, %c0_3] : memref<288x128xf32, #tpu.memory_space<vmem>>, vector<288x128xf32>
    %c0_4 = arith.constant 0 : index
    %c0_5 = arith.constant 0 : index
    %5 = vector.load %arg4[%c0_4, %c0_5] : memref<256x128xf32, #tpu.memory_space<vmem>>, vector<256x128xf32>
    %cst = arith.constant dense<0.000000e+00> : vector<288x128xf32>
    %6 = tpu.matmul %3, %5, %cst {dimension_numbers = #tpu.dot_dimension_numbers<[1], [0], [0], [1], [0, 0, 1, 1], [], []>} : vector<288x256xf32>, vector<256x128xf32>, vector<288x128xf32> -> vector<288x128xf32>
    %7 = arith.addf %4, %6 : vector<288x128xf32>
    %c0_6 = arith.constant 0 : index
    %c0_7 = arith.constant 0 : index
    %8 = vector.load %arg9[%c0_6, %c0_7] : memref<288x128xf32, #tpu.memory_space<vmem>>, vector<288x128xf32>
    tpu.vector_store %arg9[%c0_6, %c0_7], %7 {strides = array<i32>} : memref<288x128xf32, #tpu.memory_space<vmem>>, vector<288x128xf32>,
    %c0_i32_8 = arith.constant 0 : i32
    %9 = arith.cmpi eq, %arg2, %c0_i32_8 : i32
    %10 = arith.extui %9 : i1 to i32
    %c0_i32_9 = arith.constant 0 : i32
    %11 = arith.cmpi ne, %10, %c0_i32_9 : i32
    scf.if %11 {
      %c0_10 = arith.constant 0 : index
      %c0_11 = arith.constant 0 : index
      %12 = vector.load %arg9[%c0_10, %c0_11] : memref<288x128xf32, #tpu.memory_space<vmem>>, vector<288x128xf32>
      %c0_12 = arith.constant 0 : index
      %c0_13 = arith.constant 0 : index
      %13 = vector.load %arg5[%c0_12, %c0_13] : memref<1x128xf32, #tpu.memory_space<vmem>>, vector<1x128xf32>
      %14 = vector.broadcast %13 : vector<1x128xf32> to vector<288x128xf32>
      %15 = arith.addf %12, %14 : vector<288x128xf32>
      %c0_14 = arith.constant 0 : index
      %c0_15 = arith.constant 0 : index
      %16 = vector.load %arg6[%c0_14, %c0_15] : memref<1x128xf32, #tpu.memory_space<vmem>>, vector<1x128xf32>
      %17 = vector.broadcast %16 : vector<1x128xf32> to vector<288x128xf32>
      %18 = arith.mulf %15, %17 : vector<288x128xf32>
      %c0_16 = arith.constant 0 : index
      %c0_17 = arith.constant 0 : index
      %19 = vector.load %arg7[%c0_16, %c0_17] : memref<1x128xf32, #tpu.memory_space<vmem>>, vector<1x128xf32>
      %20 = vector.broadcast %19 : vector<1x128xf32> to vector<288x128xf32>
      %21 = arith.addf %18, %20 : vector<288x128xf32>
      %cst_18 = arith.constant 0.000000e+00 : f32
      %22 = vector.broadcast %cst_18 : f32 to vector<288x128xf32>
      %23 = arith.maximumf %21, %22 : vector<288x128xf32>
      %c0_19 = arith.constant 0 : index
      %c0_20 = arith.constant 0 : index
      %24 = vector.load %arg8[%c0_19, %c0_20] : memref<288x128xf32, #tpu.memory_space<vmem>>, vector<288x128xf32>
      tpu.vector_store %arg8[%c0_19, %c0_20], %23 {strides = array<i32>} : memref<288x128xf32, #tpu.memory_space<vmem>>, vector<288x128xf32>,
    } else {
    }
    return
  }
  func.func @transform_0(%arg0: i32, %arg1: i32, %arg2: i32) -> (i32, i32) {
    %c0_i32 = arith.constant 0 : i32
    return %arg0, %arg2 : i32, i32
  }
  func.func @transform_1(%arg0: i32, %arg1: i32, %arg2: i32) -> (i32, i32) {
    %c0_i32 = arith.constant 0 : i32
    return %arg2, %arg1 : i32, i32
  }
  func.func @transform_2(%arg0: i32, %arg1: i32, %arg2: i32) -> (i32, i32) {
    %c0_i32 = arith.constant 0 : i32
    %c0_i32_0 = arith.constant 0 : i32
    return %c0_i32, %arg1 : i32, i32
  }
  func.func @transform_3(%arg0: i32, %arg1: i32, %arg2: i32) -> (i32, i32) {
    %c0_i32 = arith.constant 0 : i32
    %c0_i32_0 = arith.constant 0 : i32
    return %c0_i32, %arg1 : i32, i32
  }
  func.func @transform_4(%arg0: i32, %arg1: i32, %arg2: i32) -> (i32, i32) {
    %c0_i32 = arith.constant 0 : i32
    %c0_i32_0 = arith.constant 0 : i32
    return %c0_i32, %arg1 : i32, i32
  }
  func.func @transform_5(%arg0: i32, %arg1: i32, %arg2: i32) -> (i32, i32) {
    %c0_i32 = arith.constant 0 : i32
    return %arg0, %arg1 : i32, i32
  }
}

module attributes {stable_mosaic.version = 11 : i64} {
  func.func @_fused_matmul_kernel(%arg0: i32, %arg1: i32, %arg2: i32, %arg3: memref<288x256xf32, #tpu.memory_space<vmem>>, %arg4: memref<256x128xf32, #tpu.memory_space<vmem>>, %arg5: memref<1x128xf32, #tpu.memory_space<vmem>>, %arg6: memref<288x128xf32, #tpu.memory_space<vmem>>, %arg7: memref<288x128xf32, #tpu.memory_space<vmem>>, %arg8: memref<288x128xf32, #tpu.memory_space<vmem>>) attributes {dimension_semantics = [#tpu.dimension_semantics<parallel>, #tpu.dimension_semantics<parallel>, #tpu.dimension_semantics<arbitrary>], iteration_bounds = array<i64: 1, 1, 1>, scalar_prefetch = 0 : i64, scratch_operands = 1 : i64, tpu.core_type = #tpu.core_type<tc>, window_params = [{transform_indices = @transform_0, window_bounds = array<i64: 288, 256>}, {transform_indices = @transform_1, window_bounds = array<i64: 256, 128>}, {transform_indices = @transform_2, window_bounds = array<i64: 1, 128>}, {transform_indices = @transform_3, window_bounds = array<i64: 288, 128>}, {transform_indices = @transform_4, window_bounds = array<i64: 288, 128>}]} {
    %c0_i32 = arith.constant 0 : i32
    %0 = arith.cmpi eq, %arg2, %c0_i32 : i32
    %1 = arith.extui %0 : i1 to i32
    %c0_i32_0 = arith.constant 0 : i32
    %2 = arith.cmpi ne, %1, %c0_i32_0 : i32
    scf.if %2 {
      %cst_10 = arith.constant 0.000000e+00 : f32
      %12 = vector.broadcast %cst_10 : f32 to vector<288x128xf32>
      %c0_11 = arith.constant 0 : index
      %c0_12 = arith.constant 0 : index
      %13 = vector.load %arg8[%c0_11, %c0_12] : memref<288x128xf32, #tpu.memory_space<vmem>>, vector<288x128xf32>
      tpu.vector_store %arg8[%c0_11, %c0_12], %12 {strides = array<i32>} : memref<288x128xf32, #tpu.memory_space<vmem>>, vector<288x128xf32>,
    } else {
    }
    %c0 = arith.constant 0 : index
    %c0_1 = arith.constant 0 : index
    %3 = vector.load %arg3[%c0, %c0_1] : memref<288x256xf32, #tpu.memory_space<vmem>>, vector<288x256xf32>
    %c0_2 = arith.constant 0 : index
    %c0_3 = arith.constant 0 : index
    %4 = vector.load %arg8[%c0_2, %c0_3] : memref<288x128xf32, #tpu.memory_space<vmem>>, vector<288x128xf32>
    %c0_4 = arith.constant 0 : index
    %c0_5 = arith.constant 0 : index
    %5 = vector.load %arg4[%c0_4, %c0_5] : memref<256x128xf32, #tpu.memory_space<vmem>>, vector<256x128xf32>
    %cst = arith.constant dense<0.000000e+00> : vector<288x128xf32>
    %6 = tpu.matmul %3, %5, %cst {dimension_numbers = #tpu.dot_dimension_numbers<[1], [0], [0], [1], [0, 0, 1, 1], [], []>} : vector<288x256xf32>, vector<256x128xf32>, vector<288x128xf32> -> vector<288x128xf32>
    %7 = arith.addf %4, %6 : vector<288x128xf32>
    %c0_6 = arith.constant 0 : index
    %c0_7 = arith.constant 0 : index
    %8 = vector.load %arg8[%c0_6, %c0_7] : memref<288x128xf32, #tpu.memory_space<vmem>>, vector<288x128xf32>
    tpu.vector_store %arg8[%c0_6, %c0_7], %7 {strides = array<i32>} : memref<288x128xf32, #tpu.memory_space<vmem>>, vector<288x128xf32>,
    %c0_i32_8 = arith.constant 0 : i32
    %9 = arith.cmpi eq, %arg2, %c0_i32_8 : i32
    %10 = arith.extui %9 : i1 to i32
    %c0_i32_9 = arith.constant 0 : i32
    %11 = arith.cmpi ne, %10, %c0_i32_9 : i32
    scf.if %11 {
      %c0_10 = arith.constant 0 : index
      %c0_11 = arith.constant 0 : index
      %12 = vector.load %arg8[%c0_10, %c0_11] : memref<288x128xf32, #tpu.memory_space<vmem>>, vector<288x128xf32>
      %c0_12 = arith.constant 0 : index
      %c0_13 = arith.constant 0 : index
      %13 = vector.load %arg5[%c0_12, %c0_13] : memref<1x128xf32, #tpu.memory_space<vmem>>, vector<1x128xf32>
      %14 = vector.broadcast %13 : vector<1x128xf32> to vector<288x128xf32>
      %15 = arith.addf %12, %14 : vector<288x128xf32>
      %c0_14 = arith.constant 0 : index
      %c0_15 = arith.constant 0 : index
      %16 = vector.load %arg6[%c0_14, %c0_15] : memref<288x128xf32, #tpu.memory_space<vmem>>, vector<288x128xf32>
      %17 = arith.addf %15, %16 : vector<288x128xf32>
      %c0_16 = arith.constant 0 : index
      %c0_17 = arith.constant 0 : index
      %18 = vector.load %arg7[%c0_16, %c0_17] : memref<288x128xf32, #tpu.memory_space<vmem>>, vector<288x128xf32>
      tpu.vector_store %arg7[%c0_16, %c0_17], %17 {strides = array<i32>} : memref<288x128xf32, #tpu.memory_space<vmem>>, vector<288x128xf32>,
    } else {
    }
    return
  }
  func.func @transform_0(%arg0: i32, %arg1: i32, %arg2: i32) -> (i32, i32) {
    %c0_i32 = arith.constant 0 : i32
    return %arg0, %arg2 : i32, i32
  }
  func.func @transform_1(%arg0: i32, %arg1: i32, %arg2: i32) -> (i32, i32) {
    %c0_i32 = arith.constant 0 : i32
    return %arg2, %arg1 : i32, i32
  }
  func.func @transform_2(%arg0: i32, %arg1: i32, %arg2: i32) -> (i32, i32) {
    %c0_i32 = arith.constant 0 : i32
    %c0_i32_0 = arith.constant 0 : i32
    return %c0_i32, %arg1 : i32, i32
  }
  func.func @transform_3(%arg0: i32, %arg1: i32, %arg2: i32) -> (i32, i32) {
    %c0_i32 = arith.constant 0 : i32
    return %arg0, %arg1 : i32, i32
  }
  func.func @transform_4(%arg0: i32, %arg1: i32, %arg2: i32) -> (i32, i32) {
    %c0_i32 = arith.constant 0 : i32
    return %arg0, %arg1 : i32, i32
  }
}

module attributes {stable_mosaic.version = 11 : i64} {
  func.func @_fused_matmul_kernel(%arg0: i32, %arg1: i32, %arg2: i32, %arg3: memref<288x256xf32, #tpu.memory_space<vmem>>, %arg4: memref<256x128xf32, #tpu.memory_space<vmem>>, %arg5: memref<1x128xf32, #tpu.memory_space<vmem>>, %arg6: memref<1x128xf32, #tpu.memory_space<vmem>>, %arg7: memref<1x128xf32, #tpu.memory_space<vmem>>, %arg8: memref<288x128xf32, #tpu.memory_space<vmem>>, %arg9: memref<288x128xf32, #tpu.memory_space<vmem>>, %arg10: memref<288x128xf32, #tpu.memory_space<vmem>>) attributes {dimension_semantics = [#tpu.dimension_semantics<parallel>, #tpu.dimension_semantics<parallel>, #tpu.dimension_semantics<arbitrary>], iteration_bounds = array<i64: 1, 1, 1>, scalar_prefetch = 0 : i64, scratch_operands = 1 : i64, tpu.core_type = #tpu.core_type<tc>, window_params = [{transform_indices = @transform_0, window_bounds = array<i64: 288, 256>}, {transform_indices = @transform_1, window_bounds = array<i64: 256, 128>}, {transform_indices = @transform_2, window_bounds = array<i64: 1, 128>}, {transform_indices = @transform_3, window_bounds = array<i64: 1, 128>}, {transform_indices = @transform_4, window_bounds = array<i64: 1, 128>}, {transform_indices = @transform_5, window_bounds = array<i64: 288, 128>}, {transform_indices = @transform_6, window_bounds = array<i64: 288, 128>}]} {
    %c0_i32 = arith.constant 0 : i32
    %0 = arith.cmpi eq, %arg2, %c0_i32 : i32
    %1 = arith.extui %0 : i1 to i32
    %c0_i32_0 = arith.constant 0 : i32
    %2 = arith.cmpi ne, %1, %c0_i32_0 : i32
    scf.if %2 {
      %cst_10 = arith.constant 0.000000e+00 : f32
      %12 = vector.broadcast %cst_10 : f32 to vector<288x128xf32>
      %c0_11 = arith.constant 0 : index
      %c0_12 = arith.constant 0 : index
      %13 = vector.load %arg10[%c0_11, %c0_12] : memref<288x128xf32, #tpu.memory_space<vmem>>, vector<288x128xf32>
      tpu.vector_store %arg10[%c0_11, %c0_12], %12 {strides = array<i32>} : memref<288x128xf32, #tpu.memory_space<vmem>>, vector<288x128xf32>,
    } else {
    }
    %c0 = arith.constant 0 : index
    %c0_1 = arith.constant 0 : index
    %3 = vector.load %arg3[%c0, %c0_1] : memref<288x256xf32, #tpu.memory_space<vmem>>, vector<288x256xf32>
    %c0_2 = arith.constant 0 : index
    %c0_3 = arith.constant 0 : index
    %4 = vector.load %arg10[%c0_2, %c0_3] : memref<288x128xf32, #tpu.memory_space<vmem>>, vector<288x128xf32>
    %c0_4 = arith.constant 0 : index
    %c0_5 = arith.constant 0 : index
    %5 = vector.load %arg4[%c0_4, %c0_5] : memref<256x128xf32, #tpu.memory_space<vmem>>, vector<256x128xf32>
    %cst = arith.constant dense<0.000000e+00> : vector<288x128xf32>
    %6 = tpu.matmul %3, %5, %cst {dimension_numbers = #tpu.dot_dimension_numbers<[1], [0], [0], [1], [0, 0, 1, 1], [], []>} : vector<288x256xf32>, vector<256x128xf32>, vector<288x128xf32> -> vector<288x128xf32>
    %7 = arith.addf %4, %6 : vector<288x128xf32>
    %c0_6 = arith.constant 0 : index
    %c0_7 = arith.constant 0 : index
    %8 = vector.load %arg10[%c0_6, %c0_7] : memref<288x128xf32, #tpu.memory_space<vmem>>, vector<288x128xf32>
    tpu.vector_store %arg10[%c0_6, %c0_7], %7 {strides = array<i32>} : memref<288x128xf32, #tpu.memory_space<vmem>>, vector<288x128xf32>,
    %c0_i32_8 = arith.constant 0 : i32
    %9 = arith.cmpi eq, %arg2, %c0_i32_8 : i32
    %10 = arith.extui %9 : i1 to i32
    %c0_i32_9 = arith.constant 0 : i32
    %11 = arith.cmpi ne, %10, %c0_i32_9 : i32
    scf.if %11 {
      %c0_10 = arith.constant 0 : index
      %c0_11 = arith.constant 0 : index
      %12 = vector.load %arg10[%c0_10, %c0_11] : memref<288x128xf32, #tpu.memory_space<vmem>>, vector<288x128xf32>
      %c0_12 = arith.constant 0 : index
      %c0_13 = arith.constant 0 : index
      %13 = vector.load %arg5[%c0_12, %c0_13] : memref<1x128xf32, #tpu.memory_space<vmem>>, vector<1x128xf32>
      %14 = vector.broadcast %13 : vector<1x128xf32> to vector<288x128xf32>
      %15 = arith.addf %12, %14 : vector<288x128xf32>
      %c0_14 = arith.constant 0 : index
      %c0_15 = arith.constant 0 : index
      %16 = vector.load %arg8[%c0_14, %c0_15] : memref<288x128xf32, #tpu.memory_space<vmem>>, vector<288x128xf32>
      %17 = arith.addf %15, %16 : vector<288x128xf32>
      %c0_16 = arith.constant 0 : index
      %c0_17 = arith.constant 0 : index
      %18 = vector.load %arg6[%c0_16, %c0_17] : memref<1x128xf32, #tpu.memory_space<vmem>>, vector<1x128xf32>
      %19 = vector.broadcast %18 : vector<1x128xf32> to vector<288x128xf32>
      %20 = arith.mulf %17, %19 : vector<288x128xf32>
      %c0_18 = arith.constant 0 : index
      %c0_19 = arith.constant 0 : index
      %21 = vector.load %arg7[%c0_18, %c0_19] : memref<1x128xf32, #tpu.memory_space<vmem>>, vector<1x128xf32>
      %22 = vector.broadcast %21 : vector<1x128xf32> to vector<288x128xf32>
      %23 = arith.addf %20, %22 : vector<288x128xf32>
      %c0_20 = arith.constant 0 : index
      %c0_21 = arith.constant 0 : index
      %24 = vector.load %arg9[%c0_20, %c0_21] : memref<288x128xf32, #tpu.memory_space<vmem>>, vector<288x128xf32>
      tpu.vector_store %arg9[%c0_20, %c0_21], %23 {strides = array<i32>} : memref<288x128xf32, #tpu.memory_space<vmem>>, vector<288x128xf32>,
    } else {
    }
    return
  }
  func.func @transform_0(%arg0: i32, %arg1: i32, %arg2: i32) -> (i32, i32) {
    %c0_i32 = arith.constant 0 : i32
    return %arg0, %arg2 : i32, i32
  }
  func.func @transform_1(%arg0: i32, %arg1: i32, %arg2: i32) -> (i32, i32) {
    %c0_i32 = arith.constant 0 : i32
    return %arg2, %arg1 : i32, i32
  }
  func.func @transform_2(%arg0: i32, %arg1: i32, %arg2: i32) -> (i32, i32) {
    %c0_i32 = arith.constant 0 : i32
    %c0_i32_0 = arith.constant 0 : i32
    return %c0_i32, %arg1 : i32, i32
  }
  func.func @transform_3(%arg0: i32, %arg1: i32, %arg2: i32) -> (i32, i32) {
    %c0_i32 = arith.constant 0 : i32
    %c0_i32_0 = arith.constant 0 : i32
    return %c0_i32, %arg1 : i32, i32
  }
  func.func @transform_4(%arg0: i32, %arg1: i32, %arg2: i32) -> (i32, i32) {
    %c0_i32 = arith.constant 0 : i32
    %c0_i32_0 = arith.constant 0 : i32
    return %c0_i32, %arg1 : i32, i32
  }
  func.func @transform_5(%arg0: i32, %arg1: i32, %arg2: i32) -> (i32, i32) {
    %c0_i32 = arith.constant 0 : i32
    return %arg0, %arg1 : i32, i32
  }
  func.func @transform_6(%arg0: i32, %arg1: i32, %arg2: i32) -> (i32, i32) {
    %c0_i32 = arith.constant 0 : i32
    return %arg0, %arg1 : i32, i32
  }
}

module attributes {stable_mosaic.version = 11 : i64} {
  func.func @_fused_matmul_kernel(%arg0: i32, %arg1: i32, %arg2: i32, %arg3: memref<32x128xf32, #tpu.memory_space<vmem>>, %arg4: memref<128x128xf32, #tpu.memory_space<vmem>>, %arg5: memref<1x128xf32, #tpu.memory_space<vmem>>, %arg6: memref<32x128xf32, #tpu.memory_space<vmem>>, %arg7: memref<32x128xf32, #tpu.memory_space<vmem>>) attributes {dimension_semantics = [#tpu.dimension_semantics<parallel>, #tpu.dimension_semantics<parallel>, #tpu.dimension_semantics<arbitrary>], iteration_bounds = array<i64: 1, 1, 1>, scalar_prefetch = 0 : i64, scratch_operands = 1 : i64, tpu.core_type = #tpu.core_type<tc>, window_params = [{transform_indices = @transform_0, window_bounds = array<i64: 32, 128>}, {transform_indices = @transform_1, window_bounds = array<i64: 128, 128>}, {transform_indices = @transform_2, window_bounds = array<i64: 1, 128>}, {transform_indices = @transform_3, window_bounds = array<i64: 32, 128>}]} {
    %c0_i32 = arith.constant 0 : i32
    %0 = arith.cmpi eq, %arg2, %c0_i32 : i32
    %1 = arith.extui %0 : i1 to i32
    %c0_i32_0 = arith.constant 0 : i32
    %2 = arith.cmpi ne, %1, %c0_i32_0 : i32
    scf.if %2 {
      %cst_10 = arith.constant 0.000000e+00 : f32
      %12 = vector.broadcast %cst_10 : f32 to vector<32x128xf32>
      %c0_11 = arith.constant 0 : index
      %c0_12 = arith.constant 0 : index
      %13 = vector.load %arg7[%c0_11, %c0_12] : memref<32x128xf32, #tpu.memory_space<vmem>>, vector<32x128xf32>
      tpu.vector_store %arg7[%c0_11, %c0_12], %12 {strides = array<i32>} : memref<32x128xf32, #tpu.memory_space<vmem>>, vector<32x128xf32>,
    } else {
    }
    %c0 = arith.constant 0 : index
    %c0_1 = arith.constant 0 : index
    %3 = vector.load %arg3[%c0, %c0_1] : memref<32x128xf32, #tpu.memory_space<vmem>>, vector<32x128xf32>
    %c0_2 = arith.constant 0 : index
    %c0_3 = arith.constant 0 : index
    %4 = vector.load %arg7[%c0_2, %c0_3] : memref<32x128xf32, #tpu.memory_space<vmem>>, vector<32x128xf32>
    %c0_4 = arith.constant 0 : index
    %c0_5 = arith.constant 0 : index
    %5 = vector.load %arg4[%c0_4, %c0_5] : memref<128x128xf32, #tpu.memory_space<vmem>>, vector<128x128xf32>
    %cst = arith.constant dense<0.000000e+00> : vector<32x128xf32>
    %6 = tpu.matmul %3, %5, %cst {dimension_numbers = #tpu.dot_dimension_numbers<[1], [0], [0], [1], [0, 0, 1, 1], [], []>} : vector<32x128xf32>, vector<128x128xf32>, vector<32x128xf32> -> vector<32x128xf32>
    %7 = arith.addf %4, %6 : vector<32x128xf32>
    %c0_6 = arith.constant 0 : index
    %c0_7 = arith.constant 0 : index
    %8 = vector.load %arg7[%c0_6, %c0_7] : memref<32x128xf32, #tpu.memory_space<vmem>>, vector<32x128xf32>
    tpu.vector_store %arg7[%c0_6, %c0_7], %7 {strides = array<i32>} : memref<32x128xf32, #tpu.memory_space<vmem>>, vector<32x128xf32>,
    %c0_i32_8 = arith.constant 0 : i32
    %9 = arith.cmpi eq, %arg2, %c0_i32_8 : i32
    %10 = arith.extui %9 : i1 to i32
    %c0_i32_9 = arith.constant 0 : i32
    %11 = arith.cmpi ne, %10, %c0_i32_9 : i32
    scf.if %11 {
      %c0_10 = arith.constant 0 : index
      %c0_11 = arith.constant 0 : index
      %12 = vector.load %arg7[%c0_10, %c0_11] : memref<32x128xf32, #tpu.memory_space<vmem>>, vector<32x128xf32>
      %c0_12 = arith.constant 0 : index
      %c0_13 = arith.constant 0 : index
      %13 = vector.load %arg5[%c0_12, %c0_13] : memref<1x128xf32, #tpu.memory_space<vmem>>, vector<1x128xf32>
      %14 = vector.broadcast %13 : vector<1x128xf32> to vector<32x128xf32>
      %15 = arith.addf %12, %14 : vector<32x128xf32>
      %c0_14 = arith.constant 0 : index
      %c0_15 = arith.constant 0 : index
      %16 = vector.load %arg6[%c0_14, %c0_15] : memref<32x128xf32, #tpu.memory_space<vmem>>, vector<32x128xf32>
      tpu.vector_store %arg6[%c0_14, %c0_15], %15 {strides = array<i32>} : memref<32x128xf32, #tpu.memory_space<vmem>>, vector<32x128xf32>,
    } else {
    }
    return
  }
  func.func @transform_0(%arg0: i32, %arg1: i32, %arg2: i32) -> (i32, i32) {
    %c0_i32 = arith.constant 0 : i32
    return %arg0, %arg2 : i32, i32
  }
  func.func @transform_1(%arg0: i32, %arg1: i32, %arg2: i32) -> (i32, i32) {
    %c0_i32 = arith.constant 0 : i32
    return %arg2, %arg1 : i32, i32
  }
  func.func @transform_2(%arg0: i32, %arg1: i32, %arg2: i32) -> (i32, i32) {
    %c0_i32 = arith.constant 0 : i32
    %c0_i32_0 = arith.constant 0 : i32
    return %c0_i32, %arg1 : i32, i32
  }
  func.func @transform_3(%arg0: i32, %arg1: i32, %arg2: i32) -> (i32, i32) {
    %c0_i32 = arith.constant 0 : i32
    return %arg0, %arg1 : i32, i32
  }
}

module attributes {stable_mosaic.version = 11 : i64} {
  func.func @_fused_matmul_kernel(%arg0: i32, %arg1: i32, %arg2: i32, %arg3: memref<32x128xf32, #tpu.memory_space<vmem>>, %arg4: memref<128x128xf32, #tpu.memory_space<vmem>>, %arg5: memref<1x128xf32, #tpu.memory_space<vmem>>, %arg6: memref<1x128xf32, #tpu.memory_space<vmem>>, %arg7: memref<1x128xf32, #tpu.memory_space<vmem>>, %arg8: memref<1x128xf32, #tpu.memory_space<vmem>>, %arg9: memref<1x128xf32, #tpu.memory_space<vmem>>, %arg10: memref<32x128xf32, #tpu.memory_space<vmem>>, %arg11: memref<32x128xf32, #tpu.memory_space<vmem>>) attributes {dimension_semantics = [#tpu.dimension_semantics<parallel>, #tpu.dimension_semantics<parallel>, #tpu.dimension_semantics<arbitrary>], iteration_bounds = array<i64: 1, 1, 1>, scalar_prefetch = 0 : i64, scratch_operands = 1 : i64, tpu.core_type = #tpu.core_type<tc>, window_params = [{transform_indices = @transform_0, window_bounds = array<i64: 32, 128>}, {transform_indices = @transform_1, window_bounds = array<i64: 128, 128>}, {transform_indices = @transform_2, window_bounds = array<i64: 1, 128>}, {transform_indices = @transform_3, window_bounds = array<i64: 1, 128>}, {transform_indices = @transform_4, window_bounds = array<i64: 1, 128>}, {transform_indices = @transform_5, window_bounds = array<i64: 1, 128>}, {transform_indices = @transform_6, window_bounds = array<i64: 1, 128>}, {transform_indices = @transform_7, window_bounds = array<i64: 32, 128>}]} {
    %c0_i32 = arith.constant 0 : i32
    %0 = arith.cmpi eq, %arg2, %c0_i32 : i32
    %1 = arith.extui %0 : i1 to i32
    %c0_i32_0 = arith.constant 0 : i32
    %2 = arith.cmpi ne, %1, %c0_i32_0 : i32
    scf.if %2 {
      %cst_15 = arith.constant 0.000000e+00 : f32
      %20 = vector.broadcast %cst_15 : f32 to vector<32x128xf32>
      %c0_16 = arith.constant 0 : index
      %c0_17 = arith.constant 0 : index
      %21 = vector.load %arg11[%c0_16, %c0_17] : memref<32x128xf32, #tpu.memory_space<vmem>>, vector<32x128xf32>
      tpu.vector_store %arg11[%c0_16, %c0_17], %20 {strides = array<i32>} : memref<32x128xf32, #tpu.memory_space<vmem>>, vector<32x128xf32>,
    } else {
    }
    %c0 = arith.constant 0 : index
    %c0_1 = arith.constant 0 : index
    %3 = vector.load %arg3[%c0, %c0_1] : memref<32x128xf32, #tpu.memory_space<vmem>>, vector<32x128xf32>
    %c0_2 = arith.constant 0 : index
    %c0_3 = arith.constant 0 : index
    %4 = vector.load %arg6[%c0_2, %c0_3] : memref<1x128xf32, #tpu.memory_space<vmem>>, vector<1x128xf32>
    %5 = vector.broadcast %4 : vector<1x128xf32> to vector<32x128xf32>
    %6 = arith.mulf %3, %5 : vector<32x128xf32>
    %c0_4 = arith.constant 0 : index
    %c0_5 = arith.constant 0 : index
    %7 = vector.load %arg7[%c0_4, %c0_5] : memref<1x128xf32, #tpu.memory_space<vmem>>, vector<1x128xf32>
    %8 = vector.broadcast %7 : vector<1x128xf32> to vector<32x128xf32>
    %9 = arith.addf %6, %8 : vector<32x128xf32>
    %cst = arith.constant 0.000000e+00 : f32
    %10 = vector.broadcast %cst : f32 to vector<32x128xf32>
    %11 = arith.maximumf %9, %10 : vector<32x128xf32>
    %c0_6 = arith.constant 0 : index
    %c0_7 = arith.constant 0 : index
    %12 = vector.load %arg11[%c0_6, %c0_7] : memref<32x128xf32, #tpu.memory_space<vmem>>, vector<32x128xf32>
    %c0_8 = arith.constant 0 : index
    %c0_9 = arith.constant 0 : index
    %13 = vector.load %arg4[%c0_8, %c0_9] : memref<128x128xf32, #tpu.memory_space<vmem>>, vector<128x128xf32>
    %cst_10 = arith.constant dense<0.000000e+00> : vector<32x128xf32>
    %14 = tpu.matmul %11, %13, %cst_10 {dimension_numbers = #tpu.dot_dimension_numbers<[1], [0], [0], [1], [0, 0, 1, 1], [], []>} : vector<32x128xf32>, vector<128x128xf32>, vector<32x128xf32> -> vector<32x128xf32>
    %15 = arith.addf %12, %14 : vector<32x128xf32>
    %c0_11 = arith.constant 0 : index
    %c0_12 = arith.constant 0 : index
    %16 = vector.load %arg11[%c0_11, %c0_12] : memref<32x128xf32, #tpu.memory_space<vmem>>, vector<32x128xf32>
    tpu.vector_store %arg11[%c0_11, %c0_12], %15 {strides = array<i32>} : memref<32x128xf32, #tpu.memory_space<vmem>>, vector<32x128xf32>,
    %c0_i32_13 = arith.constant 0 : i32
    %17 = arith.cmpi eq, %arg2, %c0_i32_13 : i32
    %18 = arith.extui %17 : i1 to i32
    %c0_i32_14 = arith.constant 0 : i32
    %19 = arith.cmpi ne, %18, %c0_i32_14 : i32
    scf.if %19 {
      %c0_15 = arith.constant 0 : index
      %c0_16 = arith.constant 0 : index
      %20 = vector.load %arg11[%c0_15, %c0_16] : memref<32x128xf32, #tpu.memory_space<vmem>>, vector<32x128xf32>
      %c0_17 = arith.constant 0 : index
      %c0_18 = arith.constant 0 : index
      %21 = vector.load %arg5[%c0_17, %c0_18] : memref<1x128xf32, #tpu.memory_space<vmem>>, vector<1x128xf32>
      %22 = vector.broadcast %21 : vector<1x128xf32> to vector<32x128xf32>
      %23 = arith.addf %20, %22 : vector<32x128xf32>
      %c0_19 = arith.constant 0 : index
      %c0_20 = arith.constant 0 : index
      %24 = vector.load %arg8[%c0_19, %c0_20] : memref<1x128xf32, #tpu.memory_space<vmem>>, vector<1x128xf32>
      %25 = vector.broadcast %24 : vector<1x128xf32> to vector<32x128xf32>
      %26 = arith.mulf %23, %25 : vector<32x128xf32>
      %c0_21 = arith.constant 0 : index
      %c0_22 = arith.constant 0 : index
      %27 = vector.load %arg9[%c0_21, %c0_22] : memref<1x128xf32, #tpu.memory_space<vmem>>, vector<1x128xf32>
      %28 = vector.broadcast %27 : vector<1x128xf32> to vector<32x128xf32>
      %29 = arith.addf %26, %28 : vector<32x128xf32>
      %cst_23 = arith.constant 0.000000e+00 : f32
      %30 = vector.broadcast %cst_23 : f32 to vector<32x128xf32>
      %31 = arith.maximumf %29, %30 : vector<32x128xf32>
      %c0_24 = arith.constant 0 : index
      %c0_25 = arith.constant 0 : index
      %32 = vector.load %arg10[%c0_24, %c0_25] : memref<32x128xf32, #tpu.memory_space<vmem>>, vector<32x128xf32>
      tpu.vector_store %arg10[%c0_24, %c0_25], %31 {strides = array<i32>} : memref<32x128xf32, #tpu.memory_space<vmem>>, vector<32x128xf32>,
    } else {
    }
    return
  }
  func.func @transform_0(%arg0: i32, %arg1: i32, %arg2: i32) -> (i32, i32) {
    %c0_i32 = arith.constant 0 : i32
    return %arg0, %arg2 : i32, i32
  }
  func.func @transform_1(%arg0: i32, %arg1: i32, %arg2: i32) -> (i32, i32) {
    %c0_i32 = arith.constant 0 : i32
    return %arg2, %arg1 : i32, i32
  }
  func.func @transform_2(%arg0: i32, %arg1: i32, %arg2: i32) -> (i32, i32) {
    %c0_i32 = arith.constant 0 : i32
    %c0_i32_0 = arith.constant 0 : i32
    return %c0_i32, %arg1 : i32, i32
  }
  func.func @transform_3(%arg0: i32, %arg1: i32, %arg2: i32) -> (i32, i32) {
    %c0_i32 = arith.constant 0 : i32
    %c0_i32_0 = arith.constant 0 : i32
    return %c0_i32, %arg2 : i32, i32
  }
  func.func @transform_4(%arg0: i32, %arg1: i32, %arg2: i32) -> (i32, i32) {
    %c0_i32 = arith.constant 0 : i32
    %c0_i32_0 = arith.constant 0 : i32
    return %c0_i32, %arg2 : i32, i32
  }
  func.func @transform_5(%arg0: i32, %arg1: i32, %arg2: i32) -> (i32, i32) {
    %c0_i32 = arith.constant 0 : i32
    %c0_i32_0 = arith.constant 0 : i32
    return %c0_i32, %arg1 : i32, i32
  }
  func.func @transform_6(%arg0: i32, %arg1: i32, %arg2: i32) -> (i32, i32) {
    %c0_i32 = arith.constant 0 : i32
    %c0_i32_0 = arith.constant 0 : i32
    return %c0_i32, %arg1 : i32, i32
  }
  func.func @transform_7(%arg0: i32, %arg1: i32, %arg2: i32) -> (i32, i32) {
    %c0_i32 = arith.constant 0 : i32
    return %arg0, %arg1 : i32, i32
  }
}

module attributes {stable_mosaic.version = 11 : i64} {
  func.func @_max9_kernel(%arg0: i32, %arg1: memref<9x8x1024xf32, #tpu.memory_space<vmem>>, %arg2: memref<8x1024xf32, #tpu.memory_space<vmem>>) attributes {dimension_semantics = [#tpu.dimension_semantics<parallel>], iteration_bounds = array<i64: 1>, scalar_prefetch = 0 : i64, scratch_operands = 0 : i64, tpu.core_type = #tpu.core_type<tc>, window_params = [{transform_indices = @transform_0, window_bounds = array<i64: 9, 8, 1024>}, {transform_indices = @transform_1, window_bounds = array<i64: 8, 1024>}]} {
    %c0 = arith.constant 0 : index
    %c0_0 = arith.constant 0 : index
    %c0_1 = arith.constant 0 : index
    %0 = vector.load %arg1[%c0, %c0_0, %c0_1] : memref<9x8x1024xf32, #tpu.memory_space<vmem>>, vector<1x8x1024xf32>
    %1 = vector.shape_cast %0 : vector<1x8x1024xf32> to vector<8x1024xf32>
    %c1 = arith.constant 1 : index
    %c0_2 = arith.constant 0 : index
    %c0_3 = arith.constant 0 : index
    %2 = vector.load %arg1[%c1, %c0_2, %c0_3] : memref<9x8x1024xf32, #tpu.memory_space<vmem>>, vector<1x8x1024xf32>
    %3 = vector.shape_cast %2 : vector<1x8x1024xf32> to vector<8x1024xf32>
    %4 = arith.maximumf %1, %3 : vector<8x1024xf32>
    %c2 = arith.constant 2 : index
    %c0_4 = arith.constant 0 : index
    %c0_5 = arith.constant 0 : index
    %5 = vector.load %arg1[%c2, %c0_4, %c0_5] : memref<9x8x1024xf32, #tpu.memory_space<vmem>>, vector<1x8x1024xf32>
    %6 = vector.shape_cast %5 : vector<1x8x1024xf32> to vector<8x1024xf32>
    %7 = arith.maximumf %4, %6 : vector<8x1024xf32>
    %c3 = arith.constant 3 : index
    %c0_6 = arith.constant 0 : index
    %c0_7 = arith.constant 0 : index
    %8 = vector.load %arg1[%c3, %c0_6, %c0_7] : memref<9x8x1024xf32, #tpu.memory_space<vmem>>, vector<1x8x1024xf32>
    %9 = vector.shape_cast %8 : vector<1x8x1024xf32> to vector<8x1024xf32>
    %10 = arith.maximumf %7, %9 : vector<8x1024xf32>
    %c4 = arith.constant 4 : index
    %c0_8 = arith.constant 0 : index
    %c0_9 = arith.constant 0 : index
    %11 = vector.load %arg1[%c4, %c0_8, %c0_9] : memref<9x8x1024xf32, #tpu.memory_space<vmem>>, vector<1x8x1024xf32>
    %12 = vector.shape_cast %11 : vector<1x8x1024xf32> to vector<8x1024xf32>
    %13 = arith.maximumf %10, %12 : vector<8x1024xf32>
    %c5 = arith.constant 5 : index
    %c0_10 = arith.constant 0 : index
    %c0_11 = arith.constant 0 : index
    %14 = vector.load %arg1[%c5, %c0_10, %c0_11] : memref<9x8x1024xf32, #tpu.memory_space<vmem>>, vector<1x8x1024xf32>
    %15 = vector.shape_cast %14 : vector<1x8x1024xf32> to vector<8x1024xf32>
    %16 = arith.maximumf %13, %15 : vector<8x1024xf32>
    %c6 = arith.constant 6 : index
    %c0_12 = arith.constant 0 : index
    %c0_13 = arith.constant 0 : index
    %17 = vector.load %arg1[%c6, %c0_12, %c0_13] : memref<9x8x1024xf32, #tpu.memory_space<vmem>>, vector<1x8x1024xf32>
    %18 = vector.shape_cast %17 : vector<1x8x1024xf32> to vector<8x1024xf32>
    %19 = arith.maximumf %16, %18 : vector<8x1024xf32>
    %c7 = arith.constant 7 : index
    %c0_14 = arith.constant 0 : index
    %c0_15 = arith.constant 0 : index
    %20 = vector.load %arg1[%c7, %c0_14, %c0_15] : memref<9x8x1024xf32, #tpu.memory_space<vmem>>, vector<1x8x1024xf32>
    %21 = vector.shape_cast %20 : vector<1x8x1024xf32> to vector<8x1024xf32>
    %22 = arith.maximumf %19, %21 : vector<8x1024xf32>
    %c8 = arith.constant 8 : index
    %c0_16 = arith.constant 0 : index
    %c0_17 = arith.constant 0 : index
    %23 = vector.load %arg1[%c8, %c0_16, %c0_17] : memref<9x8x1024xf32, #tpu.memory_space<vmem>>, vector<1x8x1024xf32>
    %24 = vector.shape_cast %23 : vector<1x8x1024xf32> to vector<8x1024xf32>
    %25 = arith.maximumf %22, %24 : vector<8x1024xf32>
    %c0_18 = arith.constant 0 : index
    %c0_19 = arith.constant 0 : index
    %26 = vector.load %arg2[%c0_18, %c0_19] : memref<8x1024xf32, #tpu.memory_space<vmem>>, vector<8x1024xf32>
    tpu.vector_store %arg2[%c0_18, %c0_19], %25 {strides = array<i32>} : memref<8x1024xf32, #tpu.memory_space<vmem>>, vector<8x1024xf32>,
    return
  }
  func.func @transform_0(%arg0: i32) -> (i32, i32, i32) {
    %c0_i32 = arith.constant 0 : i32
    %c0_i32_0 = arith.constant 0 : i32
    %c0_i32_1 = arith.constant 0 : i32
    return %c0_i32, %arg0, %c0_i32_0 : i32, i32, i32
  }
  func.func @transform_1(%arg0: i32) -> (i32, i32) {
    %c0_i32 = arith.constant 0 : i32
    %c0_i32_0 = arith.constant 0 : i32
    return %arg0, %c0_i32 : i32, i32
  }
}

module attributes {stable_mosaic.version = 11 : i64} {
  func.func @_fused_matmul_kernel(%arg0: i32, %arg1: i32, %arg2: i32, %arg3: memref<32x128xf32, #tpu.memory_space<vmem>>, %arg4: memref<128x128xf32, #tpu.memory_space<vmem>>, %arg5: memref<1x128xf32, #tpu.memory_space<vmem>>, %arg6: memref<1x128xf32, #tpu.memory_space<vmem>>, %arg7: memref<1x128xf32, #tpu.memory_space<vmem>>, %arg8: memref<32x128xf32, #tpu.memory_space<vmem>>, %arg9: memref<32x128xf32, #tpu.memory_space<vmem>>, %arg10: memref<32x128xf32, #tpu.memory_space<vmem>>) attributes {dimension_semantics = [#tpu.dimension_semantics<parallel>, #tpu.dimension_semantics<parallel>, #tpu.dimension_semantics<arbitrary>], iteration_bounds = array<i64: 1, 1, 1>, scalar_prefetch = 0 : i64, scratch_operands = 1 : i64, tpu.core_type = #tpu.core_type<tc>, window_params = [{transform_indices = @transform_0, window_bounds = array<i64: 32, 128>}, {transform_indices = @transform_1, window_bounds = array<i64: 128, 128>}, {transform_indices = @transform_2, window_bounds = array<i64: 1, 128>}, {transform_indices = @transform_3, window_bounds = array<i64: 1, 128>}, {transform_indices = @transform_4, window_bounds = array<i64: 1, 128>}, {transform_indices = @transform_5, window_bounds = array<i64: 32, 128>}, {transform_indices = @transform_6, window_bounds = array<i64: 32, 128>}]} {
    %c0_i32 = arith.constant 0 : i32
    %0 = arith.cmpi eq, %arg2, %c0_i32 : i32
    %1 = arith.extui %0 : i1 to i32
    %c0_i32_0 = arith.constant 0 : i32
    %2 = arith.cmpi ne, %1, %c0_i32_0 : i32
    scf.if %2 {
      %cst_10 = arith.constant 0.000000e+00 : f32
      %12 = vector.broadcast %cst_10 : f32 to vector<32x128xf32>
      %c0_11 = arith.constant 0 : index
      %c0_12 = arith.constant 0 : index
      %13 = vector.load %arg10[%c0_11, %c0_12] : memref<32x128xf32, #tpu.memory_space<vmem>>, vector<32x128xf32>
      tpu.vector_store %arg10[%c0_11, %c0_12], %12 {strides = array<i32>} : memref<32x128xf32, #tpu.memory_space<vmem>>, vector<32x128xf32>,
    } else {
    }
    %c0 = arith.constant 0 : index
    %c0_1 = arith.constant 0 : index
    %3 = vector.load %arg3[%c0, %c0_1] : memref<32x128xf32, #tpu.memory_space<vmem>>, vector<32x128xf32>
    %c0_2 = arith.constant 0 : index
    %c0_3 = arith.constant 0 : index
    %4 = vector.load %arg10[%c0_2, %c0_3] : memref<32x128xf32, #tpu.memory_space<vmem>>, vector<32x128xf32>
    %c0_4 = arith.constant 0 : index
    %c0_5 = arith.constant 0 : index
    %5 = vector.load %arg4[%c0_4, %c0_5] : memref<128x128xf32, #tpu.memory_space<vmem>>, vector<128x128xf32>
    %cst = arith.constant dense<0.000000e+00> : vector<32x128xf32>
    %6 = tpu.matmul %3, %5, %cst {dimension_numbers = #tpu.dot_dimension_numbers<[1], [0], [0], [1], [0, 0, 1, 1], [], []>} : vector<32x128xf32>, vector<128x128xf32>, vector<32x128xf32> -> vector<32x128xf32>
    %7 = arith.addf %4, %6 : vector<32x128xf32>
    %c0_6 = arith.constant 0 : index
    %c0_7 = arith.constant 0 : index
    %8 = vector.load %arg10[%c0_6, %c0_7] : memref<32x128xf32, #tpu.memory_space<vmem>>, vector<32x128xf32>
    tpu.vector_store %arg10[%c0_6, %c0_7], %7 {strides = array<i32>} : memref<32x128xf32, #tpu.memory_space<vmem>>, vector<32x128xf32>,
    %c0_i32_8 = arith.constant 0 : i32
    %9 = arith.cmpi eq, %arg2, %c0_i32_8 : i32
    %10 = arith.extui %9 : i1 to i32
    %c0_i32_9 = arith.constant 0 : i32
    %11 = arith.cmpi ne, %10, %c0_i32_9 : i32
    scf.if %11 {
      %c0_10 = arith.constant 0 : index
      %c0_11 = arith.constant 0 : index
      %12 = vector.load %arg10[%c0_10, %c0_11] : memref<32x128xf32, #tpu.memory_space<vmem>>, vector<32x128xf32>
      %c0_12 = arith.constant 0 : index
      %c0_13 = arith.constant 0 : index
      %13 = vector.load %arg5[%c0_12, %c0_13] : memref<1x128xf32, #tpu.memory_space<vmem>>, vector<1x128xf32>
      %14 = vector.broadcast %13 : vector<1x128xf32> to vector<32x128xf32>
      %15 = arith.addf %12, %14 : vector<32x128xf32>
      %c0_14 = arith.constant 0 : index
      %c0_15 = arith.constant 0 : index
      %16 = vector.load %arg8[%c0_14, %c0_15] : memref<32x128xf32, #tpu.memory_space<vmem>>, vector<32x128xf32>
      %17 = arith.addf %15, %16 : vector<32x128xf32>
      %c0_16 = arith.constant 0 : index
      %c0_17 = arith.constant 0 : index
      %18 = vector.load %arg6[%c0_16, %c0_17] : memref<1x128xf32, #tpu.memory_space<vmem>>, vector<1x128xf32>
      %19 = vector.broadcast %18 : vector<1x128xf32> to vector<32x128xf32>
      %20 = arith.mulf %17, %19 : vector<32x128xf32>
      %c0_18 = arith.constant 0 : index
      %c0_19 = arith.constant 0 : index
      %21 = vector.load %arg7[%c0_18, %c0_19] : memref<1x128xf32, #tpu.memory_space<vmem>>, vector<1x128xf32>
      %22 = vector.broadcast %21 : vector<1x128xf32> to vector<32x128xf32>
      %23 = arith.addf %20, %22 : vector<32x128xf32>
      %c0_20 = arith.constant 0 : index
      %c0_21 = arith.constant 0 : index
      %24 = vector.load %arg9[%c0_20, %c0_21] : memref<32x128xf32, #tpu.memory_space<vmem>>, vector<32x128xf32>
      tpu.vector_store %arg9[%c0_20, %c0_21], %23 {strides = array<i32>} : memref<32x128xf32, #tpu.memory_space<vmem>>, vector<32x128xf32>,
    } else {
    }
    return
  }
  func.func @transform_0(%arg0: i32, %arg1: i32, %arg2: i32) -> (i32, i32) {
    %c0_i32 = arith.constant 0 : i32
    return %arg0, %arg2 : i32, i32
  }
  func.func @transform_1(%arg0: i32, %arg1: i32, %arg2: i32) -> (i32, i32) {
    %c0_i32 = arith.constant 0 : i32
    return %arg2, %arg1 : i32, i32
  }
  func.func @transform_2(%arg0: i32, %arg1: i32, %arg2: i32) -> (i32, i32) {
    %c0_i32 = arith.constant 0 : i32
    %c0_i32_0 = arith.constant 0 : i32
    return %c0_i32, %arg1 : i32, i32
  }
  func.func @transform_3(%arg0: i32, %arg1: i32, %arg2: i32) -> (i32, i32) {
    %c0_i32 = arith.constant 0 : i32
    %c0_i32_0 = arith.constant 0 : i32
    return %c0_i32, %arg1 : i32, i32
  }
  func.func @transform_4(%arg0: i32, %arg1: i32, %arg2: i32) -> (i32, i32) {
    %c0_i32 = arith.constant 0 : i32
    %c0_i32_0 = arith.constant 0 : i32
    return %c0_i32, %arg1 : i32, i32
  }
  func.func @transform_5(%arg0: i32, %arg1: i32, %arg2: i32) -> (i32, i32) {
    %c0_i32 = arith.constant 0 : i32
    return %arg0, %arg1 : i32, i32
  }
  func.func @transform_6(%arg0: i32, %arg1: i32, %arg2: i32) -> (i32, i32) {
    %c0_i32 = arith.constant 0 : i32
    return %arg0, %arg1 : i32, i32
  }
}

</mosaic_0001>

<llo_original>
// kernel: tile.23
$region0: #{tile.23}
  #allocation0 [shape = 's32[1]{0}', space=sflag, size = 0x4, scoped, tag = 'scoped memory for tile.23']
  %s0 = inlined_call_operand.vmem [shape: f32[16], index: 0, kind: input, shape index: {}]
  %s1 = inlined_call_operand.vmem [shape: f32[64,16], index: 1, kind: output, shape index: {}]
  // Predicated region
  $region2: #{tile.23} parent=0 // pred_check
    _
  $region3: #{tile.23} parent=0 // pred_check_branch
    %3 = sbr.rel (0) target = $region5
  $region4: #{tile.23} parent=0 // pred_region
    _
  $region5: #{tile.23} parent=0 // pred_fallthru
    _
  %v4 = vld [vmem:[%s0] ss:$0 sm:$0xff]
  %5 = vst [vmem:[%s1] sm:$0xff] %v4
  %s6 = scalar_lea.vmem %s1, 8
  %7 = vst [vmem:[%s6] sm:$0xff] %v4
  %s8 = scalar_lea.vmem %s1, 16
  %9 = vst [vmem:[%s8] sm:$0xff] %v4
  %s10 = scalar_lea.vmem %s1, 24
  %11 = vst [vmem:[%s10] sm:$0xff] %v4
  %s12 = scalar_lea.vmem %s1, 32
  %13 = vst [vmem:[%s12] sm:$0xff] %v4
  %s14 = scalar_lea.vmem %s1, 40
  %15 = vst [vmem:[%s14] sm:$0xff] %v4
  %s16 = scalar_lea.vmem %s1, 48
  %17 = vst [vmem:[%s16] sm:$0xff] %v4
  %s18 = scalar_lea.vmem %s1, 56
  %19 = vst [vmem:[%s18] sm:$0xff] %v4

// kernel: tile.24
$region0: #{tile.24}
  %s0 = inlined_call_operand.vmem [shape: f32[64,16], index: 0, kind: input, shape index: {}]
  %s1 = inlined_call_operand.vmem [shape: f32[1,1024], index: 1, kind: output, shape index: {}]
  $region1: #{tile.24} parent=0
    #allocation0 [shape = 'u8[32768]{0}', space=vmem, size = 0x8000, scoped, tag = 'scoped mem for output reshape']
    %v2 = vld [vmem:[%s0] ss:$8 sm:$0xf]
    %v3 = vld [vmem:[%s0] ss:$8 sm:$0xf0]
    %vm4 = vcmask 1047556
    %v5 = vsel %vm4, %v3, %v2
    %vm6 = vcmask 130048
    %7 = vst.msk [vmem:[#allocation0] ss:$8 sm:$0xf] %vm6, %v5
    %8 = vst.msk [vmem:[#allocation0] ss:$8 sm:$0xf0] %vm6, %v5
    %s9 = scalar_lea.vmem %s0, 7
    %v10 = vld [vmem:[%s9] ss:$8 sm:$0xf]
    %s11 = scalar_lea.vmem %s0, 7
    %v12 = vld [vmem:[%s11] ss:$8 sm:$0xf0]
    %vm13 = vcmask 1047556
    %v14 = vsel %vm13, %v12, %v10
    %15 = vrot.lane.b32.xlu0 %v14, 112
    %v16 = vpop.permute.xlu0 %15
    %vm17 = vcmask 1048448
    %18 = vst.msk [vmem:[#allocation0] ss:$8 sm:$0xf] %vm17, %v16
    %19 = vst.msk [vmem:[#allocation0] ss:$8 sm:$0xf0] %vm17, %v16
    %s20 = scalar_lea.vmem %s0, 6
    %v21 = vld [vmem:[%s20] ss:$8 sm:$0xf]
    %s22 = scalar_lea.vmem %s0, 6
    %v23 = vld [vmem:[%s22] ss:$8 sm:$0xf0]
    %vm24 = vcmask 1047556
    %v25 = vsel %vm24, %v23, %v21
    %26 = vrot.lane.b32.xlu0 %v25, 96
    %v27 = vpop.permute.xlu0 %26
    %vm28 = vcmask 917248
    %29 = vst.msk [vmem:[#allocation0] ss:$8 sm:$0xf] %vm28, %v27
    %30 = vst.msk [vmem:[#allocation0] ss:$8 sm:$0xf0] %vm28, %v27
    %s31 = scalar_lea.vmem %s0, 5
    %v32 = vld [vmem:[%s31] ss:$8 sm:$0xf]
    %s33 = scalar_lea.vmem %s0, 5
    %v34 = vld [vmem:[%s33] ss:$8 sm:$0xf0]
    %vm35 = vcmask 1047556
    %v36 = vsel %vm35, %v34, %v32
    %37 = vrot.lane.b32.xlu0 %v36, 80
    %v38 = vpop.permute.xlu0 %37
    %vm39 = vcmask 786048
    %40 = vst.msk [vmem:[#allocation0] ss:$8 sm:$0xf] %vm39, %v38
    %41 = vst.msk [vmem:[#allocation0] ss:$8 sm:$0xf0] %vm39, %v38
    %s42 = scalar_lea.vmem %s0, 4
    %v43 = vld [vmem:[%s42] ss:$8 sm:$0xf]
    %s44 = scalar_lea.vmem %s0, 4
    %v45 = vld [vmem:[%s44] ss:$8 sm:$0xf0]
    %vm46 = vcmask 1047556
    %v47 = vsel %vm46, %v45, %v43
    %48 = vrot.lane.b32.xlu0 %v47, 64
    %v49 = vpop.permute.xlu0 %48
    %vm50 = vcmask 654848
    %51 = vst.msk [vmem:[#allocation0] ss:$8 sm:$0xf] %vm50, %v49
    %52 = vst.msk [vmem:[#allocation0] ss:$8 sm:$0xf0] %vm50, %v49
    %s53 = scalar_lea.vmem %s0, 3
    %v54 = vld [vmem:[%s53] ss:$8 sm:$0xf]
    %s55 = scalar_lea.vmem %s0, 3
    %v56 = vld [vmem:[%s55] ss:$8 sm:$0xf0]
    %vm57 = vcmask 1047556
    %v58 = vsel %vm57, %v56, %v54
    %59 = vrot.lane.b32.xlu0 %v58, 48
    %v60 = vpop.permute.xlu0 %59
    %vm61 = vcmask 523648
    %62 = vst.msk [vmem:[#allocation0] ss:$8 sm:$0xf] %vm61, %v60
    %63 = vst.msk [vmem:[#allocation0] ss:$8 sm:$0xf0] %vm61, %v60
    %s64 = scalar_lea.vmem %s0, 2
    %v65 = vld [vmem:[%s64] ss:$8 sm:$0xf]
    %s66 = scalar_lea.vmem %s0, 2
    %v67 = vld [vmem:[%s66] ss:$8 sm:$0xf0]
    %vm68 = vcmask 1047556
    %v69 = vsel %vm68, %v67, %v65
    %70 = vrot.lane.b32.xlu0 %v69, 32
    %v71 = vpop.permute.xlu0 %70
    %vm72 = vcmask 392448
    %73 = vst.msk [vmem:[#allocation0] ss:$8 sm:$0xf] %vm72, %v71
    %74 = vst.msk [vmem:[#allocation0] ss:$8 sm:$0xf0] %vm72, %v71
    %s75 = scalar_lea.vmem %s0, 1
    %v76 = vld [vmem:[%s75] ss:$8 sm:$0xf]
    %s77 = scalar_lea.vmem %s0, 1
    %v78 = vld [vmem:[%s77] ss:$8 sm:$0xf0]
    %vm79 = vcmask 1047556
    %v80 = vsel %vm79, %v78, %v76
    %81 = vrot.lane.b32.xlu0 %v80, 16
    %v82 = vpop.permute.xlu0 %81
    %vm83 = vcmask 261248
    %84 = vst.msk [vmem:[#allocation0] ss:$8 sm:$0xf] %vm83, %v82
    %85 = vst.msk [vmem:[#allocation0] ss:$8 sm:$0xf0] %vm83, %v82
    %s87 = sshll.u32 1, 1
    %s88 = ssub.s32 %s87, 1
    %v90 = vld [vmem:[#allocation0] sm:%s88]
    %s91 = sshll.u32 1, 1
    %s92 = ssub.s32 %s91, 1
    %93 = vst [vmem:[%s1] sm:%s92] %v90
    %s94 = scalar_lea.vmem [#allocation0], 8
    %v95 = vld [vmem:[%s94] sm:%s88]
    %s96 = sshll.u32 1, 1
    %s97 = ssub.s32 %s96, 1
    %s98 = scalar_lea.vmem %s1, 1
    %99 = vst [vmem:[%s98] sm:%s97] %v95
    %s100 = scalar_lea.vmem [#allocation0], 16
    %v101 = vld [vmem:[%s100] sm:%s88]
    %s102 = sshll.u32 1, 1
    %s103 = ssub.s32 %s102, 1
    %s104 = smul.addr 1, 2
    %s105 = scalar_lea.vmem %s1, %s104
    %106 = vst [vmem:[%s105] sm:%s103] %v101
    %s107 = scalar_lea.vmem [#allocation0], 24
    %v108 = vld [vmem:[%s107] sm:%s88]
    %s109 = sshll.u32 1, 1
    %s110 = ssub.s32 %s109, 1
    %s111 = smul.addr 1, 3
    %s112 = scalar_lea.vmem %s1, %s111
    %113 = vst [vmem:[%s112] sm:%s110] %v108
    %s114 = scalar_lea.vmem [#allocation0], 32
    %v115 = vld [vmem:[%s114] sm:%s88]
    %s116 = sshll.u32 1, 1
    %s117 = ssub.s32 %s116, 1
    %s118 = smul.addr 1, 4
    %s119 = scalar_lea.vmem %s1, %s118
    %120 = vst [vmem:[%s119] sm:%s117] %v115
    %s121 = scalar_lea.vmem [#allocation0], 40
    %v122 = vld [vmem:[%s121] sm:%s88]
    %s123 = sshll.u32 1, 1
    %s124 = ssub.s32 %s123, 1
    %s125 = smul.addr 1, 5
    %s126 = scalar_lea.vmem %s1, %s125
    %127 = vst [vmem:[%s126] sm:%s124] %v122
    %s128 = scalar_lea.vmem [#allocation0], 48
    %v129 = vld [vmem:[%s128] sm:%s88]
    %s130 = sshll.u32 1, 1
    %s131 = ssub.s32 %s130, 1
    %s132 = smul.addr 1, 6
    %s133 = scalar_lea.vmem %s1, %s132
    %134 = vst [vmem:[%s133] sm:%s131] %v129
    %s135 = scalar_lea.vmem [#allocation0], 56
    %v136 = vld [vmem:[%s135] sm:%s88]
    %s137 = sshll.u32 1, 1
    %s138 = ssub.s32 %s137, 1
    %s139 = smul.addr 1, 7
    %s140 = scalar_lea.vmem %s1, %s139
    %141 = vst [vmem:[%s140] sm:%s138] %v136

// kernel: _lambda_.12
$region0: #{_lambda_.12}
  #allocation0 [shape = 'u32[]', space=smem, size = 0x4, offset = 0x4, fixed_abs, tag = 'smem constant byte address 0x4 - core index']
  #allocation1 [shape = 'u32[144,128]{1,0:T(1,128)}', space=vmem, size = 0x12000, scoped, tag = 'internal scratch']
  %s0 = inlined_call_operand.vmem [shape: f32[8,1024], index: 0, kind: input, shape index: {}]
  %s1 = inlined_call_operand.vmem [shape: f32[1,1024], index: 1, kind: input, shape index: {}]
  %s2 = inlined_call_operand.vmem [shape: f32[1,1024], index: 2, kind: input, shape index: {}]
  %s3 = inlined_call_operand.vmem [shape: f32[8,1024], index: 3, kind: output, shape index: {}]
  %s4 = sld [smem:[#allocation0]]
  $region22: #{_lambda_.12} parent=0
    _
  %s6 = ssub.s32 1, %s4
  %s7 = scalar_select 0, %s6, %s4
  // Predicated region
  $region2: #{_lambda_.12} parent=0 // pred_check
    _
  $region3: #{_lambda_.12} parent=0 // pred_check_branch
    %9 = sbr.rel (0) target = $region5
  $region4: #{_lambda_.12} parent=0 // pred_region
    _
  $region5: #{_lambda_.12} parent=0 // pred_fallthru
    _
  // Predicated region
  $region6: #{_lambda_.12} parent=0 // pred_check
    _
  $region7: #{_lambda_.12} parent=0 // pred_check_branch
    %11 = sbr.rel (0) target = $region9
  $region8: #{_lambda_.12} parent=0 // pred_region
    _
  $region9: #{_lambda_.12} parent=0 // pred_fallthru
    _
  // Predicated region
  $region10: #{_lambda_.12} parent=0 // pred_check
    _
  $region11: #{_lambda_.12} parent=0 // pred_check_branch
    %13 = sbr.rel (0) target = $region13
  $region12: #{_lambda_.12} parent=0 // pred_region
    _
  $region13: #{_lambda_.12} parent=0 // pred_fallthru
    _
  %v14 = vld [vmem:[%s0] sm:$0xff]
  %v15 = vld [vmem:[%s0 + $0x8] sm:$0xff]
  %v16 = vld [vmem:[%s0 + $0x10] sm:$0xff]
  %v17 = vld [vmem:[%s0 + $0x18] sm:$0xff]
  %v18 = vld [vmem:[%s0 + $0x20] sm:$0xff]
  %v19 = vld [vmem:[%s0 + $0x28] sm:$0xff]
  %v20 = vld [vmem:[%s0 + $0x30] sm:$0xff]
  %v21 = vld [vmem:[%s0 + $0x38] sm:$0xff]
  %v22 = vld [vmem:[%s1] sm:$0xff]
  %v24 = vlaneseq
  %v25 = vshrl.u32 %v24, 7
  %v26 = vsub.s32 0, %v25
  %v27 = vrot.slane %v22, %v26
  %v28 = vlaneseq
  %v29 = vshrl.u32 %v28, 7
  %v30 = vsub.s32 1, %v29
  %v31 = vrot.slane %v22, %v30
  %v32 = vlaneseq
  %v33 = vshrl.u32 %v32, 7
  %v34 = vsub.s32 2, %v33
  %v35 = vrot.slane %v22, %v34
  %v36 = vlaneseq
  %v37 = vshrl.u32 %v36, 7
  %v38 = vsub.s32 3, %v37
  %v39 = vrot.slane %v22, %v38
  %v40 = vlaneseq
  %v41 = vshrl.u32 %v40, 7
  %v42 = vsub.s32 4, %v41
  %v43 = vrot.slane %v22, %v42
  %v44 = vlaneseq
  %v45 = vshrl.u32 %v44, 7
  %v46 = vsub.s32 5, %v45
  %v47 = vrot.slane %v22, %v46
  %v48 = vlaneseq
  %v49 = vshrl.u32 %v48, 7
  %v50 = vsub.s32 6, %v49
  %v51 = vrot.slane %v22, %v50
  %v52 = vlaneseq
  %v53 = vshrl.u32 %v52, 7
  %v54 = vsub.s32 7, %v53
  %v55 = vrot.slane %v22, %v54
  %v64 = vmul.f32 %v14, %v27
  %v65 = vmul.f32 %v15, %v31
  %v66 = vmul.f32 %v16, %v35
  %v67 = vmul.f32 %v17, %v39
  %v68 = vmul.f32 %v18, %v43
  %v69 = vmul.f32 %v19, %v47
  %v70 = vmul.f32 %v20, %v51
  %v71 = vmul.f32 %v21, %v55
  %v72 = vld [vmem:[%s2] sm:$0xff]
  %v74 = vlaneseq
  %v75 = vshrl.u32 %v74, 7
  %v76 = vsub.s32 0, %v75
  %v77 = vrot.slane %v72, %v76
  %v78 = vlaneseq
  %v79 = vshrl.u32 %v78, 7
  %v80 = vsub.s32 1, %v79
  %v81 = vrot.slane %v72, %v80
  %v82 = vlaneseq
  %v83 = vshrl.u32 %v82, 7
  %v84 = vsub.s32 2, %v83
  %v85 = vrot.slane %v72, %v84
  %v86 = vlaneseq
  %v87 = vshrl.u32 %v86, 7
  %v88 = vsub.s32 3, %v87
  %v89 = vrot.slane %v72, %v88
  %v90 = vlaneseq
  %v91 = vshrl.u32 %v90, 7
  %v92 = vsub.s32 4, %v91
  %v93 = vrot.slane %v72, %v92
  %v94 = vlaneseq
  %v95 = vshrl.u32 %v94, 7
  %v96 = vsub.s32 5, %v95
  %v97 = vrot.slane %v72, %v96
  %v98 = vlaneseq
  %v99 = vshrl.u32 %v98, 7
  %v100 = vsub.s32 6, %v99
  %v101 = vrot.slane %v72, %v100
  %v102 = vlaneseq
  %v103 = vshrl.u32 %v102, 7
  %v104 = vsub.s32 7, %v103
  %v105 = vrot.slane %v72, %v104
  %v114 = vadd.f32 %v64, %v77
  %v115 = vadd.f32 %v65, %v81
  %v116 = vadd.f32 %v66, %v85
  %v117 = vadd.f32 %v67, %v89
  %v118 = vadd.f32 %v68, %v93
  %v119 = vadd.f32 %v69, %v97
  %v120 = vadd.f32 %v70, %v101
  %v121 = vadd.f32 %v71, %v105
  %v122 = vmax.f32 %v114, 0.0
  %v123 = vmax.f32 %v115, 0.0
  %v124 = vmax.f32 %v116, 0.0
  %v125 = vmax.f32 %v117, 0.0
  %v126 = vmax.f32 %v118, 0.0
  %v127 = vmax.f32 %v119, 0.0
  %v128 = vmax.f32 %v120, 0.0
  %v129 = vmax.f32 %v121, 0.0
  %130 = vst [vmem:[%s3] sm:$0xff] %v122
  %131 = vst [vmem:[%s3 + $0x8] sm:$0xff] %v123
  %132 = vst [vmem:[%s3 + $0x10] sm:$0xff] %v124
  %133 = vst [vmem:[%s3 + $0x18] sm:$0xff] %v125
  %134 = vst [vmem:[%s3 + $0x20] sm:$0xff] %v126
  %135 = vst [vmem:[%s3 + $0x28] sm:$0xff] %v127
  %136 = vst [vmem:[%s3 + $0x30] sm:$0xff] %v128
  %137 = vst [vmem:[%s3 + $0x38] sm:$0xff] %v129
  // Predicated region
  $region14: #{_lambda_.12} parent=0 // pred_check
    _
  $region15: #{_lambda_.12} parent=0 // pred_check_branch
    %139 = sbr.rel (0) target = $region17
  $region16: #{_lambda_.12} parent=0 // pred_region
    _
  $region17: #{_lambda_.12} parent=0 // pred_fallthru
    _
  // Predicated region
  $region18: #{_lambda_.12} parent=0 // pred_check
    _
  $region19: #{_lambda_.12} parent=0 // pred_check_branch
    %141 = sbr.rel (0) target = $region21
  $region20: #{_lambda_.12} parent=0 // pred_region
    _
  $region21: #{_lambda_.12} parent=0 // pred_fallthru
    _

// kernel: _lambda_.11
$region0: #{_lambda_.11}
  #allocation0 [shape = 'u32[]', space=smem, size = 0x4, offset = 0x4, fixed_abs, tag = 'smem constant byte address 0x4 - core index']
  #allocation1 [shape = 'u32[144,128]{1,0:T(1,128)}', space=vmem, size = 0x12000, scoped, tag = 'internal scratch']
  #allocation2 [shape = 'f32[288,128]{1,0:T(8,128)}', space=vmem, size = 0x24000, scoped, tag = 'scratch operand']
  %s0 = inlined_call_operand.vmem [shape: f32[288,128], index: 0, kind: input, shape index: {}]
  %s1 = inlined_call_operand.vmem [shape: f32[128,128], index: 1, kind: input, shape index: {}]
  %s2 = inlined_call_operand.vmem [shape: f32[1,128], index: 2, kind: input, shape index: {}]
  %s3 = inlined_call_operand.vmem [shape: f32[288,128], index: 3, kind: output, shape index: {}]
  %s4 = sld [smem:[#allocation0]]
  $region30: #{_lambda_.11} parent=0
    _
  %s6 = ssub.s32 1, %s4
  %s7 = scalar_select 0, %s6, %s4
  // Predicated region
  $region2: #{_lambda_.11} parent=0 // pred_check
    _
  $region3: #{_lambda_.11} parent=0 // pred_check_branch
    %9 = sbr.rel (0) target = $region5
  $region4: #{_lambda_.11} parent=0 // pred_region
    _
  $region5: #{_lambda_.11} parent=0 // pred_fallthru
    _
  // Predicated region
  $region6: #{_lambda_.11} parent=0 // pred_check
    _
  $region7: #{_lambda_.11} parent=0 // pred_check_branch
    %11 = sbr.rel (0) target = $region9
  $region8: #{_lambda_.11} parent=0 // pred_region
    _
  $region9: #{_lambda_.11} parent=0 // pred_fallthru
    _
  // Predicated region
  $region10: #{_lambda_.11} parent=0 // pred_check
    _
  $region11: #{_lambda_.11} parent=0 // pred_check_branch
    %13 = sbr.rel (0) target = $region13
  $region12: #{_lambda_.11} parent=0 // pred_region
    _
  $region13: #{_lambda_.11} parent=0 // pred_fallthru
    _
  %p14 = scmp.eq.s32.totalorder 0, 0
  // Predicated region
  $region14: #{_lambda_.11} parent=0 // pred_check
    %p15 = pneg %p14
  $region15: #{_lambda_.11} parent=0 // pred_check_branch
    %17 = sbr.rel (%p15) target = $region17
  $region16: #{_lambda_.11} parent=0 // pred_region
    %18 = vst [vmem:[#allocation2] sm:$0xff] 0.0
    %19 = vst [vmem:[#allocation2 + $0x8] sm:$0xff] 0.0
    %20 = vst [vmem:[#allocation2 + $0x10] sm:$0xff] 0.0
    %21 = vst [vmem:[#allocation2 + $0x18] sm:$0xff] 0.0
    %22 = vst [vmem:[#allocation2 + $0x20] sm:$0xff] 0.0
    %23 = vst [vmem:[#allocation2 + $0x28] sm:$0xff] 0.0
    %24 = vst [vmem:[#allocation2 + $0x30] sm:$0xff] 0.0
    %25 = vst [vmem:[#allocation2 + $0x38] sm:$0xff] 0.0
    %26 = vst [vmem:[#allocation2 + $0x40] sm:$0xff] 0.0
    %27 = vst [vmem:[#allocation2 + $0x48] sm:$0xff] 0.0
    %28 = vst [vmem:[#allocation2 + $0x50] sm:$0xff] 0.0
    %29 = vst [vmem:[#allocation2 + $0x58] sm:$0xff] 0.0
    %30 = vst [vmem:[#allocation2 + $0x60] sm:$0xff] 0.0
    %31 = vst [vmem:[#allocation2 + $0x68] sm:$0xff] 0.0
    %32 = vst [vmem:[#allocation2 + $0x70] sm:$0xff] 0.0
    %33 = vst [vmem:[#allocation2 + $0x78] sm:$0xff] 0.0
    %34 = vst [vmem:[#allocation2 + $0x80] sm:$0xff] 0.0
    %35 = vst [vmem:[#allocation2 + $0x88] sm:$0xff] 0.0
    %36 = vst [vmem:[#allocation2 + $0x90] sm:$0xff] 0.0
    %37 = vst [vmem:[#allocation2 + $0x98] sm:$0xff] 0.0
    %38 = vst [vmem:[#allocation2 + $0xa0] sm:$0xff] 0.0
    %39 = vst [vmem:[#allocation2 + $0xa8] sm:$0xff] 0.0
    %40 = vst [vmem:[#allocation2 + $0xb0] sm:$0xff] 0.0
    %41 = vst [vmem:[#allocation2 + $0xb8] sm:$0xff] 0.0
    %42 = vst [vmem:[#allocation2 + $0xc0] sm:$0xff] 0.0
    %43 = vst [vmem:[#allocation2 + $0xc8] sm:$0xff] 0.0
    %44 = vst [vmem:[#allocation2 + $0xd0] sm:$0xff] 0.0
    %45 = vst [vmem:[#allocation2 + $0xd8] sm:$0xff] 0.0
    %46 = vst [vmem:[#allocation2 + $0xe0] sm:$0xff] 0.0
    %47 = vst [vmem:[#allocation2 + $0xe8] sm:$0xff] 0.0
    %48 = vst [vmem:[#allocation2 + $0xf0] sm:$0xff] 0.0
    %49 = vst [vmem:[#allocation2 + $0xf8] sm:$0xff] 0.0
    %50 = vst [vmem:[#allocation2 + $0x100] sm:$0xff] 0.0
    %51 = vst [vmem:[#allocation2 + $0x108] sm:$0xff] 0.0
    %52 = vst [vmem:[#allocation2 + $0x110] sm:$0xff] 0.0
    %53 = vst [vmem:[#allocation2 + $0x118] sm:$0xff] 0.0
  $region17: #{_lambda_.11} parent=0 // pred_fallthru
    _
  %v54 = vld [vmem:[%s0] sm:$0xff]
  %v55 = vld [vmem:[%s0 + $0x8] sm:$0xff]
  %v56 = vld [vmem:[%s0 + $0x10] sm:$0xff]
  %v57 = vld [vmem:[%s0 + $0x18] sm:$0xff]
  %v58 = vld [vmem:[%s0 + $0x20] sm:$0xff]
  %v59 = vld [vmem:[%s0 + $0x28] sm:$0xff]
  %v60 = vld [vmem:[%s0 + $0x30] sm:$0xff]
  %v61 = vld [vmem:[%s0 + $0x38] sm:$0xff]
  %v62 = vld [vmem:[%s0 + $0x40] sm:$0xff]
  %v63 = vld [vmem:[%s0 + $0x48] sm:$0xff]
  %v64 = vld [vmem:[%s0 + $0x50] sm:$0xff]
  %v65 = vld [vmem:[%s0 + $0x58] sm:$0xff]
  %v66 = vld [vmem:[%s0 + $0x60] sm:$0xff]
  %v67 = vld [vmem:[%s0 + $0x68] sm:$0xff]
  %v68 = vld [vmem:[%s0 + $0x70] sm:$0xff]
  %v69 = vld [vmem:[%s0 + $0x78] sm:$0xff]
  %v70 = vld [vmem:[%s0 + $0x80] sm:$0xff]
  %v71 = vld [vmem:[%s0 + $0x88] sm:$0xff]
  %v72 = vld [vmem:[%s0 + $0x90] sm:$0xff]
  %v73 = vld [vmem:[%s0 + $0x98] sm:$0xff]
  %v74 = vld [vmem:[%s0 + $0xa0] sm:$0xff]
  %v75 = vld [vmem:[%s0 + $0xa8] sm:$0xff]
  %v76 = vld [vmem:[%s0 + $0xb0] sm:$0xff]
  %v77 = vld [vmem:[%s0 + $0xb8] sm:$0xff]
  %v78 = vld [vmem:[%s0 + $0xc0] sm:$0xff]
  %v79 = vld [vmem:[%s0 + $0xc8] sm:$0xff]
  %v80 = vld [vmem:[%s0 + $0xd0] sm:$0xff]
  %v81 = vld [vmem:[%s0 + $0xd8] sm:$0xff]
  %v82 = vld [vmem:[%s0 + $0xe0] sm:$0xff]
  %v83 = vld [vmem:[%s0 + $0xe8] sm:$0xff]
  %v84 = vld [vmem:[%s0 + $0xf0] sm:$0xff]
  %v85 = vld [vmem:[%s0 + $0xf8] sm:$0xff]
  %v86 = vld [vmem:[%s0 + $0x100] sm:$0xff]
  %v87 = vld [vmem:[%s0 + $0x108] sm:$0xff]
  %v88 = vld [vmem:[%s0 + $0x110] sm:$0xff]
  %v89 = vld [vmem:[%s0 + $0x118] sm:$0xff]
  %v90 = vld [vmem:[#allocation2] sm:$0xff]
  %v91 = vld [vmem:[#allocation2 + $0x8] sm:$0xff]
  %v92 = vld [vmem:[#allocation2 + $0x10] sm:$0xff]
  %v93 = vld [vmem:[#allocation2 + $0x18] sm:$0xff]
  %v94 = vld [vmem:[#allocation2 + $0x20] sm:$0xff]
  %v95 = vld [vmem:[#allocation2 + $0x28] sm:$0xff]
  %v96 = vld [vmem:[#allocation2 + $0x30] sm:$0xff]
  %v97 = vld [vmem:[#allocation2 + $0x38] sm:$0xff]
  %v98 = vld [vmem:[#allocation2 + $0x40] sm:$0xff]
  %v99 = vld [vmem:[#allocation2 + $0x48] sm:$0xff]
  %v100 = vld [vmem:[#allocation2 + $0x50] sm:$0xff]
  %v101 = vld [vmem:[#allocation2 + $0x58] sm:$0xff]
  %v102 = vld [vmem:[#allocation2 + $0x60] sm:$0xff]
  %v103 = vld [vmem:[#allocation2 + $0x68] sm:$0xff]
  %v104 = vld [vmem:[#allocation2 + $0x70] sm:$0xff]
  %v105 = vld [vmem:[#allocation2 + $0x78] sm:$0xff]
  %v106 = vld [vmem:[#allocation2 + $0x80] sm:$0xff]
  %v107 = vld [vmem:[#allocation2 + $0x88] sm:$0xff]
  %v108 = vld [vmem:[#allocation2 + $0x90] sm:$0xff]
  %v109 = vld [vmem:[#allocation2 + $0x98] sm:$0xff]
  %v110 = vld [vmem:[#allocation2 + $0xa0] sm:$0xff]
  %v111 = vld [vmem:[#allocation2 + $0xa8] sm:$0xff]
  %v112 = vld [vmem:[#allocation2 + $0xb0] sm:$0xff]
  %v113 = vld [vmem:[#allocation2 + $0xb8] sm:$0xff]
  %v114 = vld [vmem:[#allocation2 + $0xc0] sm:$0xff]
  %v115 = vld [vmem:[#allocation2 + $0xc8] sm:$0xff]
  %v116 = vld [vmem:[#allocation2 + $0xd0] sm:$0xff]
  %v117 = vld [vmem:[#allocation2 + $0xd8] sm:$0xff]
  %v118 = vld [vmem:[#allocation2 + $0xe0] sm:$0xff]
  %v119 = vld [vmem:[#allocation2 + $0xe8] sm:$0xff]
  %v120 = vld [vmem:[#allocation2 + $0xf0] sm:$0xff]
  %v121 = vld [vmem:[#allocation2 + $0xf8] sm:$0xff]
  %v122 = vld [vmem:[#allocation2 + $0x100] sm:$0xff]
  %v123 = vld [vmem:[#allocation2 + $0x108] sm:$0xff]
  %v124 = vld [vmem:[#allocation2 + $0x110] sm:$0xff]
  %v125 = vld [vmem:[#allocation2 + $0x118] sm:$0xff]
  %v126 = vld [vmem:[%s1] sm:$0xff]
  %v127 = vld [vmem:[%s1 + $0x8] sm:$0xff]
  %v128 = vld [vmem:[%s1 + $0x10] sm:$0xff]
  %v129 = vld [vmem:[%s1 + $0x18] sm:$0xff]
  %v130 = vld [vmem:[%s1 + $0x20] sm:$0xff]
  %v131 = vld [vmem:[%s1 + $0x28] sm:$0xff]
  %v132 = vld [vmem:[%s1 + $0x30] sm:$0xff]
  %v133 = vld [vmem:[%s1 + $0x38] sm:$0xff]
  %v134 = vld [vmem:[%s1 + $0x40] sm:$0xff]
  %v135 = vld [vmem:[%s1 + $0x48] sm:$0xff]
  %v136 = vld [vmem:[%s1 + $0x50] sm:$0xff]
  %v137 = vld [vmem:[%s1 + $0x58] sm:$0xff]
  %v138 = vld [vmem:[%s1 + $0x60] sm:$0xff]
  %v139 = vld [vmem:[%s1 + $0x68] sm:$0xff]
  %v140 = vld [vmem:[%s1 + $0x70] sm:$0xff]
  %v141 = vld [vmem:[%s1 + $0x78] sm:$0xff]
  %142 = vmatprep.subr.mxu0 0.0
  %143 = vmatpush1.msra.mxu0 %v141
  %144 = vmatprep.subr.mxu0 0.0
  %145 = vmatpush1.msra.mxu0 %v140
  %146 = vmatprep.subr.mxu0 0.0
  %147 = vmatpush1.msra.mxu0 %v139
  %148 = vmatprep.subr.mxu0 0.0
  %149 = vmatpush1.msra.mxu0 %v138
  %150 = vmatprep.subr.mxu0 0.0
  %151 = vmatpush1.msra.mxu0 %v137
  %152 = vmatprep.subr.mxu0 0.0
  %153 = vmatpush1.msra.mxu0 %v136
  %154 = vmatprep.subr.mxu0 0.0
  %155 = vmatpush1.msra.mxu0 %v135
  %156 = vmatprep.subr.mxu0 0.0
  %157 = vmatpush1.msra.mxu0 %v134
  %158 = vmatprep.subr.mxu0 0.0
  %159 = vmatpush1.msra.mxu0 %v133
  %160 = vmatprep.subr.mxu0 0.0
  %161 = vmatpush1.msra.mxu0 %v132
  %162 = vmatprep.subr.mxu0 0.0
  %163 = vmatpush1.msra.mxu0 %v131
  %164 = vmatprep.subr.mxu0 0.0
  %165 = vmatpush1.msra.mxu0 %v130
  %166 = vmatprep.subr.mxu0 0.0
  %167 = vmatpush1.msra.mxu0 %v129
  %168 = vmatprep.subr.mxu0 0.0
  %169 = vmatpush1.msra.mxu0 %v128
  %170 = vmatprep.subr.mxu0 0.0
  %171 = vmatpush1.msra.mxu0 %v127
  %172 = vmatprep.subr.mxu0 0.0
  %173 = vmatpush1.msra.mxu0 %v126
  %174 = vmatprep.subr.mxu0 0.0
  %175 = vmatpush2.msra.mxu0 0.0
  %176 = vmatprep.subr.mxu0 0.0
  %177 = vmatpush2.msra.mxu0 0.0
  %178 = vmatprep.subr.mxu0 0.0
  %179 = vmatpush2.msra.mxu0 0.0
  %180 = vmatprep.subr.mxu0 0.0
  %181 = vmatpush2.msra.mxu0 0.0
  %182 = vmatprep.subr.mxu0 0.0
  %183 = vmatpush2.msra.mxu0 0.0
  %184 = vmatprep.subr.mxu0 0.0
  %185 = vmatpush2.msra.mxu0 0.0
  %186 = vmatprep.subr.mxu0 0.0
  %187 = vmatpush2.msra.mxu0 0.0
  %188 = vmatprep.subr.mxu0 0.0
  %189 = vmatpush2.msra.mxu0 0.0
  %190 = vmatprep.subr.mxu0 0.0
  %191 = vmatpush2.msra.mxu0 0.0
  %192 = vmatprep.subr.mxu0 0.0
  %193 = vmatpush2.msra.mxu0 0.0
  %194 = vmatprep.subr.mxu0 0.0
  %195 = vmatpush2.msra.mxu0 0.0
  %196 = vmatprep.subr.mxu0 0.0
  %197 = vmatpush2.msra.mxu0 0.0
  %198 = vmatprep.subr.mxu0 0.0
  %199 = vmatpush2.msra.mxu0 0.0
  %200 = vmatprep.subr.mxu0 0.0
  %201 = vmatpush2.msra.mxu0 0.0
  %202 = vmatprep.subr.mxu0 0.0
  %203 = vmatpush2.msra.mxu0 0.0
  %204 = vmatprep.subr.mxu0 0.0
  %205 = vmatpush2.msra.mxu0 0.0
  %206 = vmatprep.mubr.f32.mxu0 0.0
  %207 = vmatmul.mubr.f32.gmra.mxu0 %v54
  %v208 = vpop.f32.mrf.mxu0
  %v209 = vadd.f32 0.0, %v208
  %v210 = vpop.f32.mrf.mxu0
  %211 = vmatprep.mubr.f32.mxu0 0.0
  %212 = vmatmul.mubr.f32.gmra.mxu0 %v55
  %v213 = vpop.f32.mrf.mxu0
  %v214 = vadd.f32 0.0, %v213
  %v215 = vpop.f32.mrf.mxu0
  %216 = vmatprep.mubr.f32.mxu0 0.0
  %217 = vmatmul.mubr.f32.gmra.mxu0 %v56
  %v218 = vpop.f32.mrf.mxu0
  %v219 = vadd.f32 0.0, %v218
  %v220 = vpop.f32.mrf.mxu0
  %221 = vmatprep.mubr.f32.mxu0 0.0
  %222 = vmatmul.mubr.f32.gmra.mxu0 %v57
  %v223 = vpop.f32.mrf.mxu0
  %v224 = vadd.f32 0.0, %v223
  %v225 = vpop.f32.mrf.mxu0
  %226 = vmatprep.mubr.f32.mxu0 0.0
  %227 = vmatmul.mubr.f32.gmra.mxu0 %v58
  %v228 = vpop.f32.mrf.mxu0
  %v229 = vadd.f32 0.0, %v228
  %v230 = vpop.f32.mrf.mxu0
  %231 = vmatprep.mubr.f32.mxu0 0.0
  %232 = vmatmul.mubr.f32.gmra.mxu0 %v59
  %v233 = vpop.f32.mrf.mxu0
  %v234 = vadd.f32 0.0, %v233
  %v235 = vpop.f32.mrf.mxu0
  %236 = vmatprep.mubr.f32.mxu0 0.0
  %237 = vmatmul.mubr.f32.gmra.mxu0 %v60
  %v238 = vpop.f32.mrf.mxu0
  %v239 = vadd.f32 0.0, %v238
  %v240 = vpop.f32.mrf.mxu0
  %241 = vmatprep.mubr.f32.mxu0 0.0
  %242 = vmatmul.mubr.f32.gmra.mxu0 %v61
  %v243 = vpop.f32.mrf.mxu0
  %v244 = vadd.f32 0.0, %v243
  %v245 = vpop.f32.mrf.mxu0
  %246 = vmatprep.mubr.f32.mxu0 0.0
  %247 = vmatmul.mubr.f32.gmra.mxu0 %v62
  %v248 = vpop.f32.mrf.mxu0
  %v249 = vadd.f32 0.0, %v248
  %v250 = vpop.f32.mrf.mxu0
  %251 = vmatprep.mubr.f32.mxu0 0.0
  %252 = vmatmul.mubr.f32.gmra.mxu0 %v63
  %v253 = vpop.f32.mrf.mxu0
  %v254 = vadd.f32 0.0, %v253
  %v255 = vpop.f32.mrf.mxu0
  %256 = vmatprep.mubr.f32.mxu0 0.0
  %257 = vmatmul.mubr.f32.gmra.mxu0 %v64
  %v258 = vpop.f32.mrf.mxu0
  %v259 = vadd.f32 0.0, %v258
  %v260 = vpop.f32.mrf.mxu0
  %261 = vmatprep.mubr.f32.mxu0 0.0
  %262 = vmatmul.mubr.f32.gmra.mxu0 %v65
  %v263 = vpop.f32.mrf.mxu0
  %v264 = vadd.f32 0.0, %v263
  %v265 = vpop.f32.mrf.mxu0
  %266 = vmatprep.mubr.f32.mxu0 0.0
  %267 = vmatmul.mubr.f32.gmra.mxu0 %v66
  %v268 = vpop.f32.mrf.mxu0
  %v269 = vadd.f32 0.0, %v268
  %v270 = vpop.f32.mrf.mxu0
  %271 = vmatprep.mubr.f32.mxu0 0.0
  %272 = vmatmul.mubr.f32.gmra.mxu0 %v67
  %v273 = vpop.f32.mrf.mxu0
  %v274 = vadd.f32 0.0, %v273
  %v275 = vpop.f32.mrf.mxu0
  %276 = vmatprep.mubr.f32.mxu0 0.0
  %277 = vmatmul.mubr.f32.gmra.mxu0 %v68
  %v278 = vpop.f32.mrf.mxu0
  %v279 = vadd.f32 0.0, %v278
  %v280 = vpop.f32.mrf.mxu0
  %281 = vmatprep.mubr.f32.mxu0 0.0
  %282 = vmatmul.mubr.f32.gmra.mxu0 %v69
  %v283 = vpop.f32.mrf.mxu0
  %v284 = vadd.f32 0.0, %v283
  %v285 = vpop.f32.mrf.mxu0
  %286 = vmatprep.mubr.f32.mxu0 0.0
  %287 = vmatmul.mubr.f32.gmra.mxu0 %v70
  %v288 = vpop.f32.mrf.mxu0
  %v289 = vadd.f32 0.0, %v288
  %v290 = vpop.f32.mrf.mxu0
  %291 = vmatprep.mubr.f32.mxu0 0.0
  %292 = vmatmul.mubr.f32.gmra.mxu0 %v71
  %v293 = vpop.f32.mrf.mxu0
  %v294 = vadd.f32 0.0, %v293
  %v295 = vpop.f32.mrf.mxu0
  %296 = vmatprep.mubr.f32.mxu0 0.0
  %297 = vmatmul.mubr.f32.gmra.mxu0 %v72
  %v298 = vpop.f32.mrf.mxu0
  %v299 = vadd.f32 0.0, %v298
  %v300 = vpop.f32.mrf.mxu0
  %301 = vmatprep.mubr.f32.mxu0 0.0
  %302 = vmatmul.mubr.f32.gmra.mxu0 %v73
  %v303 = vpop.f32.mrf.mxu0
  %v304 = vadd.f32 0.0, %v303
  %v305 = vpop.f32.mrf.mxu0
  %306 = vmatprep.mubr.f32.mxu0 0.0
  %307 = vmatmul.mubr.f32.gmra.mxu0 %v74
  %v308 = vpop.f32.mrf.mxu0
  %v309 = vadd.f32 0.0, %v308
  %v310 = vpop.f32.mrf.mxu0
  %311 = vmatprep.mubr.f32.mxu0 0.0
  %312 = vmatmul.mubr.f32.gmra.mxu0 %v75
  %v313 = vpop.f32.mrf.mxu0
  %v314 = vadd.f32 0.0, %v313
  %v315 = vpop.f32.mrf.mxu0
  %316 = vmatprep.mubr.f32.mxu0 0.0
  %317 = vmatmul.mubr.f32.gmra.mxu0 %v76
  %v318 = vpop.f32.mrf.mxu0
  %v319 = vadd.f32 0.0, %v318
  %v320 = vpop.f32.mrf.mxu0
  %321 = vmatprep.mubr.f32.mxu0 0.0
  %322 = vmatmul.mubr.f32.gmra.mxu0 %v77
  %v323 = vpop.f32.mrf.mxu0
  %v324 = vadd.f32 0.0, %v323
  %v325 = vpop.f32.mrf.mxu0
  %326 = vmatprep.mubr.f32.mxu0 0.0
  %327 = vmatmul.mubr.f32.gmra.mxu0 %v78
  %v328 = vpop.f32.mrf.mxu0
  %v329 = vadd.f32 0.0, %v328
  %v330 = vpop.f32.mrf.mxu0
  %331 = vmatprep.mubr.f32.mxu0 0.0
  %332 = vmatmul.mubr.f32.gmra.mxu0 %v79
  %v333 = vpop.f32.mrf.mxu0
  %v334 = vadd.f32 0.0, %v333
  %v335 = vpop.f32.mrf.mxu0
  %336 = vmatprep.mubr.f32.mxu0 0.0
  %337 = vmatmul.mubr.f32.gmra.mxu0 %v80
  %v338 = vpop.f32.mrf.mxu0
  %v339 = vadd.f32 0.0, %v338
  %v340 = vpop.f32.mrf.mxu0
  %341 = vmatprep.mubr.f32.mxu0 0.0
  %342 = vmatmul.mubr.f32.gmra.mxu0 %v81
  %v343 = vpop.f32.mrf.mxu0
  %v344 = vadd.f32 0.0, %v343
  %v345 = vpop.f32.mrf.mxu0
  %346 = vmatprep.mubr.f32.mxu0 0.0
  %347 = vmatmul.mubr.f32.gmra.mxu0 %v82
  %v348 = vpop.f32.mrf.mxu0
  %v349 = vadd.f32 0.0, %v348
  %v350 = vpop.f32.mrf.mxu0
  %351 = vmatprep.mubr.f32.mxu0 0.0
  %352 = vmatmul.mubr.f32.gmra.mxu0 %v83
  %v353 = vpop.f32.mrf.mxu0
  %v354 = vadd.f32 0.0, %v353
  %v355 = vpop.f32.mrf.mxu0
  %356 = vmatprep.mubr.f32.mxu0 0.0
  %357 = vmatmul.mubr.f32.gmra.mxu0 %v84
  %v358 = vpop.f32.mrf.mxu0
  %v359 = vadd.f32 0.0, %v358
  %v360 = vpop.f32.mrf.mxu0
  %361 = vmatprep.mubr.f32.mxu0 0.0
  %362 = vmatmul.mubr.f32.gmra.mxu0 %v85
  %v363 = vpop.f32.mrf.mxu0
  %v364 = vadd.f32 0.0, %v363
  %v365 = vpop.f32.mrf.mxu0
  %366 = vmatprep.mubr.f32.mxu0 0.0
  %367 = vmatmul.mubr.f32.gmra.mxu0 %v86
  %v368 = vpop.f32.mrf.mxu0
  %v369 = vadd.f32 0.0, %v368
  %v370 = vpop.f32.mrf.mxu0
  %371 = vmatprep.mubr.f32.mxu0 0.0
  %372 = vmatmul.mubr.f32.gmra.mxu0 %v87
  %v373 = vpop.f32.mrf.mxu0
  %v374 = vadd.f32 0.0, %v373
  %v375 = vpop.f32.mrf.mxu0
  %376 = vmatprep.mubr.f32.mxu0 0.0
  %377 = vmatmul.mubr.f32.gmra.mxu0 %v88
  %v378 = vpop.f32.mrf.mxu0
  %v379 = vadd.f32 0.0, %v378
  %v380 = vpop.f32.mrf.mxu0
  %381 = vmatprep.mubr.f32.mxu0 0.0
  %382 = vmatmul.mubr.f32.gmra.mxu0 %v89
  %v383 = vpop.f32.mrf.mxu0
  %v384 = vadd.f32 0.0, %v383
  %v385 = vpop.f32.mrf.mxu0
  %386 = vdwg.mxu0
  %v387 = vadd.f32 %v90, %v209
  %v388 = vadd.f32 %v91, %v214
  %v389 = vadd.f32 %v92, %v219
  %v390 = vadd.f32 %v93, %v224
  %v391 = vadd.f32 %v94, %v229
  %v392 = vadd.f32 %v95, %v234
  %v393 = vadd.f32 %v96, %v239
  %v394 = vadd.f32 %v97, %v244
  %v395 = vadd.f32 %v98, %v249
  %v396 = vadd.f32 %v99, %v254
  %v397 = vadd.f32 %v100, %v259
  %v398 = vadd.f32 %v101, %v264
  %v399 = vadd.f32 %v102, %v269
  %v400 = vadd.f32 %v103, %v274
  %v401 = vadd.f32 %v104, %v279
  %v402 = vadd.f32 %v105, %v284
  %v403 = vadd.f32 %v106, %v289
  %v404 = vadd.f32 %v107, %v294
  %v405 = vadd.f32 %v108, %v299
  %v406 = vadd.f32 %v109, %v304
  %v407 = vadd.f32 %v110, %v309
  %v408 = vadd.f32 %v111, %v314
  %v409 = vadd.f32 %v112, %v319
  %v410 = vadd.f32 %v113, %v324
  %v411 = vadd.f32 %v114, %v329
  %v412 = vadd.f32 %v115, %v334
  %v413 = vadd.f32 %v116, %v339
  %v414 = vadd.f32 %v117, %v344
  %v415 = vadd.f32 %v118, %v349
  %v416 = vadd.f32 %v119, %v354
  %v417 = vadd.f32 %v120, %v359
  %v418 = vadd.f32 %v121, %v364
  %v419 = vadd.f32 %v122, %v369
  %v420 = vadd.f32 %v123, %v374
  %v421 = vadd.f32 %v124, %v379
  %v422 = vadd.f32 %v125, %v384
  %423 = vst [vmem:[#allocation2] sm:$0xff] %v387
  %424 = vst [vmem:[#allocation2 + $0x8] sm:$0xff] %v388
  %425 = vst [vmem:[#allocation2 + $0x10] sm:$0xff] %v389
  %426 = vst [vmem:[#allocation2 + $0x18] sm:$0xff] %v390
  %427 = vst [vmem:[#allocation2 + $0x20] sm:$0xff] %v391
  %428 = vst [vmem:[#allocation2 + $0x28] sm:$0xff] %v392
  %429 = vst [vmem:[#allocation2 + $0x30] sm:$0xff] %v393
  %430 = vst [vmem:[#allocation2 + $0x38] sm:$0xff] %v394
  %431 = vst [vmem:[#allocation2 + $0x40] sm:$0xff] %v395
  %432 = vst [vmem:[#allocation2 + $0x48] sm:$0xff] %v396
  %433 = vst [vmem:[#allocation2 + $0x50] sm:$0xff] %v397
  %434 = vst [vmem:[#allocation2 + $0x58] sm:$0xff] %v398
  %435 = vst [vmem:[#allocation2 + $0x60] sm:$0xff] %v399
  %436 = vst [vmem:[#allocation2 + $0x68] sm:$0xff] %v400
  %437 = vst [vmem:[#allocation2 + $0x70] sm:$0xff] %v401
  %438 = vst [vmem:[#allocation2 + $0x78] sm:$0xff] %v402
  %439 = vst [vmem:[#allocation2 + $0x80] sm:$0xff] %v403
  %440 = vst [vmem:[#allocation2 + $0x88] sm:$0xff] %v404
  %441 = vst [vmem:[#allocation2 + $0x90] sm:$0xff] %v405
  %442 = vst [vmem:[#allocation2 + $0x98] sm:$0xff] %v406
  %443 = vst [vmem:[#allocation2 + $0xa0] sm:$0xff] %v407
  %444 = vst [vmem:[#allocation2 + $0xa8] sm:$0xff] %v408
  %445 = vst [vmem:[#allocation2 + $0xb0] sm:$0xff] %v409
  %446 = vst [vmem:[#allocation2 + $0xb8] sm:$0xff] %v410
  %447 = vst [vmem:[#allocation2 + $0xc0] sm:$0xff] %v411
  %448 = vst [vmem:[#allocation2 + $0xc8] sm:$0xff] %v412
  %449 = vst [vmem:[#allocation2 + $0xd0] sm:$0xff] %v413
  %450 = vst [vmem:[#allocation2 + $0xd8] sm:$0xff] %v414
  %451 = vst [vmem:[#allocation2 + $0xe0] sm:$0xff] %v415
  %452 = vst [vmem:[#allocation2 + $0xe8] sm:$0xff] %v416
  %453 = vst [vmem:[#allocation2 + $0xf0] sm:$0xff] %v417
  %454 = vst [vmem:[#allocation2 + $0xf8] sm:$0xff] %v418
  %455 = vst [vmem:[#allocation2 + $0x100] sm:$0xff] %v419
  %456 = vst [vmem:[#allocation2 + $0x108] sm:$0xff] %v420
  %457 = vst [vmem:[#allocation2 + $0x110] sm:$0xff] %v421
  %458 = vst [vmem:[#allocation2 + $0x118] sm:$0xff] %v422
  // Predicated region
  $region18: #{_lambda_.11} parent=0 // pred_check
    %p459 = pneg %p14
  $region19: #{_lambda_.11} parent=0 // pred_check_branch
    %461 = sbr.rel (%p459) target = $region21
  $region20: #{_lambda_.11} parent=0 // pred_region
    %v462 = vld [vmem:[#allocation2] sm:$0xff]
    %v463 = vld [vmem:[#allocation2 + $0x8] sm:$0xff]
    %v464 = vld [vmem:[#allocation2 + $0x10] sm:$0xff]
    %v465 = vld [vmem:[#allocation2 + $0x18] sm:$0xff]
    %v466 = vld [vmem:[#allocation2 + $0x20] sm:$0xff]
    %v467 = vld [vmem:[#allocation2 + $0x28] sm:$0xff]
    %v468 = vld [vmem:[#allocation2 + $0x30] sm:$0xff]
    %v469 = vld [vmem:[#allocation2 + $0x38] sm:$0xff]
    %v470 = vld [vmem:[#allocation2 + $0x40] sm:$0xff]
    %v471 = vld [vmem:[#allocation2 + $0x48] sm:$0xff]
    %v472 = vld [vmem:[#allocation2 + $0x50] sm:$0xff]
    %v473 = vld [vmem:[#allocation2 + $0x58] sm:$0xff]
    %v474 = vld [vmem:[#allocation2 + $0x60] sm:$0xff]
    %v475 = vld [vmem:[#allocation2 + $0x68] sm:$0xff]
    %v476 = vld [vmem:[#allocation2 + $0x70] sm:$0xff]
    %v477 = vld [vmem:[#allocation2 + $0x78] sm:$0xff]
    %v478 = vld [vmem:[#allocation2 + $0x80] sm:$0xff]
    %v479 = vld [vmem:[#allocation2 + $0x88] sm:$0xff]
    %v480 = vld [vmem:[#allocation2 + $0x90] sm:$0xff]
    %v481 = vld [vmem:[#allocation2 + $0x98] sm:$0xff]
    %v482 = vld [vmem:[#allocation2 + $0xa0] sm:$0xff]
    %v483 = vld [vmem:[#allocation2 + $0xa8] sm:$0xff]
    %v484 = vld [vmem:[#allocation2 + $0xb0] sm:$0xff]
    %v485 = vld [vmem:[#allocation2 + $0xb8] sm:$0xff]
    %v486 = vld [vmem:[#allocation2 + $0xc0] sm:$0xff]
    %v487 = vld [vmem:[#allocation2 + $0xc8] sm:$0xff]
    %v488 = vld [vmem:[#allocation2 + $0xd0] sm:$0xff]
    %v489 = vld [vmem:[#allocation2 + $0xd8] sm:$0xff]
    %v490 = vld [vmem:[#allocation2 + $0xe0] sm:$0xff]
    %v491 = vld [vmem:[#allocation2 + $0xe8] sm:$0xff]
    %v492 = vld [vmem:[#allocation2 + $0xf0] sm:$0xff]
    %v493 = vld [vmem:[#allocation2 + $0xf8] sm:$0xff]
    %v494 = vld [vmem:[#allocation2 + $0x100] sm:$0xff]
    %v495 = vld [vmem:[#allocation2 + $0x108] sm:$0xff]
    %v496 = vld [vmem:[#allocation2 + $0x110] sm:$0xff]
    %v497 = vld [vmem:[#allocation2 + $0x118] sm:$0xff]
    %v498 = vld [vmem:[%s2] sm:$0x1]
    %v500 = vlaneseq
    %v501 = vshrl.u32 %v500, 7
    %v502 = vsub.s32 0, %v501
    %v503 = vrot.slane %v498, %v502
    %v505 = vadd.f32 %v462, %v503
    %v506 = vadd.f32 %v463, %v503
    %v507 = vadd.f32 %v464, %v503
    %v508 = vadd.f32 %v465, %v503
    %v509 = vadd.f32 %v466, %v503
    %v510 = vadd.f32 %v467, %v503
    %v511 = vadd.f32 %v468, %v503
    %v512 = vadd.f32 %v469, %v503
    %v513 = vadd.f32 %v470, %v503
    %v514 = vadd.f32 %v471, %v503
    %v515 = vadd.f32 %v472, %v503
    %v516 = vadd.f32 %v473, %v503
    %v517 = vadd.f32 %v474, %v503
    %v518 = vadd.f32 %v475, %v503
    %v519 = vadd.f32 %v476, %v503
    %v520 = vadd.f32 %v477, %v503
    %v521 = vadd.f32 %v478, %v503
    %v522 = vadd.f32 %v479, %v503
    %v523 = vadd.f32 %v480, %v503
    %v524 = vadd.f32 %v481, %v503
    %v525 = vadd.f32 %v482, %v503
    %v526 = vadd.f32 %v483, %v503
    %v527 = vadd.f32 %v484, %v503
    %v528 = vadd.f32 %v485, %v503
    %v529 = vadd.f32 %v486, %v503
    %v530 = vadd.f32 %v487, %v503
    %v531 = vadd.f32 %v488, %v503
    %v532 = vadd.f32 %v489, %v503
    %v533 = vadd.f32 %v490, %v503
    %v534 = vadd.f32 %v491, %v503
    %v535 = vadd.f32 %v492, %v503
    %v536 = vadd.f32 %v493, %v503
    %v537 = vadd.f32 %v494, %v503
    %v538 = vadd.f32 %v495, %v503
    %v539 = vadd.f32 %v496, %v503
    %v540 = vadd.f32 %v497, %v503
    %541 = vst [vmem:[%s3] sm:$0xff] %v505
    %542 = vst [vmem:[%s3 + $0x8] sm:$0xff] %v506
    %543 = vst [vmem:[%s3 + $0x10] sm:$0xff] %v507
    %544 = vst [vmem:[%s3 + $0x18] sm:$0xff] %v508
    %545 = vst [vmem:[%s3 + $0x20] sm:$0xff] %v509
    %546 = vst [vmem:[%s3 + $0x28] sm:$0xff] %v510
    %547 = vst [vmem:[%s3 + $0x30] sm:$0xff] %v511
    %548 = vst [vmem:[%s3 + $0x38] sm:$0xff] %v512
    %549 = vst [vmem:[%s3 + $0x40] sm:$0xff] %v513
    %550 = vst [vmem:[%s3 + $0x48] sm:$0xff] %v514
    %551 = vst [vmem:[%s3 + $0x50] sm:$0xff] %v515
    %552 = vst [vmem:[%s3 + $0x58] sm:$0xff] %v516
    %553 = vst [vmem:[%s3 + $0x60] sm:$0xff] %v517
    %554 = vst [vmem:[%s3 + $0x68] sm:$0xff] %v518
    %555 = vst [vmem:[%s3 + $0x70] sm:$0xff] %v519
    %556 = vst [vmem:[%s3 + $0x78] sm:$0xff] %v520
    %557 = vst [vmem:[%s3 + $0x80] sm:$0xff] %v521
    %558 = vst [vmem:[%s3 + $0x88] sm:$0xff] %v522
    %559 = vst [vmem:[%s3 + $0x90] sm:$0xff] %v523
    %560 = vst [vmem:[%s3 + $0x98] sm:$0xff] %v524
    %561 = vst [vmem:[%s3 + $0xa0] sm:$0xff] %v525
    %562 = vst [vmem:[%s3 + $0xa8] sm:$0xff] %v526
    %563 = vst [vmem:[%s3 + $0xb0] sm:$0xff] %v527
    %564 = vst [vmem:[%s3 + $0xb8] sm:$0xff] %v528
    %565 = vst [vmem:[%s3 + $0xc0] sm:$0xff] %v529
    %566 = vst [vmem:[%s3 + $0xc8] sm:$0xff] %v530
    %567 = vst [vmem:[%s3 + $0xd0] sm:$0xff] %v531
    %568 = vst [vmem:[%s3 + $0xd8] sm:$0xff] %v532
    %569 = vst [vmem:[%s3 + $0xe0] sm:$0xff] %v533
    %570 = vst [vmem:[%s3 + $0xe8] sm:$0xff] %v534
    %571 = vst [vmem:[%s3 + $0xf0] sm:$0xff] %v535
    %572 = vst [vmem:[%s3 + $0xf8] sm:$0xff] %v536
    %573 = vst [vmem:[%s3 + $0x100] sm:$0xff] %v537
    %574 = vst [vmem:[%s3 + $0x108] sm:$0xff] %v538
    %575 = vst [vmem:[%s3 + $0x110] sm:$0xff] %v539
    %576 = vst [vmem:[%s3 + $0x118] sm:$0xff] %v540
  $region21: #{_lambda_.11} parent=0 // pred_fallthru
    _
  // Predicated region
  $region22: #{_lambda_.11} parent=0 // pred_check
    _
  $region23: #{_lambda_.11} parent=0 // pred_check_branch
    %578 = sbr.rel (0) target = $region25
  $region24: #{_lambda_.11} parent=0 // pred_region
    _
  $region25: #{_lambda_.11} parent=0 // pred_fallthru
    _
  // Predicated region
  $region26: #{_lambda_.11} parent=0 // pred_check
    _
  $region27: #{_lambda_.11} parent=0 // pred_check_branch
    %580 = sbr.rel (0) target = $region29
  $region28: #{_lambda_.11} parent=0 // pred_region
    _
  $region29: #{_lambda_.11} parent=0 // pred_fallthru
    _

// kernel: _lambda_.13
$region0: #{_lambda_.13}
  #allocation0 [shape = 'u32[]', space=smem, size = 0x4, offset = 0x4, fixed_abs, tag = 'smem constant byte address 0x4 - core index']
  #allocation1 [shape = 'u32[144,128]{1,0:T(1,128)}', space=vmem, size = 0x12000, scoped, tag = 'internal scratch']
  #allocation2 [shape = 'f32[288,128]{1,0:T(8,128)}', space=vmem, size = 0x24000, scoped, tag = 'scratch operand']
  %s0 = inlined_call_operand.vmem [shape: f32[288,256], index: 0, kind: input, shape index: {}]
  %s1 = inlined_call_operand.vmem [shape: f32[256,128], index: 1, kind: input, shape index: {}]
  %s2 = inlined_call_operand.vmem [shape: f32[1,128], index: 2, kind: input, shape index: {}]
  %s3 = inlined_call_operand.vmem [shape: f32[1,128], index: 3, kind: input, shape index: {}]
  %s4 = inlined_call_operand.vmem [shape: f32[1,128], index: 4, kind: input, shape index: {}]
  %s5 = inlined_call_operand.vmem [shape: f32[288,128], index: 5, kind: output, shape index: {}]
  %s6 = sld [smem:[#allocation0]]
  $region38: #{_lambda_.13} parent=0
    _
  %s8 = ssub.s32 1, %s6
  %s9 = scalar_select 0, %s8, %s6
  // Predicated region
  $region2: #{_lambda_.13} parent=0 // pred_check
    _
  $region3: #{_lambda_.13} parent=0 // pred_check_branch
    %11 = sbr.rel (0) target = $region5
  $region4: #{_lambda_.13} parent=0 // pred_region
    _
  $region5: #{_lambda_.13} parent=0 // pred_fallthru
    _
  // Predicated region
  $region6: #{_lambda_.13} parent=0 // pred_check
    _
  $region7: #{_lambda_.13} parent=0 // pred_check_branch
    %13 = sbr.rel (0) target = $region9
  $region8: #{_lambda_.13} parent=0 // pred_region
    _
  $region9: #{_lambda_.13} parent=0 // pred_fallthru
    _
  // Predicated region
  $region10: #{_lambda_.13} parent=0 // pred_check
    _
  $region11: #{_lambda_.13} parent=0 // pred_check_branch
    %15 = sbr.rel (0) target = $region13
  $region12: #{_lambda_.13} parent=0 // pred_region
    _
  $region13: #{_lambda_.13} parent=0 // pred_fallthru
    _
  // Predicated region
  $region14: #{_lambda_.13} parent=0 // pred_check
    _
  $region15: #{_lambda_.13} parent=0 // pred_check_branch
    %17 = sbr.rel (0) target = $region17
  $region16: #{_lambda_.13} parent=0 // pred_region
    _
  $region17: #{_lambda_.13} parent=0 // pred_fallthru
    _
  // Predicated region
  $region18: #{_lambda_.13} parent=0 // pred_check
    _
  $region19: #{_lambda_.13} parent=0 // pred_check_branch
    %19 = sbr.rel (0) target = $region21
  $region20: #{_lambda_.13} parent=0 // pred_region
    _
  $region21: #{_lambda_.13} parent=0 // pred_fallthru
    _
  %p20 = scmp.eq.s32.totalorder 0, 0
  // Predicated region
  $region22: #{_lambda_.13} parent=0 // pred_check
    %p21 = pneg %p20
  $region23: #{_lambda_.13} parent=0 // pred_check_branch
    %23 = sbr.rel (%p21) target = $region25
  $region24: #{_lambda_.13} parent=0 // pred_region
    %24 = vst [vmem:[#allocation2] sm:$0xff] 0.0
    %25 = vst [vmem:[#allocation2 + $0x8] sm:$0xff] 0.0
    %26 = vst [vmem:[#allocation2 + $0x10] sm:$0xff] 0.0
    %27 = vst [vmem:[#allocation2 + $0x18] sm:$0xff] 0.0
    %28 = vst [vmem:[#allocation2 + $0x20] sm:$0xff] 0.0
    %29 = vst [vmem:[#allocation2 + $0x28] sm:$0xff] 0.0
    %30 = vst [vmem:[#allocation2 + $0x30] sm:$0xff] 0.0
    %31 = vst [vmem:[#allocation2 + $0x38] sm:$0xff] 0.0
    %32 = vst [vmem:[#allocation2 + $0x40] sm:$0xff] 0.0
    %33 = vst [vmem:[#allocation2 + $0x48] sm:$0xff] 0.0
    %34 = vst [vmem:[#allocation2 + $0x50] sm:$0xff] 0.0
    %35 = vst [vmem:[#allocation2 + $0x58] sm:$0xff] 0.0
    %36 = vst [vmem:[#allocation2 + $0x60] sm:$0xff] 0.0
    %37 = vst [vmem:[#allocation2 + $0x68] sm:$0xff] 0.0
    %38 = vst [vmem:[#allocation2 + $0x70] sm:$0xff] 0.0
    %39 = vst [vmem:[#allocation2 + $0x78] sm:$0xff] 0.0
    %40 = vst [vmem:[#allocation2 + $0x80] sm:$0xff] 0.0
    %41 = vst [vmem:[#allocation2 + $0x88] sm:$0xff] 0.0
    %42 = vst [vmem:[#allocation2 + $0x90] sm:$0xff] 0.0
    %43 = vst [vmem:[#allocation2 + $0x98] sm:$0xff] 0.0
    %44 = vst [vmem:[#allocation2 + $0xa0] sm:$0xff] 0.0
    %45 = vst [vmem:[#allocation2 + $0xa8] sm:$0xff] 0.0
    %46 = vst [vmem:[#allocation2 + $0xb0] sm:$0xff] 0.0
    %47 = vst [vmem:[#allocation2 + $0xb8] sm:$0xff] 0.0
    %48 = vst [vmem:[#allocation2 + $0xc0] sm:$0xff] 0.0
    %49 = vst [vmem:[#allocation2 + $0xc8] sm:$0xff] 0.0
    %50 = vst [vmem:[#allocation2 + $0xd0] sm:$0xff] 0.0
    %51 = vst [vmem:[#allocation2 + $0xd8] sm:$0xff] 0.0
    %52 = vst [vmem:[#allocation2 + $0xe0] sm:$0xff] 0.0
    %53 = vst [vmem:[#allocation2 + $0xe8] sm:$0xff] 0.0
    %54 = vst [vmem:[#allocation2 + $0xf0] sm:$0xff] 0.0
    %55 = vst [vmem:[#allocation2 + $0xf8] sm:$0xff] 0.0
    %56 = vst [vmem:[#allocation2 + $0x100] sm:$0xff] 0.0
    %57 = vst [vmem:[#allocation2 + $0x108] sm:$0xff] 0.0
    %58 = vst [vmem:[#allocation2 + $0x110] sm:$0xff] 0.0
    %59 = vst [vmem:[#allocation2 + $0x118] sm:$0xff] 0.0
  $region25: #{_lambda_.13} parent=0 // pred_fallthru
    _
  %v60 = vld [vmem:[%s0] sm:$0xff]
  %v61 = vld [vmem:[%s0 + $0x8] sm:$0xff]
  %v62 = vld [vmem:[%s0 + $0x10] sm:$0xff]
  %v63 = vld [vmem:[%s0 + $0x18] sm:$0xff]
  %v64 = vld [vmem:[%s0 + $0x20] sm:$0xff]
  %v65 = vld [vmem:[%s0 + $0x28] sm:$0xff]
  %v66 = vld [vmem:[%s0 + $0x30] sm:$0xff]
  %v67 = vld [vmem:[%s0 + $0x38] sm:$0xff]
  %v68 = vld [vmem:[%s0 + $0x40] sm:$0xff]
  %v69 = vld [vmem:[%s0 + $0x48] sm:$0xff]
  %v70 = vld [vmem:[%s0 + $0x50] sm:$0xff]
  %v71 = vld [vmem:[%s0 + $0x58] sm:$0xff]
  %v72 = vld [vmem:[%s0 + $0x60] sm:$0xff]
  %v73 = vld [vmem:[%s0 + $0x68] sm:$0xff]
  %v74 = vld [vmem:[%s0 + $0x70] sm:$0xff]
  %v75 = vld [vmem:[%s0 + $0x78] sm:$0xff]
  %v76 = vld [vmem:[%s0 + $0x80] sm:$0xff]
  %v77 = vld [vmem:[%s0 + $0x88] sm:$0xff]
  %v78 = vld [vmem:[%s0 + $0x90] sm:$0xff]
  %v79 = vld [vmem:[%s0 + $0x98] sm:$0xff]
  %v80 = vld [vmem:[%s0 + $0xa0] sm:$0xff]
  %v81 = vld [vmem:[%s0 + $0xa8] sm:$0xff]
  %v82 = vld [vmem:[%s0 + $0xb0] sm:$0xff]
  %v83 = vld [vmem:[%s0 + $0xb8] sm:$0xff]
  %v84 = vld [vmem:[%s0 + $0xc0] sm:$0xff]
  %v85 = vld [vmem:[%s0 + $0xc8] sm:$0xff]
  %v86 = vld [vmem:[%s0 + $0xd0] sm:$0xff]
  %v87 = vld [vmem:[%s0 + $0xd8] sm:$0xff]
  %v88 = vld [vmem:[%s0 + $0xe0] sm:$0xff]
  %v89 = vld [vmem:[%s0 + $0xe8] sm:$0xff]
  %v90 = vld [vmem:[%s0 + $0xf0] sm:$0xff]
  %v91 = vld [vmem:[%s0 + $0xf8] sm:$0xff]
  %v92 = vld [vmem:[%s0 + $0x100] sm:$0xff]
  %v93 = vld [vmem:[%s0 + $0x108] sm:$0xff]
  %v94 = vld [vmem:[%s0 + $0x110] sm:$0xff]
  %v95 = vld [vmem:[%s0 + $0x118] sm:$0xff]
  %v96 = vld [vmem:[%s0 + $0x120] sm:$0xff]
  %v97 = vld [vmem:[%s0 + $0x128] sm:$0xff]
  %v98 = vld [vmem:[%s0 + $0x130] sm:$0xff]
  %v99 = vld [vmem:[%s0 + $0x138] sm:$0xff]
  %v100 = vld [vmem:[%s0 + $0x140] sm:$0xff]
  %v101 = vld [vmem:[%s0 + $0x148] sm:$0xff]
  %v102 = vld [vmem:[%s0 + $0x150] sm:$0xff]
  %v103 = vld [vmem:[%s0 + $0x158] sm:$0xff]
  %v104 = vld [vmem:[%s0 + $0x160] sm:$0xff]
  %v105 = vld [vmem:[%s0 + $0x168] sm:$0xff]
  %v106 = vld [vmem:[%s0 + $0x170] sm:$0xff]
  %v107 = vld [vmem:[%s0 + $0x178] sm:$0xff]
  %v108 = vld [vmem:[%s0 + $0x180] sm:$0xff]
  %v109 = vld [vmem:[%s0 + $0x188] sm:$0xff]
  %v110 = vld [vmem:[%s0 + $0x190] sm:$0xff]
  %v111 = vld [vmem:[%s0 + $0x198] sm:$0xff]
  %v112 = vld [vmem:[%s0 + $0x1a0] sm:$0xff]
  %v113 = vld [vmem:[%s0 + $0x1a8] sm:$0xff]
  %v114 = vld [vmem:[%s0 + $0x1b0] sm:$0xff]
  %v115 = vld [vmem:[%s0 + $0x1b8] sm:$0xff]
  %v116 = vld [vmem:[%s0 + $0x1c0] sm:$0xff]
  %v117 = vld [vmem:[%s0 + $0x1c8] sm:$0xff]
  %v118 = vld [vmem:[%s0 + $0x1d0] sm:$0xff]
  %v119 = vld [vmem:[%s0 + $0x1d8] sm:$0xff]
  %v120 = vld [vmem:[%s0 + $0x1e0] sm:$0xff]
  %v121 = vld [vmem:[%s0 + $0x1e8] sm:$0xff]
  %v122 = vld [vmem:[%s0 + $0x1f0] sm:$0xff]
  %v123 = vld [vmem:[%s0 + $0x1f8] sm:$0xff]
  %v124 = vld [vmem:[%s0 + $0x200] sm:$0xff]
  %v125 = vld [vmem:[%s0 + $0x208] sm:$0xff]
  %v126 = vld [vmem:[%s0 + $0x210] sm:$0xff]
  %v127 = vld [vmem:[%s0 + $0x218] sm:$0xff]
  %v128 = vld [vmem:[%s0 + $0x220] sm:$0xff]
  %v129 = vld [vmem:[%s0 + $0x228] sm:$0xff]
  %v130 = vld [vmem:[%s0 + $0x230] sm:$0xff]
  %v131 = vld [vmem:[%s0 + $0x238] sm:$0xff]
  %v132 = vld [vmem:[#allocation2] sm:$0xff]
  %v133 = vld [vmem:[#allocation2 + $0x8] sm:$0xff]
  %v134 = vld [vmem:[#allocation2 + $0x10] sm:$0xff]
  %v135 = vld [vmem:[#allocation2 + $0x18] sm:$0xff]
  %v136 = vld [vmem:[#allocation2 + $0x20] sm:$0xff]
  %v137 = vld [vmem:[#allocation2 + $0x28] sm:$0xff]
  %v138 = vld [vmem:[#allocation2 + $0x30] sm:$0xff]
  %v139 = vld [vmem:[#allocation2 + $0x38] sm:$0xff]
  %v140 = vld [vmem:[#allocation2 + $0x40] sm:$0xff]
  %v141 = vld [vmem:[#allocation2 + $0x48] sm:$0xff]
  %v142 = vld [vmem:[#allocation2 + $0x50] sm:$0xff]
  %v143 = vld [vmem:[#allocation2 + $0x58] sm:$0xff]
  %v144 = vld [vmem:[#allocation2 + $0x60] sm:$0xff]
  %v145 = vld [vmem:[#allocation2 + $0x68] sm:$0xff]
  %v146 = vld [vmem:[#allocation2 + $0x70] sm:$0xff]
  %v147 = vld [vmem:[#allocation2 + $0x78] sm:$0xff]
  %v148 = vld [vmem:[#allocation2 + $0x80] sm:$0xff]
  %v149 = vld [vmem:[#allocation2 + $0x88] sm:$0xff]
  %v150 = vld [vmem:[#allocation2 + $0x90] sm:$0xff]
  %v151 = vld [vmem:[#allocation2 + $0x98] sm:$0xff]
  %v152 = vld [vmem:[#allocation2 + $0xa0] sm:$0xff]
  %v153 = vld [vmem:[#allocation2 + $0xa8] sm:$0xff]
  %v154 = vld [vmem:[#allocation2 + $0xb0] sm:$0xff]
  %v155 = vld [vmem:[#allocation2 + $0xb8] sm:$0xff]
  %v156 = vld [vmem:[#allocation2 + $0xc0] sm:$0xff]
  %v157 = vld [vmem:[#allocation2 + $0xc8] sm:$0xff]
  %v158 = vld [vmem:[#allocation2 + $0xd0] sm:$0xff]
  %v159 = vld [vmem:[#allocation2 + $0xd8] sm:$0xff]
  %v160 = vld [vmem:[#allocation2 + $0xe0] sm:$0xff]
  %v161 = vld [vmem:[#allocation2 + $0xe8] sm:$0xff]
  %v162 = vld [vmem:[#allocation2 + $0xf0] sm:$0xff]
  %v163 = vld [vmem:[#allocation2 + $0xf8] sm:$0xff]
  %v164 = vld [vmem:[#allocation2 + $0x100] sm:$0xff]
  %v165 = vld [vmem:[#allocation2 + $0x108] sm:$0xff]
  %v166 = vld [vmem:[#allocation2 + $0x110] sm:$0xff]
  %v167 = vld [vmem:[#allocation2 + $0x118] sm:$0xff]
  %v168 = vld [vmem:[%s1] sm:$0xff]
  %v169 = vld [vmem:[%s1 + $0x8] sm:$0xff]
  %v170 = vld [vmem:[%s1 + $0x10] sm:$0xff]
  %v171 = vld [vmem:[%s1 + $0x18] sm:$0xff]
  %v172 = vld [vmem:[%s1 + $0x20] sm:$0xff]
  %v173 = vld [vmem:[%s1 + $0x28] sm:$0xff]
  %v174 = vld [vmem:[%s1 + $0x30] sm:$0xff]
  %v175 = vld [vmem:[%s1 + $0x38] sm:$0xff]
  %v176 = vld [vmem:[%s1 + $0x40] sm:$0xff]
  %v177 = vld [vmem:[%s1 + $0x48] sm:$0xff]
  %v178 = vld [vmem:[%s1 + $0x50] sm:$0xff]
  %v179 = vld [vmem:[%s1 + $0x58] sm:$0xff]
  %v180 = vld [vmem:[%s1 + $0x60] sm:$0xff]
  %v181 = vld [vmem:[%s1 + $0x68] sm:$0xff]
  %v182 = vld [vmem:[%s1 + $0x70] sm:$0xff]
  %v183 = vld [vmem:[%s1 + $0x78] sm:$0xff]
  %v184 = vld [vmem:[%s1 + $0x80] sm:$0xff]
  %v185 = vld [vmem:[%s1 + $0x88] sm:$0xff]
  %v186 = vld [vmem:[%s1 + $0x90] sm:$0xff]
  %v187 = vld [vmem:[%s1 + $0x98] sm:$0xff]
  %v188 = vld [vmem:[%s1 + $0xa0] sm:$0xff]
  %v189 = vld [vmem:[%s1 + $0xa8] sm:$0xff]
  %v190 = vld [vmem:[%s1 + $0xb0] sm:$0xff]
  %v191 = vld [vmem:[%s1 + $0xb8] sm:$0xff]
  %v192 = vld [vmem:[%s1 + $0xc0] sm:$0xff]
  %v193 = vld [vmem:[%s1 + $0xc8] sm:$0xff]
  %v194 = vld [vmem:[%s1 + $0xd0] sm:$0xff]
  %v195 = vld [vmem:[%s1 + $0xd8] sm:$0xff]
  %v196 = vld [vmem:[%s1 + $0xe0] sm:$0xff]
  %v197 = vld [vmem:[%s1 + $0xe8] sm:$0xff]
  %v198 = vld [vmem:[%s1 + $0xf0] sm:$0xff]
  %v199 = vld [vmem:[%s1 + $0xf8] sm:$0xff]
  %200 = vmatprep.subr.mxu0 0.0
  %201 = vmatpush1.msra.mxu0 %v183
  %202 = vmatprep.subr.mxu0 0.0
  %203 = vmatpush1.msra.mxu0 %v182
  %204 = vmatprep.subr.mxu0 0.0
  %205 = vmatpush1.msra.mxu0 %v181
  %206 = vmatprep.subr.mxu0 0.0
  %207 = vmatpush1.msra.mxu0 %v180
  %208 = vmatprep.subr.mxu0 0.0
  %209 = vmatpush1.msra.mxu0 %v179
  %210 = vmatprep.subr.mxu0 0.0
  %211 = vmatpush1.msra.mxu0 %v178
  %212 = vmatprep.subr.mxu0 0.0
  %213 = vmatpush1.msra.mxu0 %v177
  %214 = vmatprep.subr.mxu0 0.0
  %215 = vmatpush1.msra.mxu0 %v176
  %216 = vmatprep.subr.mxu0 0.0
  %217 = vmatpush1.msra.mxu0 %v175
  %218 = vmatprep.subr.mxu0 0.0
  %219 = vmatpush1.msra.mxu0 %v174
  %220 = vmatprep.subr.mxu0 0.0
  %221 = vmatpush1.msra.mxu0 %v173
  %222 = vmatprep.subr.mxu0 0.0
  %223 = vmatpush1.msra.mxu0 %v172
  %224 = vmatprep.subr.mxu0 0.0
  %225 = vmatpush1.msra.mxu0 %v171
  %226 = vmatprep.subr.mxu0 0.0
  %227 = vmatpush1.msra.mxu0 %v170
  %228 = vmatprep.subr.mxu0 0.0
  %229 = vmatpush1.msra.mxu0 %v169
  %230 = vmatprep.subr.mxu0 0.0
  %231 = vmatpush1.msra.mxu0 %v168
  %232 = vmatprep.subr.mxu0 0.0
  %233 = vmatpush2.msra.mxu0 %v199
  %234 = vmatprep.subr.mxu0 0.0
  %235 = vmatpush2.msra.mxu0 %v198
  %236 = vmatprep.subr.mxu0 0.0
  %237 = vmatpush2.msra.mxu0 %v197
  %238 = vmatprep.subr.mxu0 0.0
  %239 = vmatpush2.msra.mxu0 %v196
  %240 = vmatprep.subr.mxu0 0.0
  %241 = vmatpush2.msra.mxu0 %v195
  %242 = vmatprep.subr.mxu0 0.0
  %243 = vmatpush2.msra.mxu0 %v194
  %244 = vmatprep.subr.mxu0 0.0
  %245 = vmatpush2.msra.mxu0 %v193
  %246 = vmatprep.subr.mxu0 0.0
  %247 = vmatpush2.msra.mxu0 %v192
  %248 = vmatprep.subr.mxu0 0.0
  %249 = vmatpush2.msra.mxu0 %v191
  %250 = vmatprep.subr.mxu0 0.0
  %251 = vmatpush2.msra.mxu0 %v190
  %252 = vmatprep.subr.mxu0 0.0
  %253 = vmatpush2.msra.mxu0 %v189
  %254 = vmatprep.subr.mxu0 0.0
  %255 = vmatpush2.msra.mxu0 %v188
  %256 = vmatprep.subr.mxu0 0.0
  %257 = vmatpush2.msra.mxu0 %v187
  %258 = vmatprep.subr.mxu0 0.0
  %259 = vmatpush2.msra.mxu0 %v186
  %260 = vmatprep.subr.mxu0 0.0
  %261 = vmatpush2.msra.mxu0 %v185
  %262 = vmatprep.subr.mxu0 0.0
  %263 = vmatpush2.msra.mxu0 %v184
  %264 = vmatprep.mubr.f32.mxu0 %v61
  %265 = vmatmul.mubr.f32.gmra.mxu0 %v60
  %v266 = vpop.f32.mrf.mxu0
  %v267 = vadd.f32 0.0, %v266
  %v268 = vpop.f32.mrf.mxu0
  %269 = vmatprep.mubr.f32.mxu0 %v63
  %270 = vmatmul.mubr.f32.gmra.mxu0 %v62
  %v271 = vpop.f32.mrf.mxu0
  %v272 = vadd.f32 0.0, %v271
  %v273 = vpop.f32.mrf.mxu0
  %274 = vmatprep.mubr.f32.mxu0 %v65
  %275 = vmatmul.mubr.f32.gmra.mxu0 %v64
  %v276 = vpop.f32.mrf.mxu0
  %v277 = vadd.f32 0.0, %v276
  %v278 = vpop.f32.mrf.mxu0
  %279 = vmatprep.mubr.f32.mxu0 %v67
  %280 = vmatmul.mubr.f32.gmra.mxu0 %v66
  %v281 = vpop.f32.mrf.mxu0
  %v282 = vadd.f32 0.0, %v281
  %v283 = vpop.f32.mrf.mxu0
  %284 = vmatprep.mubr.f32.mxu0 %v69
  %285 = vmatmul.mubr.f32.gmra.mxu0 %v68
  %v286 = vpop.f32.mrf.mxu0
  %v287 = vadd.f32 0.0, %v286
  %v288 = vpop.f32.mrf.mxu0
  %289 = vmatprep.mubr.f32.mxu0 %v71
  %290 = vmatmul.mubr.f32.gmra.mxu0 %v70
  %v291 = vpop.f32.mrf.mxu0
  %v292 = vadd.f32 0.0, %v291
  %v293 = vpop.f32.mrf.mxu0
  %294 = vmatprep.mubr.f32.mxu0 %v73
  %295 = vmatmul.mubr.f32.gmra.mxu0 %v72
  %v296 = vpop.f32.mrf.mxu0
  %v297 = vadd.f32 0.0, %v296
  %v298 = vpop.f32.mrf.mxu0
  %299 = vmatprep.mubr.f32.mxu0 %v75
  %300 = vmatmul.mubr.f32.gmra.mxu0 %v74
  %v301 = vpop.f32.mrf.mxu0
  %v302 = vadd.f32 0.0, %v301
  %v303 = vpop.f32.mrf.mxu0
  %304 = vmatprep.mubr.f32.mxu0 %v77
  %305 = vmatmul.mubr.f32.gmra.mxu0 %v76
  %v306 = vpop.f32.mrf.mxu0
  %v307 = vadd.f32 0.0, %v306
  %v308 = vpop.f32.mrf.mxu0
  %309 = vmatprep.mubr.f32.mxu0 %v79
  %310 = vmatmul.mubr.f32.gmra.mxu0 %v78
  %v311 = vpop.f32.mrf.mxu0
  %v312 = vadd.f32 0.0, %v311
  %v313 = vpop.f32.mrf.mxu0
  %314 = vmatprep.mubr.f32.mxu0 %v81
  %315 = vmatmul.mubr.f32.gmra.mxu0 %v80
  %v316 = vpop.f32.mrf.mxu0
  %v317 = vadd.f32 0.0, %v316
  %v318 = vpop.f32.mrf.mxu0
  %319 = vmatprep.mubr.f32.mxu0 %v83
  %320 = vmatmul.mubr.f32.gmra.mxu0 %v82
  %v321 = vpop.f32.mrf.mxu0
  %v322 = vadd.f32 0.0, %v321
  %v323 = vpop.f32.mrf.mxu0
  %324 = vmatprep.mubr.f32.mxu0 %v85
  %325 = vmatmul.mubr.f32.gmra.mxu0 %v84
  %v326 = vpop.f32.mrf.mxu0
  %v327 = vadd.f32 0.0, %v326
  %v328 = vpop.f32.mrf.mxu0
  %329 = vmatprep.mubr.f32.mxu0 %v87
  %330 = vmatmul.mubr.f32.gmra.mxu0 %v86
  %v331 = vpop.f32.mrf.mxu0
  %v332 = vadd.f32 0.0, %v331
  %v333 = vpop.f32.mrf.mxu0
  %334 = vmatprep.mubr.f32.mxu0 %v89
  %335 = vmatmul.mubr.f32.gmra.mxu0 %v88
  %v336 = vpop.f32.mrf.mxu0
  %v337 = vadd.f32 0.0, %v336
  %v338 = vpop.f32.mrf.mxu0
  %339 = vmatprep.mubr.f32.mxu0 %v91
  %340 = vmatmul.mubr.f32.gmra.mxu0 %v90
  %v341 = vpop.f32.mrf.mxu0
  %v342 = vadd.f32 0.0, %v341
  %v343 = vpop.f32.mrf.mxu0
  %344 = vmatprep.mubr.f32.mxu0 %v93
  %345 = vmatmul.mubr.f32.gmra.mxu0 %v92
  %v346 = vpop.f32.mrf.mxu0
  %v347 = vadd.f32 0.0, %v346
  %v348 = vpop.f32.mrf.mxu0
  %349 = vmatprep.mubr.f32.mxu0 %v95
  %350 = vmatmul.mubr.f32.gmra.mxu0 %v94
  %v351 = vpop.f32.mrf.mxu0
  %v352 = vadd.f32 0.0, %v351
  %v353 = vpop.f32.mrf.mxu0
  %354 = vmatprep.mubr.f32.mxu0 %v97
  %355 = vmatmul.mubr.f32.gmra.mxu0 %v96
  %v356 = vpop.f32.mrf.mxu0
  %v357 = vadd.f32 0.0, %v356
  %v358 = vpop.f32.mrf.mxu0
  %359 = vmatprep.mubr.f32.mxu0 %v99
  %360 = vmatmul.mubr.f32.gmra.mxu0 %v98
  %v361 = vpop.f32.mrf.mxu0
  %v362 = vadd.f32 0.0, %v361
  %v363 = vpop.f32.mrf.mxu0
  %364 = vmatprep.mubr.f32.mxu0 %v101
  %365 = vmatmul.mubr.f32.gmra.mxu0 %v100
  %v366 = vpop.f32.mrf.mxu0
  %v367 = vadd.f32 0.0, %v366
  %v368 = vpop.f32.mrf.mxu0
  %369 = vmatprep.mubr.f32.mxu0 %v103
  %370 = vmatmul.mubr.f32.gmra.mxu0 %v102
  %v371 = vpop.f32.mrf.mxu0
  %v372 = vadd.f32 0.0, %v371
  %v373 = vpop.f32.mrf.mxu0
  %374 = vmatprep.mubr.f32.mxu0 %v105
  %375 = vmatmul.mubr.f32.gmra.mxu0 %v104
  %v376 = vpop.f32.mrf.mxu0
  %v377 = vadd.f32 0.0, %v376
  %v378 = vpop.f32.mrf.mxu0
  %379 = vmatprep.mubr.f32.mxu0 %v107
  %380 = vmatmul.mubr.f32.gmra.mxu0 %v106
  %v381 = vpop.f32.mrf.mxu0
  %v382 = vadd.f32 0.0, %v381
  %v383 = vpop.f32.mrf.mxu0
  %384 = vmatprep.mubr.f32.mxu0 %v109
  %385 = vmatmul.mubr.f32.gmra.mxu0 %v108
  %v386 = vpop.f32.mrf.mxu0
  %v387 = vadd.f32 0.0, %v386
  %v388 = vpop.f32.mrf.mxu0
  %389 = vmatprep.mubr.f32.mxu0 %v111
  %390 = vmatmul.mubr.f32.gmra.mxu0 %v110
  %v391 = vpop.f32.mrf.mxu0
  %v392 = vadd.f32 0.0, %v391
  %v393 = vpop.f32.mrf.mxu0
  %394 = vmatprep.mubr.f32.mxu0 %v113
  %395 = vmatmul.mubr.f32.gmra.mxu0 %v112
  %v396 = vpop.f32.mrf.mxu0
  %v397 = vadd.f32 0.0, %v396
  %v398 = vpop.f32.mrf.mxu0
  %399 = vmatprep.mubr.f32.mxu0 %v115
  %400 = vmatmul.mubr.f32.gmra.mxu0 %v114
  %v401 = vpop.f32.mrf.mxu0
  %v402 = vadd.f32 0.0, %v401
  %v403 = vpop.f32.mrf.mxu0
  %404 = vmatprep.mubr.f32.mxu0 %v117
  %405 = vmatmul.mubr.f32.gmra.mxu0 %v116
  %v406 = vpop.f32.mrf.mxu0
  %v407 = vadd.f32 0.0, %v406
  %v408 = vpop.f32.mrf.mxu0
  %409 = vmatprep.mubr.f32.mxu0 %v119
  %410 = vmatmul.mubr.f32.gmra.mxu0 %v118
  %v411 = vpop.f32.mrf.mxu0
  %v412 = vadd.f32 0.0, %v411
  %v413 = vpop.f32.mrf.mxu0
  %414 = vmatprep.mubr.f32.mxu0 %v121
  %415 = vmatmul.mubr.f32.gmra.mxu0 %v120
  %v416 = vpop.f32.mrf.mxu0
  %v417 = vadd.f32 0.0, %v416
  %v418 = vpop.f32.mrf.mxu0
  %419 = vmatprep.mubr.f32.mxu0 %v123
  %420 = vmatmul.mubr.f32.gmra.mxu0 %v122
  %v421 = vpop.f32.mrf.mxu0
  %v422 = vadd.f32 0.0, %v421
  %v423 = vpop.f32.mrf.mxu0
  %424 = vmatprep.mubr.f32.mxu0 %v125
  %425 = vmatmul.mubr.f32.gmra.mxu0 %v124
  %v426 = vpop.f32.mrf.mxu0
  %v427 = vadd.f32 0.0, %v426
  %v428 = vpop.f32.mrf.mxu0
  %429 = vmatprep.mubr.f32.mxu0 %v127
  %430 = vmatmul.mubr.f32.gmra.mxu0 %v126
  %v431 = vpop.f32.mrf.mxu0
  %v432 = vadd.f32 0.0, %v431
  %v433 = vpop.f32.mrf.mxu0
  %434 = vmatprep.mubr.f32.mxu0 %v129
  %435 = vmatmul.mubr.f32.gmra.mxu0 %v128
  %v436 = vpop.f32.mrf.mxu0
  %v437 = vadd.f32 0.0, %v436
  %v438 = vpop.f32.mrf.mxu0
  %439 = vmatprep.mubr.f32.mxu0 %v131
  %440 = vmatmul.mubr.f32.gmra.mxu0 %v130
  %v441 = vpop.f32.mrf.mxu0
  %v442 = vadd.f32 0.0, %v441
  %v443 = vpop.f32.mrf.mxu0
  %444 = vdwg.mxu0
  %v445 = vadd.f32 %v132, %v267
  %v446 = vadd.f32 %v133, %v272
  %v447 = vadd.f32 %v134, %v277
  %v448 = vadd.f32 %v135, %v282
  %v449 = vadd.f32 %v136, %v287
  %v450 = vadd.f32 %v137, %v292
  %v451 = vadd.f32 %v138, %v297
  %v452 = vadd.f32 %v139, %v302
  %v453 = vadd.f32 %v140, %v307
  %v454 = vadd.f32 %v141, %v312
  %v455 = vadd.f32 %v142, %v317
  %v456 = vadd.f32 %v143, %v322
  %v457 = vadd.f32 %v144, %v327
  %v458 = vadd.f32 %v145, %v332
  %v459 = vadd.f32 %v146, %v337
  %v460 = vadd.f32 %v147, %v342
  %v461 = vadd.f32 %v148, %v347
  %v462 = vadd.f32 %v149, %v352
  %v463 = vadd.f32 %v150, %v357
  %v464 = vadd.f32 %v151, %v362
  %v465 = vadd.f32 %v152, %v367
  %v466 = vadd.f32 %v153, %v372
  %v467 = vadd.f32 %v154, %v377
  %v468 = vadd.f32 %v155, %v382
  %v469 = vadd.f32 %v156, %v387
  %v470 = vadd.f32 %v157, %v392
  %v471 = vadd.f32 %v158, %v397
  %v472 = vadd.f32 %v159, %v402
  %v473 = vadd.f32 %v160, %v407
  %v474 = vadd.f32 %v161, %v412
  %v475 = vadd.f32 %v162, %v417
  %v476 = vadd.f32 %v163, %v422
  %v477 = vadd.f32 %v164, %v427
  %v478 = vadd.f32 %v165, %v432
  %v479 = vadd.f32 %v166, %v437
  %v480 = vadd.f32 %v167, %v442
  %481 = vst [vmem:[#allocation2] sm:$0xff] %v445
  %482 = vst [vmem:[#allocation2 + $0x8] sm:$0xff] %v446
  %483 = vst [vmem:[#allocation2 + $0x10] sm:$0xff] %v447
  %484 = vst [vmem:[#allocation2 + $0x18] sm:$0xff] %v448
  %485 = vst [vmem:[#allocation2 + $0x20] sm:$0xff] %v449
  %486 = vst [vmem:[#allocation2 + $0x28] sm:$0xff] %v450
  %487 = vst [vmem:[#allocation2 + $0x30] sm:$0xff] %v451
  %488 = vst [vmem:[#allocation2 + $0x38] sm:$0xff] %v452
  %489 = vst [vmem:[#allocation2 + $0x40] sm:$0xff] %v453
  %490 = vst [vmem:[#allocation2 + $0x48] sm:$0xff] %v454
  %491 = vst [vmem:[#allocation2 + $0x50] sm:$0xff] %v455
  %492 = vst [vmem:[#allocation2 + $0x58] sm:$0xff] %v456
  %493 = vst [vmem:[#allocation2 + $0x60] sm:$0xff] %v457
  %494 = vst [vmem:[#allocation2 + $0x68] sm:$0xff] %v458
  %495 = vst [vmem:[#allocation2 + $0x70] sm:$0xff] %v459
  %496 = vst [vmem:[#allocation2 + $0x78] sm:$0xff] %v460
  %497 = vst [vmem:[#allocation2 + $0x80] sm:$0xff] %v461
  %498 = vst [vmem:[#allocation2 + $0x88] sm:$0xff] %v462
  %499 = vst [vmem:[#allocation2 + $0x90] sm:$0xff] %v463
  %500 = vst [vmem:[#allocation2 + $0x98] sm:$0xff] %v464
  %501 = vst [vmem:[#allocation2 + $0xa0] sm:$0xff] %v465
  %502 = vst [vmem:[#allocation2 + $0xa8] sm:$0xff] %v466
  %503 = vst [vmem:[#allocation2 + $0xb0] sm:$0xff] %v467
  %504 = vst [vmem:[#allocation2 + $0xb8] sm:$0xff] %v468
  %505 = vst [vmem:[#allocation2 + $0xc0] sm:$0xff] %v469
  %506 = vst [vmem:[#allocation2 + $0xc8] sm:$0xff] %v470
  %507 = vst [vmem:[#allocation2 + $0xd0] sm:$0xff] %v471
  %508 = vst [vmem:[#allocation2 + $0xd8] sm:$0xff] %v472
  %509 = vst [vmem:[#allocation2 + $0xe0] sm:$0xff] %v473
  %510 = vst [vmem:[#allocation2 + $0xe8] sm:$0xff] %v474
  %511 = vst [vmem:[#allocation2 + $0xf0] sm:$0xff] %v475
  %512 = vst [vmem:[#allocation2 + $0xf8] sm:$0xff] %v476
  %513 = vst [vmem:[#allocation2 + $0x100] sm:$0xff] %v477
  %514 = vst [vmem:[#allocation2 + $0x108] sm:$0xff] %v478
  %515 = vst [vmem:[#allocation2 + $0x110] sm:$0xff] %v479
  %516 = vst [vmem:[#allocation2 + $0x118] sm:$0xff] %v480
  // Predicated region
  $region26: #{_lambda_.13} parent=0 // pred_check
    %p517 = pneg %p20
  $region27: #{_lambda_.13} parent=0 // pred_check_branch
    %519 = sbr.rel (%p517) target = $region29
  $region28: #{_lambda_.13} parent=0 // pred_region
    %v520 = vld [vmem:[#allocation2] sm:$0xff]
    %v521 = vld [vmem:[#allocation2 + $0x8] sm:$0xff]
    %v522 = vld [vmem:[#allocation2 + $0x10] sm:$0xff]
    %v523 = vld [vmem:[#allocation2 + $0x18] sm:$0xff]
    %v524 = vld [vmem:[#allocation2 + $0x20] sm:$0xff]
    %v525 = vld [vmem:[#allocation2 + $0x28] sm:$0xff]
    %v526 = vld [vmem:[#allocation2 + $0x30] sm:$0xff]
    %v527 = vld [vmem:[#allocation2 + $0x38] sm:$0xff]
    %v528 = vld [vmem:[#allocation2 + $0x40] sm:$0xff]
    %v529 = vld [vmem:[#allocation2 + $0x48] sm:$0xff]
    %v530 = vld [vmem:[#allocation2 + $0x50] sm:$0xff]
    %v531 = vld [vmem:[#allocation2 + $0x58] sm:$0xff]
    %v532 = vld [vmem:[#allocation2 + $0x60] sm:$0xff]
    %v533 = vld [vmem:[#allocation2 + $0x68] sm:$0xff]
    %v534 = vld [vmem:[#allocation2 + $0x70] sm:$0xff]
    %v535 = vld [vmem:[#allocation2 + $0x78] sm:$0xff]
    %v536 = vld [vmem:[#allocation2 + $0x80] sm:$0xff]
    %v537 = vld [vmem:[#allocation2 + $0x88] sm:$0xff]
    %v538 = vld [vmem:[#allocation2 + $0x90] sm:$0xff]
    %v539 = vld [vmem:[#allocation2 + $0x98] sm:$0xff]
    %v540 = vld [vmem:[#allocation2 + $0xa0] sm:$0xff]
    %v541 = vld [vmem:[#allocation2 + $0xa8] sm:$0xff]
    %v542 = vld [vmem:[#allocation2 + $0xb0] sm:$0xff]
    %v543 = vld [vmem:[#allocation2 + $0xb8] sm:$0xff]
    %v544 = vld [vmem:[#allocation2 + $0xc0] sm:$0xff]
    %v545 = vld [vmem:[#allocation2 + $0xc8] sm:$0xff]
    %v546 = vld [vmem:[#allocation2 + $0xd0] sm:$0xff]
    %v547 = vld [vmem:[#allocation2 + $0xd8] sm:$0xff]
    %v548 = vld [vmem:[#allocation2 + $0xe0] sm:$0xff]
    %v549 = vld [vmem:[#allocation2 + $0xe8] sm:$0xff]
    %v550 = vld [vmem:[#allocation2 + $0xf0] sm:$0xff]
    %v551 = vld [vmem:[#allocation2 + $0xf8] sm:$0xff]
    %v552 = vld [vmem:[#allocation2 + $0x100] sm:$0xff]
    %v553 = vld [vmem:[#allocation2 + $0x108] sm:$0xff]
    %v554 = vld [vmem:[#allocation2 + $0x110] sm:$0xff]
    %v555 = vld [vmem:[#allocation2 + $0x118] sm:$0xff]
    %v556 = vld [vmem:[%s2] sm:$0x1]
    %v558 = vlaneseq
    %v559 = vshrl.u32 %v558, 7
    %v560 = vsub.s32 0, %v559
    %v561 = vrot.slane %v556, %v560
    %v563 = vadd.f32 %v520, %v561
    %v564 = vadd.f32 %v521, %v561
    %v565 = vadd.f32 %v522, %v561
    %v566 = vadd.f32 %v523, %v561
    %v567 = vadd.f32 %v524, %v561
    %v568 = vadd.f32 %v525, %v561
    %v569 = vadd.f32 %v526, %v561
    %v570 = vadd.f32 %v527, %v561
    %v571 = vadd.f32 %v528, %v561
    %v572 = vadd.f32 %v529, %v561
    %v573 = vadd.f32 %v530, %v561
    %v574 = vadd.f32 %v531, %v561
    %v575 = vadd.f32 %v532, %v561
    %v576 = vadd.f32 %v533, %v561
    %v577 = vadd.f32 %v534, %v561
    %v578 = vadd.f32 %v535, %v561
    %v579 = vadd.f32 %v536, %v561
    %v580 = vadd.f32 %v537, %v561
    %v581 = vadd.f32 %v538, %v561
    %v582 = vadd.f32 %v539, %v561
    %v583 = vadd.f32 %v540, %v561
    %v584 = vadd.f32 %v541, %v561
    %v585 = vadd.f32 %v542, %v561
    %v586 = vadd.f32 %v543, %v561
    %v587 = vadd.f32 %v544, %v561
    %v588 = vadd.f32 %v545, %v561
    %v589 = vadd.f32 %v546, %v561
    %v590 = vadd.f32 %v547, %v561
    %v591 = vadd.f32 %v548, %v561
    %v592 = vadd.f32 %v549, %v561
    %v593 = vadd.f32 %v550, %v561
    %v594 = vadd.f32 %v551, %v561
    %v595 = vadd.f32 %v552, %v561
    %v596 = vadd.f32 %v553, %v561
    %v597 = vadd.f32 %v554, %v561
    %v598 = vadd.f32 %v555, %v561
    %v599 = vld [vmem:[%s3] sm:$0x1]
    %v601 = vlaneseq
    %v602 = vshrl.u32 %v601, 7
    %v603 = vsub.s32 0, %v602
    %v604 = vrot.slane %v599, %v603
    %v606 = vmul.f32 %v563, %v604
    %v607 = vmul.f32 %v564, %v604
    %v608 = vmul.f32 %v565, %v604
    %v609 = vmul.f32 %v566, %v604
    %v610 = vmul.f32 %v567, %v604
    %v611 = vmul.f32 %v568, %v604
    %v612 = vmul.f32 %v569, %v604
    %v613 = vmul.f32 %v570, %v604
    %v614 = vmul.f32 %v571, %v604
    %v615 = vmul.f32 %v572, %v604
    %v616 = vmul.f32 %v573, %v604
    %v617 = vmul.f32 %v574, %v604
    %v618 = vmul.f32 %v575, %v604
    %v619 = vmul.f32 %v576, %v604
    %v620 = vmul.f32 %v577, %v604
    %v621 = vmul.f32 %v578, %v604
    %v622 = vmul.f32 %v579, %v604
    %v623 = vmul.f32 %v580, %v604
    %v624 = vmul.f32 %v581, %v604
    %v625 = vmul.f32 %v582, %v604
    %v626 = vmul.f32 %v583, %v604
    %v627 = vmul.f32 %v584, %v604
    %v628 = vmul.f32 %v585, %v604
    %v629 = vmul.f32 %v586, %v604
    %v630 = vmul.f32 %v587, %v604
    %v631 = vmul.f32 %v588, %v604
    %v632 = vmul.f32 %v589, %v604
    %v633 = vmul.f32 %v590, %v604
    %v634 = vmul.f32 %v591, %v604
    %v635 = vmul.f32 %v592, %v604
    %v636 = vmul.f32 %v593, %v604
    %v637 = vmul.f32 %v594, %v604
    %v638 = vmul.f32 %v595, %v604
    %v639 = vmul.f32 %v596, %v604
    %v640 = vmul.f32 %v597, %v604
    %v641 = vmul.f32 %v598, %v604
    %v642 = vld [vmem:[%s4] sm:$0x1]
    %v644 = vlaneseq
    %v645 = vshrl.u32 %v644, 7
    %v646 = vsub.s32 0, %v645
    %v647 = vrot.slane %v642, %v646
    %v649 = vadd.f32 %v606, %v647
    %v650 = vadd.f32 %v607, %v647
    %v651 = vadd.f32 %v608, %v647
    %v652 = vadd.f32 %v609, %v647
    %v653 = vadd.f32 %v610, %v647
    %v654 = vadd.f32 %v611, %v647
    %v655 = vadd.f32 %v612, %v647
    %v656 = vadd.f32 %v613, %v647
    %v657 = vadd.f32 %v614, %v647
    %v658 = vadd.f32 %v615, %v647
    %v659 = vadd.f32 %v616, %v647
    %v660 = vadd.f32 %v617, %v647
    %v661 = vadd.f32 %v618, %v647
    %v662 = vadd.f32 %v619, %v647
    %v663 = vadd.f32 %v620, %v647
    %v664 = vadd.f32 %v621, %v647
    %v665 = vadd.f32 %v622, %v647
    %v666 = vadd.f32 %v623, %v647
    %v667 = vadd.f32 %v624, %v647
    %v668 = vadd.f32 %v625, %v647
    %v669 = vadd.f32 %v626, %v647
    %v670 = vadd.f32 %v627, %v647
    %v671 = vadd.f32 %v628, %v647
    %v672 = vadd.f32 %v629, %v647
    %v673 = vadd.f32 %v630, %v647
    %v674 = vadd.f32 %v631, %v647
    %v675 = vadd.f32 %v632, %v647
    %v676 = vadd.f32 %v633, %v647
    %v677 = vadd.f32 %v634, %v647
    %v678 = vadd.f32 %v635, %v647
    %v679 = vadd.f32 %v636, %v647
    %v680 = vadd.f32 %v637, %v647
    %v681 = vadd.f32 %v638, %v647
    %v682 = vadd.f32 %v639, %v647
    %v683 = vadd.f32 %v640, %v647
    %v684 = vadd.f32 %v641, %v647
    %v685 = vmax.f32 %v649, 0.0
    %v686 = vmax.f32 %v650, 0.0
    %v687 = vmax.f32 %v651, 0.0
    %v688 = vmax.f32 %v652, 0.0
    %v689 = vmax.f32 %v653, 0.0
    %v690 = vmax.f32 %v654, 0.0
    %v691 = vmax.f32 %v655, 0.0
    %v692 = vmax.f32 %v656, 0.0
    %v693 = vmax.f32 %v657, 0.0
    %v694 = vmax.f32 %v658, 0.0
    %v695 = vmax.f32 %v659, 0.0
    %v696 = vmax.f32 %v660, 0.0
    %v697 = vmax.f32 %v661, 0.0
    %v698 = vmax.f32 %v662, 0.0
    %v699 = vmax.f32 %v663, 0.0
    %v700 = vmax.f32 %v664, 0.0
    %v701 = vmax.f32 %v665, 0.0
    %v702 = vmax.f32 %v666, 0.0
    %v703 = vmax.f32 %v667, 0.0
    %v704 = vmax.f32 %v668, 0.0
    %v705 = vmax.f32 %v669, 0.0
    %v706 = vmax.f32 %v670, 0.0
    %v707 = vmax.f32 %v671, 0.0
    %v708 = vmax.f32 %v672, 0.0
    %v709 = vmax.f32 %v673, 0.0
    %v710 = vmax.f32 %v674, 0.0
    %v711 = vmax.f32 %v675, 0.0
    %v712 = vmax.f32 %v676, 0.0
    %v713 = vmax.f32 %v677, 0.0
    %v714 = vmax.f32 %v678, 0.0
    %v715 = vmax.f32 %v679, 0.0
    %v716 = vmax.f32 %v680, 0.0
    %v717 = vmax.f32 %v681, 0.0
    %v718 = vmax.f32 %v682, 0.0
    %v719 = vmax.f32 %v683, 0.0
    %v720 = vmax.f32 %v684, 0.0
    %721 = vst [vmem:[%s5] sm:$0xff] %v685
    %722 = vst [vmem:[%s5 + $0x8] sm:$0xff] %v686
    %723 = vst [vmem:[%s5 + $0x10] sm:$0xff] %v687
    %724 = vst [vmem:[%s5 + $0x18] sm:$0xff] %v688
    %725 = vst [vmem:[%s5 + $0x20] sm:$0xff] %v689
    %726 = vst [vmem:[%s5 + $0x28] sm:$0xff] %v690
    %727 = vst [vmem:[%s5 + $0x30] sm:$0xff] %v691
    %728 = vst [vmem:[%s5 + $0x38] sm:$0xff] %v692
    %729 = vst [vmem:[%s5 + $0x40] sm:$0xff] %v693
    %730 = vst [vmem:[%s5 + $0x48] sm:$0xff] %v694
    %731 = vst [vmem:[%s5 + $0x50] sm:$0xff] %v695
    %732 = vst [vmem:[%s5 + $0x58] sm:$0xff] %v696
    %733 = vst [vmem:[%s5 + $0x60] sm:$0xff] %v697
    %734 = vst [vmem:[%s5 + $0x68] sm:$0xff] %v698
    %735 = vst [vmem:[%s5 + $0x70] sm:$0xff] %v699
    %736 = vst [vmem:[%s5 + $0x78] sm:$0xff] %v700
    %737 = vst [vmem:[%s5 + $0x80] sm:$0xff] %v701
    %738 = vst [vmem:[%s5 + $0x88] sm:$0xff] %v702
    %739 = vst [vmem:[%s5 + $0x90] sm:$0xff] %v703
    %740 = vst [vmem:[%s5 + $0x98] sm:$0xff] %v704
    %741 = vst [vmem:[%s5 + $0xa0] sm:$0xff] %v705
    %742 = vst [vmem:[%s5 + $0xa8] sm:$0xff] %v706
    %743 = vst [vmem:[%s5 + $0xb0] sm:$0xff] %v707
    %744 = vst [vmem:[%s5 + $0xb8] sm:$0xff] %v708
    %745 = vst [vmem:[%s5 + $0xc0] sm:$0xff] %v709
    %746 = vst [vmem:[%s5 + $0xc8] sm:$0xff] %v710
    %747 = vst [vmem:[%s5 + $0xd0] sm:$0xff] %v711
    %748 = vst [vmem:[%s5 + $0xd8] sm:$0xff] %v712
    %749 = vst [vmem:[%s5 + $0xe0] sm:$0xff] %v713
    %750 = vst [vmem:[%s5 + $0xe8] sm:$0xff] %v714
    %751 = vst [vmem:[%s5 + $0xf0] sm:$0xff] %v715
    %752 = vst [vmem:[%s5 + $0xf8] sm:$0xff] %v716
    %753 = vst [vmem:[%s5 + $0x100] sm:$0xff] %v717
    %754 = vst [vmem:[%s5 + $0x108] sm:$0xff] %v718
    %755 = vst [vmem:[%s5 + $0x110] sm:$0xff] %v719
    %756 = vst [vmem:[%s5 + $0x118] sm:$0xff] %v720
  $region29: #{_lambda_.13} parent=0 // pred_fallthru
    _
  // Predicated region
  $region30: #{_lambda_.13} parent=0 // pred_check
    _
  $region31: #{_lambda_.13} parent=0 // pred_check_branch
    %758 = sbr.rel (0) target = $region33
  $region32: #{_lambda_.13} parent=0 // pred_region
    _
  $region33: #{_lambda_.13} parent=0 // pred_fallthru
    _
  // Predicated region
  $region34: #{_lambda_.13} parent=0 // pred_check
    _
  $region35: #{_lambda_.13} parent=0 // pred_check_branch
    %760 = sbr.rel (0) target = $region37
  $region36: #{_lambda_.13} parent=0 // pred_region
    _
  $region37: #{_lambda_.13} parent=0 // pred_fallthru
    _

// kernel: _lambda_.14
$region0: #{_lambda_.14}
  #allocation0 [shape = 'u32[]', space=smem, size = 0x4, offset = 0x4, fixed_abs, tag = 'smem constant byte address 0x4 - core index']
  #allocation1 [shape = 'u32[144,128]{1,0:T(1,128)}', space=vmem, size = 0x12000, scoped, tag = 'internal scratch']
  #allocation2 [shape = 'f32[288,128]{1,0:T(8,128)}', space=vmem, size = 0x24000, scoped, tag = 'scratch operand']
  %s0 = inlined_call_operand.vmem [shape: f32[288,256], index: 0, kind: input, shape index: {}]
  %s1 = inlined_call_operand.vmem [shape: f32[256,128], index: 1, kind: input, shape index: {}]
  %s2 = inlined_call_operand.vmem [shape: f32[1,128], index: 2, kind: input, shape index: {}]
  %s3 = inlined_call_operand.vmem [shape: f32[288,128], index: 3, kind: input, shape index: {}]
  %s4 = inlined_call_operand.vmem [shape: f32[288,128], index: 4, kind: output, shape index: {}]
  %s5 = sld [smem:[#allocation0]]
  $region34: #{_lambda_.14} parent=0
    _
  %s7 = ssub.s32 1, %s5
  %s8 = scalar_select 0, %s7, %s5
  // Predicated region
  $region2: #{_lambda_.14} parent=0 // pred_check
    _
  $region3: #{_lambda_.14} parent=0 // pred_check_branch
    %10 = sbr.rel (0) target = $region5
  $region4: #{_lambda_.14} parent=0 // pred_region
    _
  $region5: #{_lambda_.14} parent=0 // pred_fallthru
    _
  // Predicated region
  $region6: #{_lambda_.14} parent=0 // pred_check
    _
  $region7: #{_lambda_.14} parent=0 // pred_check_branch
    %12 = sbr.rel (0) target = $region9
  $region8: #{_lambda_.14} parent=0 // pred_region
    _
  $region9: #{_lambda_.14} parent=0 // pred_fallthru
    _
  // Predicated region
  $region10: #{_lambda_.14} parent=0 // pred_check
    _
  $region11: #{_lambda_.14} parent=0 // pred_check_branch
    %14 = sbr.rel (0) target = $region13
  $region12: #{_lambda_.14} parent=0 // pred_region
    _
  $region13: #{_lambda_.14} parent=0 // pred_fallthru
    _
  // Predicated region
  $region14: #{_lambda_.14} parent=0 // pred_check
    _
  $region15: #{_lambda_.14} parent=0 // pred_check_branch
    %16 = sbr.rel (0) target = $region17
  $region16: #{_lambda_.14} parent=0 // pred_region
    _
  $region17: #{_lambda_.14} parent=0 // pred_fallthru
    _
  %p17 = scmp.eq.s32.totalorder 0, 0
  // Predicated region
  $region18: #{_lambda_.14} parent=0 // pred_check
    %p18 = pneg %p17
  $region19: #{_lambda_.14} parent=0 // pred_check_branch
    %20 = sbr.rel (%p18) target = $region21
  $region20: #{_lambda_.14} parent=0 // pred_region
    %21 = vst [vmem:[#allocation2] sm:$0xff] 0.0
    %22 = vst [vmem:[#allocation2 + $0x8] sm:$0xff] 0.0
    %23 = vst [vmem:[#allocation2 + $0x10] sm:$0xff] 0.0
    %24 = vst [vmem:[#allocation2 + $0x18] sm:$0xff] 0.0
    %25 = vst [vmem:[#allocation2 + $0x20] sm:$0xff] 0.0
    %26 = vst [vmem:[#allocation2 + $0x28] sm:$0xff] 0.0
    %27 = vst [vmem:[#allocation2 + $0x30] sm:$0xff] 0.0
    %28 = vst [vmem:[#allocation2 + $0x38] sm:$0xff] 0.0
    %29 = vst [vmem:[#allocation2 + $0x40] sm:$0xff] 0.0
    %30 = vst [vmem:[#allocation2 + $0x48] sm:$0xff] 0.0
    %31 = vst [vmem:[#allocation2 + $0x50] sm:$0xff] 0.0
    %32 = vst [vmem:[#allocation2 + $0x58] sm:$0xff] 0.0
    %33 = vst [vmem:[#allocation2 + $0x60] sm:$0xff] 0.0
    %34 = vst [vmem:[#allocation2 + $0x68] sm:$0xff] 0.0
    %35 = vst [vmem:[#allocation2 + $0x70] sm:$0xff] 0.0
    %36 = vst [vmem:[#allocation2 + $0x78] sm:$0xff] 0.0
    %37 = vst [vmem:[#allocation2 + $0x80] sm:$0xff] 0.0
    %38 = vst [vmem:[#allocation2 + $0x88] sm:$0xff] 0.0
    %39 = vst [vmem:[#allocation2 + $0x90] sm:$0xff] 0.0
    %40 = vst [vmem:[#allocation2 + $0x98] sm:$0xff] 0.0
    %41 = vst [vmem:[#allocation2 + $0xa0] sm:$0xff] 0.0
    %42 = vst [vmem:[#allocation2 + $0xa8] sm:$0xff] 0.0
    %43 = vst [vmem:[#allocation2 + $0xb0] sm:$0xff] 0.0
    %44 = vst [vmem:[#allocation2 + $0xb8] sm:$0xff] 0.0
    %45 = vst [vmem:[#allocation2 + $0xc0] sm:$0xff] 0.0
    %46 = vst [vmem:[#allocation2 + $0xc8] sm:$0xff] 0.0
    %47 = vst [vmem:[#allocation2 + $0xd0] sm:$0xff] 0.0
    %48 = vst [vmem:[#allocation2 + $0xd8] sm:$0xff] 0.0
    %49 = vst [vmem:[#allocation2 + $0xe0] sm:$0xff] 0.0
    %50 = vst [vmem:[#allocation2 + $0xe8] sm:$0xff] 0.0
    %51 = vst [vmem:[#allocation2 + $0xf0] sm:$0xff] 0.0
    %52 = vst [vmem:[#allocation2 + $0xf8] sm:$0xff] 0.0
    %53 = vst [vmem:[#allocation2 + $0x100] sm:$0xff] 0.0
    %54 = vst [vmem:[#allocation2 + $0x108] sm:$0xff] 0.0
    %55 = vst [vmem:[#allocation2 + $0x110] sm:$0xff] 0.0
    %56 = vst [vmem:[#allocation2 + $0x118] sm:$0xff] 0.0
  $region21: #{_lambda_.14} parent=0 // pred_fallthru
    _
  %v57 = vld [vmem:[%s0] sm:$0xff]
  %v58 = vld [vmem:[%s0 + $0x8] sm:$0xff]
  %v59 = vld [vmem:[%s0 + $0x10] sm:$0xff]
  %v60 = vld [vmem:[%s0 + $0x18] sm:$0xff]
  %v61 = vld [vmem:[%s0 + $0x20] sm:$0xff]
  %v62 = vld [vmem:[%s0 + $0x28] sm:$0xff]
  %v63 = vld [vmem:[%s0 + $0x30] sm:$0xff]
  %v64 = vld [vmem:[%s0 + $0x38] sm:$0xff]
  %v65 = vld [vmem:[%s0 + $0x40] sm:$0xff]
  %v66 = vld [vmem:[%s0 + $0x48] sm:$0xff]
  %v67 = vld [vmem:[%s0 + $0x50] sm:$0xff]
  %v68 = vld [vmem:[%s0 + $0x58] sm:$0xff]
  %v69 = vld [vmem:[%s0 + $0x60] sm:$0xff]
  %v70 = vld [vmem:[%s0 + $0x68] sm:$0xff]
  %v71 = vld [vmem:[%s0 + $0x70] sm:$0xff]
  %v72 = vld [vmem:[%s0 + $0x78] sm:$0xff]
  %v73 = vld [vmem:[%s0 + $0x80] sm:$0xff]
  %v74 = vld [vmem:[%s0 + $0x88] sm:$0xff]
  %v75 = vld [vmem:[%s0 + $0x90] sm:$0xff]
  %v76 = vld [vmem:[%s0 + $0x98] sm:$0xff]
  %v77 = vld [vmem:[%s0 + $0xa0] sm:$0xff]
  %v78 = vld [vmem:[%s0 + $0xa8] sm:$0xff]
  %v79 = vld [vmem:[%s0 + $0xb0] sm:$0xff]
  %v80 = vld [vmem:[%s0 + $0xb8] sm:$0xff]
  %v81 = vld [vmem:[%s0 + $0xc0] sm:$0xff]
  %v82 = vld [vmem:[%s0 + $0xc8] sm:$0xff]
  %v83 = vld [vmem:[%s0 + $0xd0] sm:$0xff]
  %v84 = vld [vmem:[%s0 + $0xd8] sm:$0xff]
  %v85 = vld [vmem:[%s0 + $0xe0] sm:$0xff]
  %v86 = vld [vmem:[%s0 + $0xe8] sm:$0xff]
  %v87 = vld [vmem:[%s0 + $0xf0] sm:$0xff]
  %v88 = vld [vmem:[%s0 + $0xf8] sm:$0xff]
  %v89 = vld [vmem:[%s0 + $0x100] sm:$0xff]
  %v90 = vld [vmem:[%s0 + $0x108] sm:$0xff]
  %v91 = vld [vmem:[%s0 + $0x110] sm:$0xff]
  %v92 = vld [vmem:[%s0 + $0x118] sm:$0xff]
  %v93 = vld [vmem:[%s0 + $0x120] sm:$0xff]
  %v94 = vld [vmem:[%s0 + $0x128] sm:$0xff]
  %v95 = vld [vmem:[%s0 + $0x130] sm:$0xff]
  %v96 = vld [vmem:[%s0 + $0x138] sm:$0xff]
  %v97 = vld [vmem:[%s0 + $0x140] sm:$0xff]
  %v98 = vld [vmem:[%s0 + $0x148] sm:$0xff]
  %v99 = vld [vmem:[%s0 + $0x150] sm:$0xff]
  %v100 = vld [vmem:[%s0 + $0x158] sm:$0xff]
  %v101 = vld [vmem:[%s0 + $0x160] sm:$0xff]
  %v102 = vld [vmem:[%s0 + $0x168] sm:$0xff]
  %v103 = vld [vmem:[%s0 + $0x170] sm:$0xff]
  %v104 = vld [vmem:[%s0 + $0x178] sm:$0xff]
  %v105 = vld [vmem:[%s0 + $0x180] sm:$0xff]
  %v106 = vld [vmem:[%s0 + $0x188] sm:$0xff]
  %v107 = vld [vmem:[%s0 + $0x190] sm:$0xff]
  %v108 = vld [vmem:[%s0 + $0x198] sm:$0xff]
  %v109 = vld [vmem:[%s0 + $0x1a0] sm:$0xff]
  %v110 = vld [vmem:[%s0 + $0x1a8] sm:$0xff]
  %v111 = vld [vmem:[%s0 + $0x1b0] sm:$0xff]
  %v112 = vld [vmem:[%s0 + $0x1b8] sm:$0xff]
  %v113 = vld [vmem:[%s0 + $0x1c0] sm:$0xff]
  %v114 = vld [vmem:[%s0 + $0x1c8] sm:$0xff]
  %v115 = vld [vmem:[%s0 + $0x1d0] sm:$0xff]
  %v116 = vld [vmem:[%s0 + $0x1d8] sm:$0xff]
  %v117 = vld [vmem:[%s0 + $0x1e0] sm:$0xff]
  %v118 = vld [vmem:[%s0 + $0x1e8] sm:$0xff]
  %v119 = vld [vmem:[%s0 + $0x1f0] sm:$0xff]
  %v120 = vld [vmem:[%s0 + $0x1f8] sm:$0xff]
  %v121 = vld [vmem:[%s0 + $0x200] sm:$0xff]
  %v122 = vld [vmem:[%s0 + $0x208] sm:$0xff]
  %v123 = vld [vmem:[%s0 + $0x210] sm:$0xff]
  %v124 = vld [vmem:[%s0 + $0x218] sm:$0xff]
  %v125 = vld [vmem:[%s0 + $0x220] sm:$0xff]
  %v126 = vld [vmem:[%s0 + $0x228] sm:$0xff]
  %v127 = vld [vmem:[%s0 + $0x230] sm:$0xff]
  %v128 = vld [vmem:[%s0 + $0x238] sm:$0xff]
  %v129 = vld [vmem:[#allocation2] sm:$0xff]
  %v130 = vld [vmem:[#allocation2 + $0x8] sm:$0xff]
  %v131 = vld [vmem:[#allocation2 + $0x10] sm:$0xff]
  %v132 = vld [vmem:[#allocation2 + $0x18] sm:$0xff]
  %v133 = vld [vmem:[#allocation2 + $0x20] sm:$0xff]
  %v134 = vld [vmem:[#allocation2 + $0x28] sm:$0xff]
  %v135 = vld [vmem:[#allocation2 + $0x30] sm:$0xff]
  %v136 = vld [vmem:[#allocation2 + $0x38] sm:$0xff]
  %v137 = vld [vmem:[#allocation2 + $0x40] sm:$0xff]
  %v138 = vld [vmem:[#allocation2 + $0x48] sm:$0xff]
  %v139 = vld [vmem:[#allocation2 + $0x50] sm:$0xff]
  %v140 = vld [vmem:[#allocation2 + $0x58] sm:$0xff]
  %v141 = vld [vmem:[#allocation2 + $0x60] sm:$0xff]
  %v142 = vld [vmem:[#allocation2 + $0x68] sm:$0xff]
  %v143 = vld [vmem:[#allocation2 + $0x70] sm:$0xff]
  %v144 = vld [vmem:[#allocation2 + $0x78] sm:$0xff]
  %v145 = vld [vmem:[#allocation2 + $0x80] sm:$0xff]
  %v146 = vld [vmem:[#allocation2 + $0x88] sm:$0xff]
  %v147 = vld [vmem:[#allocation2 + $0x90] sm:$0xff]
  %v148 = vld [vmem:[#allocation2 + $0x98] sm:$0xff]
  %v149 = vld [vmem:[#allocation2 + $0xa0] sm:$0xff]
  %v150 = vld [vmem:[#allocation2 + $0xa8] sm:$0xff]
  %v151 = vld [vmem:[#allocation2 + $0xb0] sm:$0xff]
  %v152 = vld [vmem:[#allocation2 + $0xb8] sm:$0xff]
  %v153 = vld [vmem:[#allocation2 + $0xc0] sm:$0xff]
  %v154 = vld [vmem:[#allocation2 + $0xc8] sm:$0xff]
  %v155 = vld [vmem:[#allocation2 + $0xd0] sm:$0xff]
  %v156 = vld [vmem:[#allocation2 + $0xd8] sm:$0xff]
  %v157 = vld [vmem:[#allocation2 + $0xe0] sm:$0xff]
  %v158 = vld [vmem:[#allocation2 + $0xe8] sm:$0xff]
  %v159 = vld [vmem:[#allocation2 + $0xf0] sm:$0xff]
  %v160 = vld [vmem:[#allocation2 + $0xf8] sm:$0xff]
  %v161 = vld [vmem:[#allocation2 + $0x100] sm:$0xff]
  %v162 = vld [vmem:[#allocation2 + $0x108] sm:$0xff]
  %v163 = vld [vmem:[#allocation2 + $0x110] sm:$0xff]
  %v164 = vld [vmem:[#allocation2 + $0x118] sm:$0xff]
  %v165 = vld [vmem:[%s1] sm:$0xff]
  %v166 = vld [vmem:[%s1 + $0x8] sm:$0xff]
  %v167 = vld [vmem:[%s1 + $0x10] sm:$0xff]
  %v168 = vld [vmem:[%s1 + $0x18] sm:$0xff]
  %v169 = vld [vmem:[%s1 + $0x20] sm:$0xff]
  %v170 = vld [vmem:[%s1 + $0x28] sm:$0xff]
  %v171 = vld [vmem:[%s1 + $0x30] sm:$0xff]
  %v172 = vld [vmem:[%s1 + $0x38] sm:$0xff]
  %v173 = vld [vmem:[%s1 + $0x40] sm:$0xff]
  %v174 = vld [vmem:[%s1 + $0x48] sm:$0xff]
  %v175 = vld [vmem:[%s1 + $0x50] sm:$0xff]
  %v176 = vld [vmem:[%s1 + $0x58] sm:$0xff]
  %v177 = vld [vmem:[%s1 + $0x60] sm:$0xff]
  %v178 = vld [vmem:[%s1 + $0x68] sm:$0xff]
  %v179 = vld [vmem:[%s1 + $0x70] sm:$0xff]
  %v180 = vld [vmem:[%s1 + $0x78] sm:$0xff]
  %v181 = vld [vmem:[%s1 + $0x80] sm:$0xff]
  %v182 = vld [vmem:[%s1 + $0x88] sm:$0xff]
  %v183 = vld [vmem:[%s1 + $0x90] sm:$0xff]
  %v184 = vld [vmem:[%s1 + $0x98] sm:$0xff]
  %v185 = vld [vmem:[%s1 + $0xa0] sm:$0xff]
  %v186 = vld [vmem:[%s1 + $0xa8] sm:$0xff]
  %v187 = vld [vmem:[%s1 + $0xb0] sm:$0xff]
  %v188 = vld [vmem:[%s1 + $0xb8] sm:$0xff]
  %v189 = vld [vmem:[%s1 + $0xc0] sm:$0xff]
  %v190 = vld [vmem:[%s1 + $0xc8] sm:$0xff]
  %v191 = vld [vmem:[%s1 + $0xd0] sm:$0xff]
  %v192 = vld [vmem:[%s1 + $0xd8] sm:$0xff]
  %v193 = vld [vmem:[%s1 + $0xe0] sm:$0xff]
  %v194 = vld [vmem:[%s1 + $0xe8] sm:$0xff]
  %v195 = vld [vmem:[%s1 + $0xf0] sm:$0xff]
  %v196 = vld [vmem:[%s1 + $0xf8] sm:$0xff]
  %197 = vmatprep.subr.mxu0 0.0
  %198 = vmatpush1.msra.mxu0 %v180
  %199 = vmatprep.subr.mxu0 0.0
  %200 = vmatpush1.msra.mxu0 %v179
  %201 = vmatprep.subr.mxu0 0.0
  %202 = vmatpush1.msra.mxu0 %v178
  %203 = vmatprep.subr.mxu0 0.0
  %204 = vmatpush1.msra.mxu0 %v177
  %205 = vmatprep.subr.mxu0 0.0
  %206 = vmatpush1.msra.mxu0 %v176
  %207 = vmatprep.subr.mxu0 0.0
  %208 = vmatpush1.msra.mxu0 %v175
  %209 = vmatprep.subr.mxu0 0.0
  %210 = vmatpush1.msra.mxu0 %v174
  %211 = vmatprep.subr.mxu0 0.0
  %212 = vmatpush1.msra.mxu0 %v173
  %213 = vmatprep.subr.mxu0 0.0
  %214 = vmatpush1.msra.mxu0 %v172
  %215 = vmatprep.subr.mxu0 0.0
  %216 = vmatpush1.msra.mxu0 %v171
  %217 = vmatprep.subr.mxu0 0.0
  %218 = vmatpush1.msra.mxu0 %v170
  %219 = vmatprep.subr.mxu0 0.0
  %220 = vmatpush1.msra.mxu0 %v169
  %221 = vmatprep.subr.mxu0 0.0
  %222 = vmatpush1.msra.mxu0 %v168
  %223 = vmatprep.subr.mxu0 0.0
  %224 = vmatpush1.msra.mxu0 %v167
  %225 = vmatprep.subr.mxu0 0.0
  %226 = vmatpush1.msra.mxu0 %v166
  %227 = vmatprep.subr.mxu0 0.0
  %228 = vmatpush1.msra.mxu0 %v165
  %229 = vmatprep.subr.mxu0 0.0
  %230 = vmatpush2.msra.mxu0 %v196
  %231 = vmatprep.subr.mxu0 0.0
  %232 = vmatpush2.msra.mxu0 %v195
  %233 = vmatprep.subr.mxu0 0.0
  %234 = vmatpush2.msra.mxu0 %v194
  %235 = vmatprep.subr.mxu0 0.0
  %236 = vmatpush2.msra.mxu0 %v193
  %237 = vmatprep.subr.mxu0 0.0
  %238 = vmatpush2.msra.mxu0 %v192
  %239 = vmatprep.subr.mxu0 0.0
  %240 = vmatpush2.msra.mxu0 %v191
  %241 = vmatprep.subr.mxu0 0.0
  %242 = vmatpush2.msra.mxu0 %v190
  %243 = vmatprep.subr.mxu0 0.0
  %244 = vmatpush2.msra.mxu0 %v189
  %245 = vmatprep.subr.mxu0 0.0
  %246 = vmatpush2.msra.mxu0 %v188
  %247 = vmatprep.subr.mxu0 0.0
  %248 = vmatpush2.msra.mxu0 %v187
  %249 = vmatprep.subr.mxu0 0.0
  %250 = vmatpush2.msra.mxu0 %v186
  %251 = vmatprep.subr.mxu0 0.0
  %252 = vmatpush2.msra.mxu0 %v185
  %253 = vmatprep.subr.mxu0 0.0
  %254 = vmatpush2.msra.mxu0 %v184
  %255 = vmatprep.subr.mxu0 0.0
  %256 = vmatpush2.msra.mxu0 %v183
  %257 = vmatprep.subr.mxu0 0.0
  %258 = vmatpush2.msra.mxu0 %v182
  %259 = vmatprep.subr.mxu0 0.0
  %260 = vmatpush2.msra.mxu0 %v181
  %261 = vmatprep.mubr.f32.mxu0 %v58
  %262 = vmatmul.mubr.f32.gmra.mxu0 %v57
  %v263 = vpop.f32.mrf.mxu0
  %v264 = vadd.f32 0.0, %v263
  %v265 = vpop.f32.mrf.mxu0
  %266 = vmatprep.mubr.f32.mxu0 %v60
  %267 = vmatmul.mubr.f32.gmra.mxu0 %v59
  %v268 = vpop.f32.mrf.mxu0
  %v269 = vadd.f32 0.0, %v268
  %v270 = vpop.f32.mrf.mxu0
  %271 = vmatprep.mubr.f32.mxu0 %v62
  %272 = vmatmul.mubr.f32.gmra.mxu0 %v61
  %v273 = vpop.f32.mrf.mxu0
  %v274 = vadd.f32 0.0, %v273
  %v275 = vpop.f32.mrf.mxu0
  %276 = vmatprep.mubr.f32.mxu0 %v64
  %277 = vmatmul.mubr.f32.gmra.mxu0 %v63
  %v278 = vpop.f32.mrf.mxu0
  %v279 = vadd.f32 0.0, %v278
  %v280 = vpop.f32.mrf.mxu0
  %281 = vmatprep.mubr.f32.mxu0 %v66
  %282 = vmatmul.mubr.f32.gmra.mxu0 %v65
  %v283 = vpop.f32.mrf.mxu0
  %v284 = vadd.f32 0.0, %v283
  %v285 = vpop.f32.mrf.mxu0
  %286 = vmatprep.mubr.f32.mxu0 %v68
  %287 = vmatmul.mubr.f32.gmra.mxu0 %v67
  %v288 = vpop.f32.mrf.mxu0
  %v289 = vadd.f32 0.0, %v288
  %v290 = vpop.f32.mrf.mxu0
  %291 = vmatprep.mubr.f32.mxu0 %v70
  %292 = vmatmul.mubr.f32.gmra.mxu0 %v69
  %v293 = vpop.f32.mrf.mxu0
  %v294 = vadd.f32 0.0, %v293
  %v295 = vpop.f32.mrf.mxu0
  %296 = vmatprep.mubr.f32.mxu0 %v72
  %297 = vmatmul.mubr.f32.gmra.mxu0 %v71
  %v298 = vpop.f32.mrf.mxu0
  %v299 = vadd.f32 0.0, %v298
  %v300 = vpop.f32.mrf.mxu0
  %301 = vmatprep.mubr.f32.mxu0 %v74
  %302 = vmatmul.mubr.f32.gmra.mxu0 %v73
  %v303 = vpop.f32.mrf.mxu0
  %v304 = vadd.f32 0.0, %v303
  %v305 = vpop.f32.mrf.mxu0
  %306 = vmatprep.mubr.f32.mxu0 %v76
  %307 = vmatmul.mubr.f32.gmra.mxu0 %v75
  %v308 = vpop.f32.mrf.mxu0
  %v309 = vadd.f32 0.0, %v308
  %v310 = vpop.f32.mrf.mxu0
  %311 = vmatprep.mubr.f32.mxu0 %v78
  %312 = vmatmul.mubr.f32.gmra.mxu0 %v77
  %v313 = vpop.f32.mrf.mxu0
  %v314 = vadd.f32 0.0, %v313
  %v315 = vpop.f32.mrf.mxu0
  %316 = vmatprep.mubr.f32.mxu0 %v80
  %317 = vmatmul.mubr.f32.gmra.mxu0 %v79
  %v318 = vpop.f32.mrf.mxu0
  %v319 = vadd.f32 0.0, %v318
  %v320 = vpop.f32.mrf.mxu0
  %321 = vmatprep.mubr.f32.mxu0 %v82
  %322 = vmatmul.mubr.f32.gmra.mxu0 %v81
  %v323 = vpop.f32.mrf.mxu0
  %v324 = vadd.f32 0.0, %v323
  %v325 = vpop.f32.mrf.mxu0
  %326 = vmatprep.mubr.f32.mxu0 %v84
  %327 = vmatmul.mubr.f32.gmra.mxu0 %v83
  %v328 = vpop.f32.mrf.mxu0
  %v329 = vadd.f32 0.0, %v328
  %v330 = vpop.f32.mrf.mxu0
  %331 = vmatprep.mubr.f32.mxu0 %v86
  %332 = vmatmul.mubr.f32.gmra.mxu0 %v85
  %v333 = vpop.f32.mrf.mxu0
  %v334 = vadd.f32 0.0, %v333
  %v335 = vpop.f32.mrf.mxu0
  %336 = vmatprep.mubr.f32.mxu0 %v88
  %337 = vmatmul.mubr.f32.gmra.mxu0 %v87
  %v338 = vpop.f32.mrf.mxu0
  %v339 = vadd.f32 0.0, %v338
  %v340 = vpop.f32.mrf.mxu0
  %341 = vmatprep.mubr.f32.mxu0 %v90
  %342 = vmatmul.mubr.f32.gmra.mxu0 %v89
  %v343 = vpop.f32.mrf.mxu0
  %v344 = vadd.f32 0.0, %v343
  %v345 = vpop.f32.mrf.mxu0
  %346 = vmatprep.mubr.f32.mxu0 %v92
  %347 = vmatmul.mubr.f32.gmra.mxu0 %v91
  %v348 = vpop.f32.mrf.mxu0
  %v349 = vadd.f32 0.0, %v348
  %v350 = vpop.f32.mrf.mxu0
  %351 = vmatprep.mubr.f32.mxu0 %v94
  %352 = vmatmul.mubr.f32.gmra.mxu0 %v93
  %v353 = vpop.f32.mrf.mxu0
  %v354 = vadd.f32 0.0, %v353
  %v355 = vpop.f32.mrf.mxu0
  %356 = vmatprep.mubr.f32.mxu0 %v96
  %357 = vmatmul.mubr.f32.gmra.mxu0 %v95
  %v358 = vpop.f32.mrf.mxu0
  %v359 = vadd.f32 0.0, %v358
  %v360 = vpop.f32.mrf.mxu0
  %361 = vmatprep.mubr.f32.mxu0 %v98
  %362 = vmatmul.mubr.f32.gmra.mxu0 %v97
  %v363 = vpop.f32.mrf.mxu0
  %v364 = vadd.f32 0.0, %v363
  %v365 = vpop.f32.mrf.mxu0
  %366 = vmatprep.mubr.f32.mxu0 %v100
  %367 = vmatmul.mubr.f32.gmra.mxu0 %v99
  %v368 = vpop.f32.mrf.mxu0
  %v369 = vadd.f32 0.0, %v368
  %v370 = vpop.f32.mrf.mxu0
  %371 = vmatprep.mubr.f32.mxu0 %v102
  %372 = vmatmul.mubr.f32.gmra.mxu0 %v101
  %v373 = vpop.f32.mrf.mxu0
  %v374 = vadd.f32 0.0, %v373
  %v375 = vpop.f32.mrf.mxu0
  %376 = vmatprep.mubr.f32.mxu0 %v104
  %377 = vmatmul.mubr.f32.gmra.mxu0 %v103
  %v378 = vpop.f32.mrf.mxu0
  %v379 = vadd.f32 0.0, %v378
  %v380 = vpop.f32.mrf.mxu0
  %381 = vmatprep.mubr.f32.mxu0 %v106
  %382 = vmatmul.mubr.f32.gmra.mxu0 %v105
  %v383 = vpop.f32.mrf.mxu0
  %v384 = vadd.f32 0.0, %v383
  %v385 = vpop.f32.mrf.mxu0
  %386 = vmatprep.mubr.f32.mxu0 %v108
  %387 = vmatmul.mubr.f32.gmra.mxu0 %v107
  %v388 = vpop.f32.mrf.mxu0
  %v389 = vadd.f32 0.0, %v388
  %v390 = vpop.f32.mrf.mxu0
  %391 = vmatprep.mubr.f32.mxu0 %v110
  %392 = vmatmul.mubr.f32.gmra.mxu0 %v109
  %v393 = vpop.f32.mrf.mxu0
  %v394 = vadd.f32 0.0, %v393
  %v395 = vpop.f32.mrf.mxu0
  %396 = vmatprep.mubr.f32.mxu0 %v112
  %397 = vmatmul.mubr.f32.gmra.mxu0 %v111
  %v398 = vpop.f32.mrf.mxu0
  %v399 = vadd.f32 0.0, %v398
  %v400 = vpop.f32.mrf.mxu0
  %401 = vmatprep.mubr.f32.mxu0 %v114
  %402 = vmatmul.mubr.f32.gmra.mxu0 %v113
  %v403 = vpop.f32.mrf.mxu0
  %v404 = vadd.f32 0.0, %v403
  %v405 = vpop.f32.mrf.mxu0
  %406 = vmatprep.mubr.f32.mxu0 %v116
  %407 = vmatmul.mubr.f32.gmra.mxu0 %v115
  %v408 = vpop.f32.mrf.mxu0
  %v409 = vadd.f32 0.0, %v408
  %v410 = vpop.f32.mrf.mxu0
  %411 = vmatprep.mubr.f32.mxu0 %v118
  %412 = vmatmul.mubr.f32.gmra.mxu0 %v117
  %v413 = vpop.f32.mrf.mxu0
  %v414 = vadd.f32 0.0, %v413
  %v415 = vpop.f32.mrf.mxu0
  %416 = vmatprep.mubr.f32.mxu0 %v120
  %417 = vmatmul.mubr.f32.gmra.mxu0 %v119
  %v418 = vpop.f32.mrf.mxu0
  %v419 = vadd.f32 0.0, %v418
  %v420 = vpop.f32.mrf.mxu0
  %421 = vmatprep.mubr.f32.mxu0 %v122
  %422 = vmatmul.mubr.f32.gmra.mxu0 %v121
  %v423 = vpop.f32.mrf.mxu0
  %v424 = vadd.f32 0.0, %v423
  %v425 = vpop.f32.mrf.mxu0
  %426 = vmatprep.mubr.f32.mxu0 %v124
  %427 = vmatmul.mubr.f32.gmra.mxu0 %v123
  %v428 = vpop.f32.mrf.mxu0
  %v429 = vadd.f32 0.0, %v428
  %v430 = vpop.f32.mrf.mxu0
  %431 = vmatprep.mubr.f32.mxu0 %v126
  %432 = vmatmul.mubr.f32.gmra.mxu0 %v125
  %v433 = vpop.f32.mrf.mxu0
  %v434 = vadd.f32 0.0, %v433
  %v435 = vpop.f32.mrf.mxu0
  %436 = vmatprep.mubr.f32.mxu0 %v128
  %437 = vmatmul.mubr.f32.gmra.mxu0 %v127
  %v438 = vpop.f32.mrf.mxu0
  %v439 = vadd.f32 0.0, %v438
  %v440 = vpop.f32.mrf.mxu0
  %441 = vdwg.mxu0
  %v442 = vadd.f32 %v129, %v264
  %v443 = vadd.f32 %v130, %v269
  %v444 = vadd.f32 %v131, %v274
  %v445 = vadd.f32 %v132, %v279
  %v446 = vadd.f32 %v133, %v284
  %v447 = vadd.f32 %v134, %v289
  %v448 = vadd.f32 %v135, %v294
  %v449 = vadd.f32 %v136, %v299
  %v450 = vadd.f32 %v137, %v304
  %v451 = vadd.f32 %v138, %v309
  %v452 = vadd.f32 %v139, %v314
  %v453 = vadd.f32 %v140, %v319
  %v454 = vadd.f32 %v141, %v324
  %v455 = vadd.f32 %v142, %v329
  %v456 = vadd.f32 %v143, %v334
  %v457 = vadd.f32 %v144, %v339
  %v458 = vadd.f32 %v145, %v344
  %v459 = vadd.f32 %v146, %v349
  %v460 = vadd.f32 %v147, %v354
  %v461 = vadd.f32 %v148, %v359
  %v462 = vadd.f32 %v149, %v364
  %v463 = vadd.f32 %v150, %v369
  %v464 = vadd.f32 %v151, %v374
  %v465 = vadd.f32 %v152, %v379
  %v466 = vadd.f32 %v153, %v384
  %v467 = vadd.f32 %v154, %v389
  %v468 = vadd.f32 %v155, %v394
  %v469 = vadd.f32 %v156, %v399
  %v470 = vadd.f32 %v157, %v404
  %v471 = vadd.f32 %v158, %v409
  %v472 = vadd.f32 %v159, %v414
  %v473 = vadd.f32 %v160, %v419
  %v474 = vadd.f32 %v161, %v424
  %v475 = vadd.f32 %v162, %v429
  %v476 = vadd.f32 %v163, %v434
  %v477 = vadd.f32 %v164, %v439
  %478 = vst [vmem:[#allocation2] sm:$0xff] %v442
  %479 = vst [vmem:[#allocation2 + $0x8] sm:$0xff] %v443
  %480 = vst [vmem:[#allocation2 + $0x10] sm:$0xff] %v444
  %481 = vst [vmem:[#allocation2 + $0x18] sm:$0xff] %v445
  %482 = vst [vmem:[#allocation2 + $0x20] sm:$0xff] %v446
  %483 = vst [vmem:[#allocation2 + $0x28] sm:$0xff] %v447
  %484 = vst [vmem:[#allocation2 + $0x30] sm:$0xff] %v448
  %485 = vst [vmem:[#allocation2 + $0x38] sm:$0xff] %v449
  %486 = vst [vmem:[#allocation2 + $0x40] sm:$0xff] %v450
  %487 = vst [vmem:[#allocation2 + $0x48] sm:$0xff] %v451
  %488 = vst [vmem:[#allocation2 + $0x50] sm:$0xff] %v452
  %489 = vst [vmem:[#allocation2 + $0x58] sm:$0xff] %v453
  %490 = vst [vmem:[#allocation2 + $0x60] sm:$0xff] %v454
  %491 = vst [vmem:[#allocation2 + $0x68] sm:$0xff] %v455
  %492 = vst [vmem:[#allocation2 + $0x70] sm:$0xff] %v456
  %493 = vst [vmem:[#allocation2 + $0x78] sm:$0xff] %v457
  %494 = vst [vmem:[#allocation2 + $0x80] sm:$0xff] %v458
  %495 = vst [vmem:[#allocation2 + $0x88] sm:$0xff] %v459
  %496 = vst [vmem:[#allocation2 + $0x90] sm:$0xff] %v460
  %497 = vst [vmem:[#allocation2 + $0x98] sm:$0xff] %v461
  %498 = vst [vmem:[#allocation2 + $0xa0] sm:$0xff] %v462
  %499 = vst [vmem:[#allocation2 + $0xa8] sm:$0xff] %v463
  %500 = vst [vmem:[#allocation2 + $0xb0] sm:$0xff] %v464
  %501 = vst [vmem:[#allocation2 + $0xb8] sm:$0xff] %v465
  %502 = vst [vmem:[#allocation2 + $0xc0] sm:$0xff] %v466
  %503 = vst [vmem:[#allocation2 + $0xc8] sm:$0xff] %v467
  %504 = vst [vmem:[#allocation2 + $0xd0] sm:$0xff] %v468
  %505 = vst [vmem:[#allocation2 + $0xd8] sm:$0xff] %v469
  %506 = vst [vmem:[#allocation2 + $0xe0] sm:$0xff] %v470
  %507 = vst [vmem:[#allocation2 + $0xe8] sm:$0xff] %v471
  %508 = vst [vmem:[#allocation2 + $0xf0] sm:$0xff] %v472
  %509 = vst [vmem:[#allocation2 + $0xf8] sm:$0xff] %v473
  %510 = vst [vmem:[#allocation2 + $0x100] sm:$0xff] %v474
  %511 = vst [vmem:[#allocation2 + $0x108] sm:$0xff] %v475
  %512 = vst [vmem:[#allocation2 + $0x110] sm:$0xff] %v476
  %513 = vst [vmem:[#allocation2 + $0x118] sm:$0xff] %v477
  // Predicated region
  $region22: #{_lambda_.14} parent=0 // pred_check
    %p514 = pneg %p17
  $region23: #{_lambda_.14} parent=0 // pred_check_branch
    %516 = sbr.rel (%p514) target = $region25
  $region24: #{_lambda_.14} parent=0 // pred_region
    %v517 = vld [vmem:[#allocation2] sm:$0xff]
    %v518 = vld [vmem:[#allocation2 + $0x8] sm:$0xff]
    %v519 = vld [vmem:[#allocation2 + $0x10] sm:$0xff]
    %v520 = vld [vmem:[#allocation2 + $0x18] sm:$0xff]
    %v521 = vld [vmem:[#allocation2 + $0x20] sm:$0xff]
    %v522 = vld [vmem:[#allocation2 + $0x28] sm:$0xff]
    %v523 = vld [vmem:[#allocation2 + $0x30] sm:$0xff]
    %v524 = vld [vmem:[#allocation2 + $0x38] sm:$0xff]
    %v525 = vld [vmem:[#allocation2 + $0x40] sm:$0xff]
    %v526 = vld [vmem:[#allocation2 + $0x48] sm:$0xff]
    %v527 = vld [vmem:[#allocation2 + $0x50] sm:$0xff]
    %v528 = vld [vmem:[#allocation2 + $0x58] sm:$0xff]
    %v529 = vld [vmem:[#allocation2 + $0x60] sm:$0xff]
    %v530 = vld [vmem:[#allocation2 + $0x68] sm:$0xff]
    %v531 = vld [vmem:[#allocation2 + $0x70] sm:$0xff]
    %v532 = vld [vmem:[#allocation2 + $0x78] sm:$0xff]
    %v533 = vld [vmem:[#allocation2 + $0x80] sm:$0xff]
    %v534 = vld [vmem:[#allocation2 + $0x88] sm:$0xff]
    %v535 = vld [vmem:[#allocation2 + $0x90] sm:$0xff]
    %v536 = vld [vmem:[#allocation2 + $0x98] sm:$0xff]
    %v537 = vld [vmem:[#allocation2 + $0xa0] sm:$0xff]
    %v538 = vld [vmem:[#allocation2 + $0xa8] sm:$0xff]
    %v539 = vld [vmem:[#allocation2 + $0xb0] sm:$0xff]
    %v540 = vld [vmem:[#allocation2 + $0xb8] sm:$0xff]
    %v541 = vld [vmem:[#allocation2 + $0xc0] sm:$0xff]
    %v542 = vld [vmem:[#allocation2 + $0xc8] sm:$0xff]
    %v543 = vld [vmem:[#allocation2 + $0xd0] sm:$0xff]
    %v544 = vld [vmem:[#allocation2 + $0xd8] sm:$0xff]
    %v545 = vld [vmem:[#allocation2 + $0xe0] sm:$0xff]
    %v546 = vld [vmem:[#allocation2 + $0xe8] sm:$0xff]
    %v547 = vld [vmem:[#allocation2 + $0xf0] sm:$0xff]
    %v548 = vld [vmem:[#allocation2 + $0xf8] sm:$0xff]
    %v549 = vld [vmem:[#allocation2 + $0x100] sm:$0xff]
    %v550 = vld [vmem:[#allocation2 + $0x108] sm:$0xff]
    %v551 = vld [vmem:[#allocation2 + $0x110] sm:$0xff]
    %v552 = vld [vmem:[#allocation2 + $0x118] sm:$0xff]
    %v553 = vld [vmem:[%s2] sm:$0x1]
    %v555 = vlaneseq
    %v556 = vshrl.u32 %v555, 7
    %v557 = vsub.s32 0, %v556
    %v558 = vrot.slane %v553, %v557
    %v560 = vadd.f32 %v517, %v558
    %v561 = vadd.f32 %v518, %v558
    %v562 = vadd.f32 %v519, %v558
    %v563 = vadd.f32 %v520, %v558
    %v564 = vadd.f32 %v521, %v558
    %v565 = vadd.f32 %v522, %v558
    %v566 = vadd.f32 %v523, %v558
    %v567 = vadd.f32 %v524, %v558
    %v568 = vadd.f32 %v525, %v558
    %v569 = vadd.f32 %v526, %v558
    %v570 = vadd.f32 %v527, %v558
    %v571 = vadd.f32 %v528, %v558
    %v572 = vadd.f32 %v529, %v558
    %v573 = vadd.f32 %v530, %v558
    %v574 = vadd.f32 %v531, %v558
    %v575 = vadd.f32 %v532, %v558
    %v576 = vadd.f32 %v533, %v558
    %v577 = vadd.f32 %v534, %v558
    %v578 = vadd.f32 %v535, %v558
    %v579 = vadd.f32 %v536, %v558
    %v580 = vadd.f32 %v537, %v558
    %v581 = vadd.f32 %v538, %v558
    %v582 = vadd.f32 %v539, %v558
    %v583 = vadd.f32 %v540, %v558
    %v584 = vadd.f32 %v541, %v558
    %v585 = vadd.f32 %v542, %v558
    %v586 = vadd.f32 %v543, %v558
    %v587 = vadd.f32 %v544, %v558
    %v588 = vadd.f32 %v545, %v558
    %v589 = vadd.f32 %v546, %v558
    %v590 = vadd.f32 %v547, %v558
    %v591 = vadd.f32 %v548, %v558
    %v592 = vadd.f32 %v549, %v558
    %v593 = vadd.f32 %v550, %v558
    %v594 = vadd.f32 %v551, %v558
    %v595 = vadd.f32 %v552, %v558
    %v596 = vld [vmem:[%s3] sm:$0xff]
    %v597 = vld [vmem:[%s3 + $0x8] sm:$0xff]
    %v598 = vld [vmem:[%s3 + $0x10] sm:$0xff]
    %v599 = vld [vmem:[%s3 + $0x18] sm:$0xff]
    %v600 = vld [vmem:[%s3 + $0x20] sm:$0xff]
    %v601 = vld [vmem:[%s3 + $0x28] sm:$0xff]
    %v602 = vld [vmem:[%s3 + $0x30] sm:$0xff]
    %v603 = vld [vmem:[%s3 + $0x38] sm:$0xff]
    %v604 = vld [vmem:[%s3 + $0x40] sm:$0xff]
    %v605 = vld [vmem:[%s3 + $0x48] sm:$0xff]
    %v606 = vld [vmem:[%s3 + $0x50] sm:$0xff]
    %v607 = vld [vmem:[%s3 + $0x58] sm:$0xff]
    %v608 = vld [vmem:[%s3 + $0x60] sm:$0xff]
    %v609 = vld [vmem:[%s3 + $0x68] sm:$0xff]
    %v610 = vld [vmem:[%s3 + $0x70] sm:$0xff]
    %v611 = vld [vmem:[%s3 + $0x78] sm:$0xff]
    %v612 = vld [vmem:[%s3 + $0x80] sm:$0xff]
    %v613 = vld [vmem:[%s3 + $0x88] sm:$0xff]
    %v614 = vld [vmem:[%s3 + $0x90] sm:$0xff]
    %v615 = vld [vmem:[%s3 + $0x98] sm:$0xff]
    %v616 = vld [vmem:[%s3 + $0xa0] sm:$0xff]
    %v617 = vld [vmem:[%s3 + $0xa8] sm:$0xff]
    %v618 = vld [vmem:[%s3 + $0xb0] sm:$0xff]
    %v619 = vld [vmem:[%s3 + $0xb8] sm:$0xff]
    %v620 = vld [vmem:[%s3 + $0xc0] sm:$0xff]
    %v621 = vld [vmem:[%s3 + $0xc8] sm:$0xff]
    %v622 = vld [vmem:[%s3 + $0xd0] sm:$0xff]
    %v623 = vld [vmem:[%s3 + $0xd8] sm:$0xff]
    %v624 = vld [vmem:[%s3 + $0xe0] sm:$0xff]
    %v625 = vld [vmem:[%s3 + $0xe8] sm:$0xff]
    %v626 = vld [vmem:[%s3 + $0xf0] sm:$0xff]
    %v627 = vld [vmem:[%s3 + $0xf8] sm:$0xff]
    %v628 = vld [vmem:[%s3 + $0x100] sm:$0xff]
    %v629 = vld [vmem:[%s3 + $0x108] sm:$0xff]
    %v630 = vld [vmem:[%s3 + $0x110] sm:$0xff]
    %v631 = vld [vmem:[%s3 + $0x118] sm:$0xff]
    %v632 = vadd.f32 %v560, %v596
    %v633 = vadd.f32 %v561, %v597
    %v634 = vadd.f32 %v562, %v598
    %v635 = vadd.f32 %v563, %v599
    %v636 = vadd.f32 %v564, %v600
    %v637 = vadd.f32 %v565, %v601
    %v638 = vadd.f32 %v566, %v602
    %v639 = vadd.f32 %v567, %v603
    %v640 = vadd.f32 %v568, %v604
    %v641 = vadd.f32 %v569, %v605
    %v642 = vadd.f32 %v570, %v606
    %v643 = vadd.f32 %v571, %v607
    %v644 = vadd.f32 %v572, %v608
    %v645 = vadd.f32 %v573, %v609
    %v646 = vadd.f32 %v574, %v610
    %v647 = vadd.f32 %v575, %v611
    %v648 = vadd.f32 %v576, %v612
    %v649 = vadd.f32 %v577, %v613
    %v650 = vadd.f32 %v578, %v614
    %v651 = vadd.f32 %v579, %v615
    %v652 = vadd.f32 %v580, %v616
    %v653 = vadd.f32 %v581, %v617
    %v654 = vadd.f32 %v582, %v618
    %v655 = vadd.f32 %v583, %v619
    %v656 = vadd.f32 %v584, %v620
    %v657 = vadd.f32 %v585, %v621
    %v658 = vadd.f32 %v586, %v622
    %v659 = vadd.f32 %v587, %v623
    %v660 = vadd.f32 %v588, %v624
    %v661 = vadd.f32 %v589, %v625
    %v662 = vadd.f32 %v590, %v626
    %v663 = vadd.f32 %v591, %v627
    %v664 = vadd.f32 %v592, %v628
    %v665 = vadd.f32 %v593, %v629
    %v666 = vadd.f32 %v594, %v630
    %v667 = vadd.f32 %v595, %v631
    %668 = vst [vmem:[%s4] sm:$0xff] %v632
    %669 = vst [vmem:[%s4 + $0x8] sm:$0xff] %v633
    %670 = vst [vmem:[%s4 + $0x10] sm:$0xff] %v634
    %671 = vst [vmem:[%s4 + $0x18] sm:$0xff] %v635
    %672 = vst [vmem:[%s4 + $0x20] sm:$0xff] %v636
    %673 = vst [vmem:[%s4 + $0x28] sm:$0xff] %v637
    %674 = vst [vmem:[%s4 + $0x30] sm:$0xff] %v638
    %675 = vst [vmem:[%s4 + $0x38] sm:$0xff] %v639
    %676 = vst [vmem:[%s4 + $0x40] sm:$0xff] %v640
    %677 = vst [vmem:[%s4 + $0x48] sm:$0xff] %v641
    %678 = vst [vmem:[%s4 + $0x50] sm:$0xff] %v642
    %679 = vst [vmem:[%s4 + $0x58] sm:$0xff] %v643
    %680 = vst [vmem:[%s4 + $0x60] sm:$0xff] %v644
    %681 = vst [vmem:[%s4 + $0x68] sm:$0xff] %v645
    %682 = vst [vmem:[%s4 + $0x70] sm:$0xff] %v646
    %683 = vst [vmem:[%s4 + $0x78] sm:$0xff] %v647
    %684 = vst [vmem:[%s4 + $0x80] sm:$0xff] %v648
    %685 = vst [vmem:[%s4 + $0x88] sm:$0xff] %v649
    %686 = vst [vmem:[%s4 + $0x90] sm:$0xff] %v650
    %687 = vst [vmem:[%s4 + $0x98] sm:$0xff] %v651
    %688 = vst [vmem:[%s4 + $0xa0] sm:$0xff] %v652
    %689 = vst [vmem:[%s4 + $0xa8] sm:$0xff] %v653
    %690 = vst [vmem:[%s4 + $0xb0] sm:$0xff] %v654
    %691 = vst [vmem:[%s4 + $0xb8] sm:$0xff] %v655
    %692 = vst [vmem:[%s4 + $0xc0] sm:$0xff] %v656
    %693 = vst [vmem:[%s4 + $0xc8] sm:$0xff] %v657
    %694 = vst [vmem:[%s4 + $0xd0] sm:$0xff] %v658
    %695 = vst [vmem:[%s4 + $0xd8] sm:$0xff] %v659
    %696 = vst [vmem:[%s4 + $0xe0] sm:$0xff] %v660
    %697 = vst [vmem:[%s4 + $0xe8] sm:$0xff] %v661
    %698 = vst [vmem:[%s4 + $0xf0] sm:$0xff] %v662
    %699 = vst [vmem:[%s4 + $0xf8] sm:$0xff] %v663
    %700 = vst [vmem:[%s4 + $0x100] sm:$0xff] %v664
    %701 = vst [vmem:[%s4 + $0x108] sm:$0xff] %v665
    %702 = vst [vmem:[%s4 + $0x110] sm:$0xff] %v666
    %703 = vst [vmem:[%s4 + $0x118] sm:$0xff] %v667
  $region25: #{_lambda_.14} parent=0 // pred_fallthru
    _
  // Predicated region
  $region26: #{_lambda_.14} parent=0 // pred_check
    _
  $region27: #{_lambda_.14} parent=0 // pred_check_branch
    %705 = sbr.rel (0) target = $region29
  $region28: #{_lambda_.14} parent=0 // pred_region
    _
  $region29: #{_lambda_.14} parent=0 // pred_fallthru
    _
  // Predicated region
  $region30: #{_lambda_.14} parent=0 // pred_check
    _
  $region31: #{_lambda_.14} parent=0 // pred_check_branch
    %707 = sbr.rel (0) target = $region33
  $region32: #{_lambda_.14} parent=0 // pred_region
    _
  $region33: #{_lambda_.14} parent=0 // pred_fallthru
    _

// kernel: _lambda_.17
$region0: #{_lambda_.17}
  #allocation0 [shape = 'u32[]', space=smem, size = 0x4, offset = 0x4, fixed_abs, tag = 'smem constant byte address 0x4 - core index']
  #allocation1 [shape = 'u32[144,128]{1,0:T(1,128)}', space=vmem, size = 0x12000, scoped, tag = 'internal scratch']
  #allocation2 [shape = 'f32[288,128]{1,0:T(8,128)}', space=vmem, size = 0x24000, scoped, tag = 'scratch operand']
  %s0 = inlined_call_operand.vmem [shape: f32[288,256], index: 0, kind: input, shape index: {}]
  %s1 = inlined_call_operand.vmem [shape: f32[256,128], index: 1, kind: input, shape index: {}]
  %s2 = inlined_call_operand.vmem [shape: f32[1,128], index: 2, kind: input, shape index: {}]
  %s3 = inlined_call_operand.vmem [shape: f32[1,128], index: 3, kind: input, shape index: {}]
  %s4 = inlined_call_operand.vmem [shape: f32[1,128], index: 4, kind: input, shape index: {}]
  %s5 = inlined_call_operand.vmem [shape: f32[288,128], index: 5, kind: input, shape index: {}]
  %s6 = inlined_call_operand.vmem [shape: f32[288,128], index: 6, kind: output, shape index: {}]
  %s7 = sld [smem:[#allocation0]]
  $region42: #{_lambda_.17} parent=0
    _
  %s9 = ssub.s32 1, %s7
  %s10 = scalar_select 0, %s9, %s7
  // Predicated region
  $region2: #{_lambda_.17} parent=0 // pred_check
    _
  $region3: #{_lambda_.17} parent=0 // pred_check_branch
    %12 = sbr.rel (0) target = $region5
  $region4: #{_lambda_.17} parent=0 // pred_region
    _
  $region5: #{_lambda_.17} parent=0 // pred_fallthru
    _
  // Predicated region
  $region6: #{_lambda_.17} parent=0 // pred_check
    _
  $region7: #{_lambda_.17} parent=0 // pred_check_branch
    %14 = sbr.rel (0) target = $region9
  $region8: #{_lambda_.17} parent=0 // pred_region
    _
  $region9: #{_lambda_.17} parent=0 // pred_fallthru
    _
  // Predicated region
  $region10: #{_lambda_.17} parent=0 // pred_check
    _
  $region11: #{_lambda_.17} parent=0 // pred_check_branch
    %16 = sbr.rel (0) target = $region13
  $region12: #{_lambda_.17} parent=0 // pred_region
    _
  $region13: #{_lambda_.17} parent=0 // pred_fallthru
    _
  // Predicated region
  $region14: #{_lambda_.17} parent=0 // pred_check
    _
  $region15: #{_lambda_.17} parent=0 // pred_check_branch
    %18 = sbr.rel (0) target = $region17
  $region16: #{_lambda_.17} parent=0 // pred_region
    _
  $region17: #{_lambda_.17} parent=0 // pred_fallthru
    _
  // Predicated region
  $region18: #{_lambda_.17} parent=0 // pred_check
    _
  $region19: #{_lambda_.17} parent=0 // pred_check_branch
    %20 = sbr.rel (0) target = $region21
  $region20: #{_lambda_.17} parent=0 // pred_region
    _
  $region21: #{_lambda_.17} parent=0 // pred_fallthru
    _
  // Predicated region
  $region22: #{_lambda_.17} parent=0 // pred_check
    _
  $region23: #{_lambda_.17} parent=0 // pred_check_branch
    %22 = sbr.rel (0) target = $region25
  $region24: #{_lambda_.17} parent=0 // pred_region
    _
  $region25: #{_lambda_.17} parent=0 // pred_fallthru
    _
  %p23 = scmp.eq.s32.totalorder 0, 0
  // Predicated region
  $region26: #{_lambda_.17} parent=0 // pred_check
    %p24 = pneg %p23
  $region27: #{_lambda_.17} parent=0 // pred_check_branch
    %26 = sbr.rel (%p24) target = $region29
  $region28: #{_lambda_.17} parent=0 // pred_region
    %27 = vst [vmem:[#allocation2] sm:$0xff] 0.0
    %28 = vst [vmem:[#allocation2 + $0x8] sm:$0xff] 0.0
    %29 = vst [vmem:[#allocation2 + $0x10] sm:$0xff] 0.0
    %30 = vst [vmem:[#allocation2 + $0x18] sm:$0xff] 0.0
    %31 = vst [vmem:[#allocation2 + $0x20] sm:$0xff] 0.0
    %32 = vst [vmem:[#allocation2 + $0x28] sm:$0xff] 0.0
    %33 = vst [vmem:[#allocation2 + $0x30] sm:$0xff] 0.0
    %34 = vst [vmem:[#allocation2 + $0x38] sm:$0xff] 0.0
    %35 = vst [vmem:[#allocation2 + $0x40] sm:$0xff] 0.0
    %36 = vst [vmem:[#allocation2 + $0x48] sm:$0xff] 0.0
    %37 = vst [vmem:[#allocation2 + $0x50] sm:$0xff] 0.0
    %38 = vst [vmem:[#allocation2 + $0x58] sm:$0xff] 0.0
    %39 = vst [vmem:[#allocation2 + $0x60] sm:$0xff] 0.0
    %40 = vst [vmem:[#allocation2 + $0x68] sm:$0xff] 0.0
    %41 = vst [vmem:[#allocation2 + $0x70] sm:$0xff] 0.0
    %42 = vst [vmem:[#allocation2 + $0x78] sm:$0xff] 0.0
    %43 = vst [vmem:[#allocation2 + $0x80] sm:$0xff] 0.0
    %44 = vst [vmem:[#allocation2 + $0x88] sm:$0xff] 0.0
    %45 = vst [vmem:[#allocation2 + $0x90] sm:$0xff] 0.0
    %46 = vst [vmem:[#allocation2 + $0x98] sm:$0xff] 0.0
    %47 = vst [vmem:[#allocation2 + $0xa0] sm:$0xff] 0.0
    %48 = vst [vmem:[#allocation2 + $0xa8] sm:$0xff] 0.0
    %49 = vst [vmem:[#allocation2 + $0xb0] sm:$0xff] 0.0
    %50 = vst [vmem:[#allocation2 + $0xb8] sm:$0xff] 0.0
    %51 = vst [vmem:[#allocation2 + $0xc0] sm:$0xff] 0.0
    %52 = vst [vmem:[#allocation2 + $0xc8] sm:$0xff] 0.0
    %53 = vst [vmem:[#allocation2 + $0xd0] sm:$0xff] 0.0
    %54 = vst [vmem:[#allocation2 + $0xd8] sm:$0xff] 0.0
    %55 = vst [vmem:[#allocation2 + $0xe0] sm:$0xff] 0.0
    %56 = vst [vmem:[#allocation2 + $0xe8] sm:$0xff] 0.0
    %57 = vst [vmem:[#allocation2 + $0xf0] sm:$0xff] 0.0
    %58 = vst [vmem:[#allocation2 + $0xf8] sm:$0xff] 0.0
    %59 = vst [vmem:[#allocation2 + $0x100] sm:$0xff] 0.0
    %60 = vst [vmem:[#allocation2 + $0x108] sm:$0xff] 0.0
    %61 = vst [vmem:[#allocation2 + $0x110] sm:$0xff] 0.0
    %62 = vst [vmem:[#allocation2 + $0x118] sm:$0xff] 0.0
  $region29: #{_lambda_.17} parent=0 // pred_fallthru
    _
  %v63 = vld [vmem:[%s0] sm:$0xff]
  %v64 = vld [vmem:[%s0 + $0x8] sm:$0xff]
  %v65 = vld [vmem:[%s0 + $0x10] sm:$0xff]
  %v66 = vld [vmem:[%s0 + $0x18] sm:$0xff]
  %v67 = vld [vmem:[%s0 + $0x20] sm:$0xff]
  %v68 = vld [vmem:[%s0 + $0x28] sm:$0xff]
  %v69 = vld [vmem:[%s0 + $0x30] sm:$0xff]
  %v70 = vld [vmem:[%s0 + $0x38] sm:$0xff]
  %v71 = vld [vmem:[%s0 + $0x40] sm:$0xff]
  %v72 = vld [vmem:[%s0 + $0x48] sm:$0xff]
  %v73 = vld [vmem:[%s0 + $0x50] sm:$0xff]
  %v74 = vld [vmem:[%s0 + $0x58] sm:$0xff]
  %v75 = vld [vmem:[%s0 + $0x60] sm:$0xff]
  %v76 = vld [vmem:[%s0 + $0x68] sm:$0xff]
  %v77 = vld [vmem:[%s0 + $0x70] sm:$0xff]
  %v78 = vld [vmem:[%s0 + $0x78] sm:$0xff]
  %v79 = vld [vmem:[%s0 + $0x80] sm:$0xff]
  %v80 = vld [vmem:[%s0 + $0x88] sm:$0xff]
  %v81 = vld [vmem:[%s0 + $0x90] sm:$0xff]
  %v82 = vld [vmem:[%s0 + $0x98] sm:$0xff]
  %v83 = vld [vmem:[%s0 + $0xa0] sm:$0xff]
  %v84 = vld [vmem:[%s0 + $0xa8] sm:$0xff]
  %v85 = vld [vmem:[%s0 + $0xb0] sm:$0xff]
  %v86 = vld [vmem:[%s0 + $0xb8] sm:$0xff]
  %v87 = vld [vmem:[%s0 + $0xc0] sm:$0xff]
  %v88 = vld [vmem:[%s0 + $0xc8] sm:$0xff]
  %v89 = vld [vmem:[%s0 + $0xd0] sm:$0xff]
  %v90 = vld [vmem:[%s0 + $0xd8] sm:$0xff]
  %v91 = vld [vmem:[%s0 + $0xe0] sm:$0xff]
  %v92 = vld [vmem:[%s0 + $0xe8] sm:$0xff]
  %v93 = vld [vmem:[%s0 + $0xf0] sm:$0xff]
  %v94 = vld [vmem:[%s0 + $0xf8] sm:$0xff]
  %v95 = vld [vmem:[%s0 + $0x100] sm:$0xff]
  %v96 = vld [vmem:[%s0 + $0x108] sm:$0xff]
  %v97 = vld [vmem:[%s0 + $0x110] sm:$0xff]
  %v98 = vld [vmem:[%s0 + $0x118] sm:$0xff]
  %v99 = vld [vmem:[%s0 + $0x120] sm:$0xff]
  %v100 = vld [vmem:[%s0 + $0x128] sm:$0xff]
  %v101 = vld [vmem:[%s0 + $0x130] sm:$0xff]
  %v102 = vld [vmem:[%s0 + $0x138] sm:$0xff]
  %v103 = vld [vmem:[%s0 + $0x140] sm:$0xff]
  %v104 = vld [vmem:[%s0 + $0x148] sm:$0xff]
  %v105 = vld [vmem:[%s0 + $0x150] sm:$0xff]
  %v106 = vld [vmem:[%s0 + $0x158] sm:$0xff]
  %v107 = vld [vmem:[%s0 + $0x160] sm:$0xff]
  %v108 = vld [vmem:[%s0 + $0x168] sm:$0xff]
  %v109 = vld [vmem:[%s0 + $0x170] sm:$0xff]
  %v110 = vld [vmem:[%s0 + $0x178] sm:$0xff]
  %v111 = vld [vmem:[%s0 + $0x180] sm:$0xff]
  %v112 = vld [vmem:[%s0 + $0x188] sm:$0xff]
  %v113 = vld [vmem:[%s0 + $0x190] sm:$0xff]
  %v114 = vld [vmem:[%s0 + $0x198] sm:$0xff]
  %v115 = vld [vmem:[%s0 + $0x1a0] sm:$0xff]
  %v116 = vld [vmem:[%s0 + $0x1a8] sm:$0xff]
  %v117 = vld [vmem:[%s0 + $0x1b0] sm:$0xff]
  %v118 = vld [vmem:[%s0 + $0x1b8] sm:$0xff]
  %v119 = vld [vmem:[%s0 + $0x1c0] sm:$0xff]
  %v120 = vld [vmem:[%s0 + $0x1c8] sm:$0xff]
  %v121 = vld [vmem:[%s0 + $0x1d0] sm:$0xff]
  %v122 = vld [vmem:[%s0 + $0x1d8] sm:$0xff]
  %v123 = vld [vmem:[%s0 + $0x1e0] sm:$0xff]
  %v124 = vld [vmem:[%s0 + $0x1e8] sm:$0xff]
  %v125 = vld [vmem:[%s0 + $0x1f0] sm:$0xff]
  %v126 = vld [vmem:[%s0 + $0x1f8] sm:$0xff]
  %v127 = vld [vmem:[%s0 + $0x200] sm:$0xff]
  %v128 = vld [vmem:[%s0 + $0x208] sm:$0xff]
  %v129 = vld [vmem:[%s0 + $0x210] sm:$0xff]
  %v130 = vld [vmem:[%s0 + $0x218] sm:$0xff]
  %v131 = vld [vmem:[%s0 + $0x220] sm:$0xff]
  %v132 = vld [vmem:[%s0 + $0x228] sm:$0xff]
  %v133 = vld [vmem:[%s0 + $0x230] sm:$0xff]
  %v134 = vld [vmem:[%s0 + $0x238] sm:$0xff]
  %v135 = vld [vmem:[#allocation2] sm:$0xff]
  %v136 = vld [vmem:[#allocation2 + $0x8] sm:$0xff]
  %v137 = vld [vmem:[#allocation2 + $0x10] sm:$0xff]
  %v138 = vld [vmem:[#allocation2 + $0x18] sm:$0xff]
  %v139 = vld [vmem:[#allocation2 + $0x20] sm:$0xff]
  %v140 = vld [vmem:[#allocation2 + $0x28] sm:$0xff]
  %v141 = vld [vmem:[#allocation2 + $0x30] sm:$0xff]
  %v142 = vld [vmem:[#allocation2 + $0x38] sm:$0xff]
  %v143 = vld [vmem:[#allocation2 + $0x40] sm:$0xff]
  %v144 = vld [vmem:[#allocation2 + $0x48] sm:$0xff]
  %v145 = vld [vmem:[#allocation2 + $0x50] sm:$0xff]
  %v146 = vld [vmem:[#allocation2 + $0x58] sm:$0xff]
  %v147 = vld [vmem:[#allocation2 + $0x60] sm:$0xff]
  %v148 = vld [vmem:[#allocation2 + $0x68] sm:$0xff]
  %v149 = vld [vmem:[#allocation2 + $0x70] sm:$0xff]
  %v150 = vld [vmem:[#allocation2 + $0x78] sm:$0xff]
  %v151 = vld [vmem:[#allocation2 + $0x80] sm:$0xff]
  %v152 = vld [vmem:[#allocation2 + $0x88] sm:$0xff]
  %v153 = vld [vmem:[#allocation2 + $0x90] sm:$0xff]
  %v154 = vld [vmem:[#allocation2 + $0x98] sm:$0xff]
  %v155 = vld [vmem:[#allocation2 + $0xa0] sm:$0xff]
  %v156 = vld [vmem:[#allocation2 + $0xa8] sm:$0xff]
  %v157 = vld [vmem:[#allocation2 + $0xb0] sm:$0xff]
  %v158 = vld [vmem:[#allocation2 + $0xb8] sm:$0xff]
  %v159 = vld [vmem:[#allocation2 + $0xc0] sm:$0xff]
  %v160 = vld [vmem:[#allocation2 + $0xc8] sm:$0xff]
  %v161 = vld [vmem:[#allocation2 + $0xd0] sm:$0xff]
  %v162 = vld [vmem:[#allocation2 + $0xd8] sm:$0xff]
  %v163 = vld [vmem:[#allocation2 + $0xe0] sm:$0xff]
  %v164 = vld [vmem:[#allocation2 + $0xe8] sm:$0xff]
  %v165 = vld [vmem:[#allocation2 + $0xf0] sm:$0xff]
  %v166 = vld [vmem:[#allocation2 + $0xf8] sm:$0xff]
  %v167 = vld [vmem:[#allocation2 + $0x100] sm:$0xff]
  %v168 = vld [vmem:[#allocation2 + $0x108] sm:$0xff]
  %v169 = vld [vmem:[#allocation2 + $0x110] sm:$0xff]
  %v170 = vld [vmem:[#allocation2 + $0x118] sm:$0xff]
  %v171 = vld [vmem:[%s1] sm:$0xff]
  %v172 = vld [vmem:[%s1 + $0x8] sm:$0xff]
  %v173 = vld [vmem:[%s1 + $0x10] sm:$0xff]
  %v174 = vld [vmem:[%s1 + $0x18] sm:$0xff]
  %v175 = vld [vmem:[%s1 + $0x20] sm:$0xff]
  %v176 = vld [vmem:[%s1 + $0x28] sm:$0xff]
  %v177 = vld [vmem:[%s1 + $0x30] sm:$0xff]
  %v178 = vld [vmem:[%s1 + $0x38] sm:$0xff]
  %v179 = vld [vmem:[%s1 + $0x40] sm:$0xff]
  %v180 = vld [vmem:[%s1 + $0x48] sm:$0xff]
  %v181 = vld [vmem:[%s1 + $0x50] sm:$0xff]
  %v182 = vld [vmem:[%s1 + $0x58] sm:$0xff]
  %v183 = vld [vmem:[%s1 + $0x60] sm:$0xff]
  %v184 = vld [vmem:[%s1 + $0x68] sm:$0xff]
  %v185 = vld [vmem:[%s1 + $0x70] sm:$0xff]
  %v186 = vld [vmem:[%s1 + $0x78] sm:$0xff]
  %v187 = vld [vmem:[%s1 + $0x80] sm:$0xff]
  %v188 = vld [vmem:[%s1 + $0x88] sm:$0xff]
  %v189 = vld [vmem:[%s1 + $0x90] sm:$0xff]
  %v190 = vld [vmem:[%s1 + $0x98] sm:$0xff]
  %v191 = vld [vmem:[%s1 + $0xa0] sm:$0xff]
  %v192 = vld [vmem:[%s1 + $0xa8] sm:$0xff]
  %v193 = vld [vmem:[%s1 + $0xb0] sm:$0xff]
  %v194 = vld [vmem:[%s1 + $0xb8] sm:$0xff]
  %v195 = vld [vmem:[%s1 + $0xc0] sm:$0xff]
  %v196 = vld [vmem:[%s1 + $0xc8] sm:$0xff]
  %v197 = vld [vmem:[%s1 + $0xd0] sm:$0xff]
  %v198 = vld [vmem:[%s1 + $0xd8] sm:$0xff]
  %v199 = vld [vmem:[%s1 + $0xe0] sm:$0xff]
  %v200 = vld [vmem:[%s1 + $0xe8] sm:$0xff]
  %v201 = vld [vmem:[%s1 + $0xf0] sm:$0xff]
  %v202 = vld [vmem:[%s1 + $0xf8] sm:$0xff]
  %203 = vmatprep.subr.mxu0 0.0
  %204 = vmatpush1.msra.mxu0 %v186
  %205 = vmatprep.subr.mxu0 0.0
  %206 = vmatpush1.msra.mxu0 %v185
  %207 = vmatprep.subr.mxu0 0.0
  %208 = vmatpush1.msra.mxu0 %v184
  %209 = vmatprep.subr.mxu0 0.0
  %210 = vmatpush1.msra.mxu0 %v183
  %211 = vmatprep.subr.mxu0 0.0
  %212 = vmatpush1.msra.mxu0 %v182
  %213 = vmatprep.subr.mxu0 0.0
  %214 = vmatpush1.msra.mxu0 %v181
  %215 = vmatprep.subr.mxu0 0.0
  %216 = vmatpush1.msra.mxu0 %v180
  %217 = vmatprep.subr.mxu0 0.0
  %218 = vmatpush1.msra.mxu0 %v179
  %219 = vmatprep.subr.mxu0 0.0
  %220 = vmatpush1.msra.mxu0 %v178
  %221 = vmatprep.subr.mxu0 0.0
  %222 = vmatpush1.msra.mxu0 %v177
  %223 = vmatprep.subr.mxu0 0.0
  %224 = vmatpush1.msra.mxu0 %v176
  %225 = vmatprep.subr.mxu0 0.0
  %226 = vmatpush1.msra.mxu0 %v175
  %227 = vmatprep.subr.mxu0 0.0
  %228 = vmatpush1.msra.mxu0 %v174
  %229 = vmatprep.subr.mxu0 0.0
  %230 = vmatpush1.msra.mxu0 %v173
  %231 = vmatprep.subr.mxu0 0.0
  %232 = vmatpush1.msra.mxu0 %v172
  %233 = vmatprep.subr.mxu0 0.0
  %234 = vmatpush1.msra.mxu0 %v171
  %235 = vmatprep.subr.mxu0 0.0
  %236 = vmatpush2.msra.mxu0 %v202
  %237 = vmatprep.subr.mxu0 0.0
  %238 = vmatpush2.msra.mxu0 %v201
  %239 = vmatprep.subr.mxu0 0.0
  %240 = vmatpush2.msra.mxu0 %v200
  %241 = vmatprep.subr.mxu0 0.0
  %242 = vmatpush2.msra.mxu0 %v199
  %243 = vmatprep.subr.mxu0 0.0
  %244 = vmatpush2.msra.mxu0 %v198
  %245 = vmatprep.subr.mxu0 0.0
  %246 = vmatpush2.msra.mxu0 %v197
  %247 = vmatprep.subr.mxu0 0.0
  %248 = vmatpush2.msra.mxu0 %v196
  %249 = vmatprep.subr.mxu0 0.0
  %250 = vmatpush2.msra.mxu0 %v195
  %251 = vmatprep.subr.mxu0 0.0
  %252 = vmatpush2.msra.mxu0 %v194
  %253 = vmatprep.subr.mxu0 0.0
  %254 = vmatpush2.msra.mxu0 %v193
  %255 = vmatprep.subr.mxu0 0.0
  %256 = vmatpush2.msra.mxu0 %v192
  %257 = vmatprep.subr.mxu0 0.0
  %258 = vmatpush2.msra.mxu0 %v191
  %259 = vmatprep.subr.mxu0 0.0
  %260 = vmatpush2.msra.mxu0 %v190
  %261 = vmatprep.subr.mxu0 0.0
  %262 = vmatpush2.msra.mxu0 %v189
  %263 = vmatprep.subr.mxu0 0.0
  %264 = vmatpush2.msra.mxu0 %v188
  %265 = vmatprep.subr.mxu0 0.0
  %266 = vmatpush2.msra.mxu0 %v187
  %267 = vmatprep.mubr.f32.mxu0 %v64
  %268 = vmatmul.mubr.f32.gmra.mxu0 %v63
  %v269 = vpop.f32.mrf.mxu0
  %v270 = vadd.f32 0.0, %v269
  %v271 = vpop.f32.mrf.mxu0
  %272 = vmatprep.mubr.f32.mxu0 %v66
  %273 = vmatmul.mubr.f32.gmra.mxu0 %v65
  %v274 = vpop.f32.mrf.mxu0
  %v275 = vadd.f32 0.0, %v274
  %v276 = vpop.f32.mrf.mxu0
  %277 = vmatprep.mubr.f32.mxu0 %v68
  %278 = vmatmul.mubr.f32.gmra.mxu0 %v67
  %v279 = vpop.f32.mrf.mxu0
  %v280 = vadd.f32 0.0, %v279
  %v281 = vpop.f32.mrf.mxu0
  %282 = vmatprep.mubr.f32.mxu0 %v70
  %283 = vmatmul.mubr.f32.gmra.mxu0 %v69
  %v284 = vpop.f32.mrf.mxu0
  %v285 = vadd.f32 0.0, %v284
  %v286 = vpop.f32.mrf.mxu0
  %287 = vmatprep.mubr.f32.mxu0 %v72
  %288 = vmatmul.mubr.f32.gmra.mxu0 %v71
  %v289 = vpop.f32.mrf.mxu0
  %v290 = vadd.f32 0.0, %v289
  %v291 = vpop.f32.mrf.mxu0
  %292 = vmatprep.mubr.f32.mxu0 %v74
  %293 = vmatmul.mubr.f32.gmra.mxu0 %v73
  %v294 = vpop.f32.mrf.mxu0
  %v295 = vadd.f32 0.0, %v294
  %v296 = vpop.f32.mrf.mxu0
  %297 = vmatprep.mubr.f32.mxu0 %v76
  %298 = vmatmul.mubr.f32.gmra.mxu0 %v75
  %v299 = vpop.f32.mrf.mxu0
  %v300 = vadd.f32 0.0, %v299
  %v301 = vpop.f32.mrf.mxu0
  %302 = vmatprep.mubr.f32.mxu0 %v78
  %303 = vmatmul.mubr.f32.gmra.mxu0 %v77
  %v304 = vpop.f32.mrf.mxu0
  %v305 = vadd.f32 0.0, %v304
  %v306 = vpop.f32.mrf.mxu0
  %307 = vmatprep.mubr.f32.mxu0 %v80
  %308 = vmatmul.mubr.f32.gmra.mxu0 %v79
  %v309 = vpop.f32.mrf.mxu0
  %v310 = vadd.f32 0.0, %v309
  %v311 = vpop.f32.mrf.mxu0
  %312 = vmatprep.mubr.f32.mxu0 %v82
  %313 = vmatmul.mubr.f32.gmra.mxu0 %v81
  %v314 = vpop.f32.mrf.mxu0
  %v315 = vadd.f32 0.0, %v314
  %v316 = vpop.f32.mrf.mxu0
  %317 = vmatprep.mubr.f32.mxu0 %v84
  %318 = vmatmul.mubr.f32.gmra.mxu0 %v83
  %v319 = vpop.f32.mrf.mxu0
  %v320 = vadd.f32 0.0, %v319
  %v321 = vpop.f32.mrf.mxu0
  %322 = vmatprep.mubr.f32.mxu0 %v86
  %323 = vmatmul.mubr.f32.gmra.mxu0 %v85
  %v324 = vpop.f32.mrf.mxu0
  %v325 = vadd.f32 0.0, %v324
  %v326 = vpop.f32.mrf.mxu0
  %327 = vmatprep.mubr.f32.mxu0 %v88
  %328 = vmatmul.mubr.f32.gmra.mxu0 %v87
  %v329 = vpop.f32.mrf.mxu0
  %v330 = vadd.f32 0.0, %v329
  %v331 = vpop.f32.mrf.mxu0
  %332 = vmatprep.mubr.f32.mxu0 %v90
  %333 = vmatmul.mubr.f32.gmra.mxu0 %v89
  %v334 = vpop.f32.mrf.mxu0
  %v335 = vadd.f32 0.0, %v334
  %v336 = vpop.f32.mrf.mxu0
  %337 = vmatprep.mubr.f32.mxu0 %v92
  %338 = vmatmul.mubr.f32.gmra.mxu0 %v91
  %v339 = vpop.f32.mrf.mxu0
  %v340 = vadd.f32 0.0, %v339
  %v341 = vpop.f32.mrf.mxu0
  %342 = vmatprep.mubr.f32.mxu0 %v94
  %343 = vmatmul.mubr.f32.gmra.mxu0 %v93
  %v344 = vpop.f32.mrf.mxu0
  %v345 = vadd.f32 0.0, %v344
  %v346 = vpop.f32.mrf.mxu0
  %347 = vmatprep.mubr.f32.mxu0 %v96
  %348 = vmatmul.mubr.f32.gmra.mxu0 %v95
  %v349 = vpop.f32.mrf.mxu0
  %v350 = vadd.f32 0.0, %v349
  %v351 = vpop.f32.mrf.mxu0
  %352 = vmatprep.mubr.f32.mxu0 %v98
  %353 = vmatmul.mubr.f32.gmra.mxu0 %v97
  %v354 = vpop.f32.mrf.mxu0
  %v355 = vadd.f32 0.0, %v354
  %v356 = vpop.f32.mrf.mxu0
  %357 = vmatprep.mubr.f32.mxu0 %v100
  %358 = vmatmul.mubr.f32.gmra.mxu0 %v99
  %v359 = vpop.f32.mrf.mxu0
  %v360 = vadd.f32 0.0, %v359
  %v361 = vpop.f32.mrf.mxu0
  %362 = vmatprep.mubr.f32.mxu0 %v102
  %363 = vmatmul.mubr.f32.gmra.mxu0 %v101
  %v364 = vpop.f32.mrf.mxu0
  %v365 = vadd.f32 0.0, %v364
  %v366 = vpop.f32.mrf.mxu0
  %367 = vmatprep.mubr.f32.mxu0 %v104
  %368 = vmatmul.mubr.f32.gmra.mxu0 %v103
  %v369 = vpop.f32.mrf.mxu0
  %v370 = vadd.f32 0.0, %v369
  %v371 = vpop.f32.mrf.mxu0
  %372 = vmatprep.mubr.f32.mxu0 %v106
  %373 = vmatmul.mubr.f32.gmra.mxu0 %v105
  %v374 = vpop.f32.mrf.mxu0
  %v375 = vadd.f32 0.0, %v374
  %v376 = vpop.f32.mrf.mxu0
  %377 = vmatprep.mubr.f32.mxu0 %v108
  %378 = vmatmul.mubr.f32.gmra.mxu0 %v107
  %v379 = vpop.f32.mrf.mxu0
  %v380 = vadd.f32 0.0, %v379
  %v381 = vpop.f32.mrf.mxu0
  %382 = vmatprep.mubr.f32.mxu0 %v110
  %383 = vmatmul.mubr.f32.gmra.mxu0 %v109
  %v384 = vpop.f32.mrf.mxu0
  %v385 = vadd.f32 0.0, %v384
  %v386 = vpop.f32.mrf.mxu0
  %387 = vmatprep.mubr.f32.mxu0 %v112
  %388 = vmatmul.mubr.f32.gmra.mxu0 %v111
  %v389 = vpop.f32.mrf.mxu0
  %v390 = vadd.f32 0.0, %v389
  %v391 = vpop.f32.mrf.mxu0
  %392 = vmatprep.mubr.f32.mxu0 %v114
  %393 = vmatmul.mubr.f32.gmra.mxu0 %v113
  %v394 = vpop.f32.mrf.mxu0
  %v395 = vadd.f32 0.0, %v394
  %v396 = vpop.f32.mrf.mxu0
  %397 = vmatprep.mubr.f32.mxu0 %v116
  %398 = vmatmul.mubr.f32.gmra.mxu0 %v115
  %v399 = vpop.f32.mrf.mxu0
  %v400 = vadd.f32 0.0, %v399
  %v401 = vpop.f32.mrf.mxu0
  %402 = vmatprep.mubr.f32.mxu0 %v118
  %403 = vmatmul.mubr.f32.gmra.mxu0 %v117
  %v404 = vpop.f32.mrf.mxu0
  %v405 = vadd.f32 0.0, %v404
  %v406 = vpop.f32.mrf.mxu0
  %407 = vmatprep.mubr.f32.mxu0 %v120
  %408 = vmatmul.mubr.f32.gmra.mxu0 %v119
  %v409 = vpop.f32.mrf.mxu0
  %v410 = vadd.f32 0.0, %v409
  %v411 = vpop.f32.mrf.mxu0
  %412 = vmatprep.mubr.f32.mxu0 %v122
  %413 = vmatmul.mubr.f32.gmra.mxu0 %v121
  %v414 = vpop.f32.mrf.mxu0
  %v415 = vadd.f32 0.0, %v414
  %v416 = vpop.f32.mrf.mxu0
  %417 = vmatprep.mubr.f32.mxu0 %v124
  %418 = vmatmul.mubr.f32.gmra.mxu0 %v123
  %v419 = vpop.f32.mrf.mxu0
  %v420 = vadd.f32 0.0, %v419
  %v421 = vpop.f32.mrf.mxu0
  %422 = vmatprep.mubr.f32.mxu0 %v126
  %423 = vmatmul.mubr.f32.gmra.mxu0 %v125
  %v424 = vpop.f32.mrf.mxu0
  %v425 = vadd.f32 0.0, %v424
  %v426 = vpop.f32.mrf.mxu0
  %427 = vmatprep.mubr.f32.mxu0 %v128
  %428 = vmatmul.mubr.f32.gmra.mxu0 %v127
  %v429 = vpop.f32.mrf.mxu0
  %v430 = vadd.f32 0.0, %v429
  %v431 = vpop.f32.mrf.mxu0
  %432 = vmatprep.mubr.f32.mxu0 %v130
  %433 = vmatmul.mubr.f32.gmra.mxu0 %v129
  %v434 = vpop.f32.mrf.mxu0
  %v435 = vadd.f32 0.0, %v434
  %v436 = vpop.f32.mrf.mxu0
  %437 = vmatprep.mubr.f32.mxu0 %v132
  %438 = vmatmul.mubr.f32.gmra.mxu0 %v131
  %v439 = vpop.f32.mrf.mxu0
  %v440 = vadd.f32 0.0, %v439
  %v441 = vpop.f32.mrf.mxu0
  %442 = vmatprep.mubr.f32.mxu0 %v134
  %443 = vmatmul.mubr.f32.gmra.mxu0 %v133
  %v444 = vpop.f32.mrf.mxu0
  %v445 = vadd.f32 0.0, %v444
  %v446 = vpop.f32.mrf.mxu0
  %447 = vdwg.mxu0
  %v448 = vadd.f32 %v135, %v270
  %v449 = vadd.f32 %v136, %v275
  %v450 = vadd.f32 %v137, %v280
  %v451 = vadd.f32 %v138, %v285
  %v452 = vadd.f32 %v139, %v290
  %v453 = vadd.f32 %v140, %v295
  %v454 = vadd.f32 %v141, %v300
  %v455 = vadd.f32 %v142, %v305
  %v456 = vadd.f32 %v143, %v310
  %v457 = vadd.f32 %v144, %v315
  %v458 = vadd.f32 %v145, %v320
  %v459 = vadd.f32 %v146, %v325
  %v460 = vadd.f32 %v147, %v330
  %v461 = vadd.f32 %v148, %v335
  %v462 = vadd.f32 %v149, %v340
  %v463 = vadd.f32 %v150, %v345
  %v464 = vadd.f32 %v151, %v350
  %v465 = vadd.f32 %v152, %v355
  %v466 = vadd.f32 %v153, %v360
  %v467 = vadd.f32 %v154, %v365
  %v468 = vadd.f32 %v155, %v370
  %v469 = vadd.f32 %v156, %v375
  %v470 = vadd.f32 %v157, %v380
  %v471 = vadd.f32 %v158, %v385
  %v472 = vadd.f32 %v159, %v390
  %v473 = vadd.f32 %v160, %v395
  %v474 = vadd.f32 %v161, %v400
  %v475 = vadd.f32 %v162, %v405
  %v476 = vadd.f32 %v163, %v410
  %v477 = vadd.f32 %v164, %v415
  %v478 = vadd.f32 %v165, %v420
  %v479 = vadd.f32 %v166, %v425
  %v480 = vadd.f32 %v167, %v430
  %v481 = vadd.f32 %v168, %v435
  %v482 = vadd.f32 %v169, %v440
  %v483 = vadd.f32 %v170, %v445
  %484 = vst [vmem:[#allocation2] sm:$0xff] %v448
  %485 = vst [vmem:[#allocation2 + $0x8] sm:$0xff] %v449
  %486 = vst [vmem:[#allocation2 + $0x10] sm:$0xff] %v450
  %487 = vst [vmem:[#allocation2 + $0x18] sm:$0xff] %v451
  %488 = vst [vmem:[#allocation2 + $0x20] sm:$0xff] %v452
  %489 = vst [vmem:[#allocation2 + $0x28] sm:$0xff] %v453
  %490 = vst [vmem:[#allocation2 + $0x30] sm:$0xff] %v454
  %491 = vst [vmem:[#allocation2 + $0x38] sm:$0xff] %v455
  %492 = vst [vmem:[#allocation2 + $0x40] sm:$0xff] %v456
  %493 = vst [vmem:[#allocation2 + $0x48] sm:$0xff] %v457
  %494 = vst [vmem:[#allocation2 + $0x50] sm:$0xff] %v458
  %495 = vst [vmem:[#allocation2 + $0x58] sm:$0xff] %v459
  %496 = vst [vmem:[#allocation2 + $0x60] sm:$0xff] %v460
  %497 = vst [vmem:[#allocation2 + $0x68] sm:$0xff] %v461
  %498 = vst [vmem:[#allocation2 + $0x70] sm:$0xff] %v462
  %499 = vst [vmem:[#allocation2 + $0x78] sm:$0xff] %v463
  %500 = vst [vmem:[#allocation2 + $0x80] sm:$0xff] %v464
  %501 = vst [vmem:[#allocation2 + $0x88] sm:$0xff] %v465
  %502 = vst [vmem:[#allocation2 + $0x90] sm:$0xff] %v466
  %503 = vst [vmem:[#allocation2 + $0x98] sm:$0xff] %v467
  %504 = vst [vmem:[#allocation2 + $0xa0] sm:$0xff] %v468
  %505 = vst [vmem:[#allocation2 + $0xa8] sm:$0xff] %v469
  %506 = vst [vmem:[#allocation2 + $0xb0] sm:$0xff] %v470
  %507 = vst [vmem:[#allocation2 + $0xb8] sm:$0xff] %v471
  %508 = vst [vmem:[#allocation2 + $0xc0] sm:$0xff] %v472
  %509 = vst [vmem:[#allocation2 + $0xc8] sm:$0xff] %v473
  %510 = vst [vmem:[#allocation2 + $0xd0] sm:$0xff] %v474
  %511 = vst [vmem:[#allocation2 + $0xd8] sm:$0xff] %v475
  %512 = vst [vmem:[#allocation2 + $0xe0] sm:$0xff] %v476
  %513 = vst [vmem:[#allocation2 + $0xe8] sm:$0xff] %v477
  %514 = vst [vmem:[#allocation2 + $0xf0] sm:$0xff] %v478
  %515 = vst [vmem:[#allocation2 + $0xf8] sm:$0xff] %v479
  %516 = vst [vmem:[#allocation2 + $0x100] sm:$0xff] %v480
  %517 = vst [vmem:[#allocation2 + $0x108] sm:$0xff] %v481
  %518 = vst [vmem:[#allocation2 + $0x110] sm:$0xff] %v482
  %519 = vst [vmem:[#allocation2 + $0x118] sm:$0xff] %v483
  // Predicated region
  $region30: #{_lambda_.17} parent=0 // pred_check
    %p520 = pneg %p23
  $region31: #{_lambda_.17} parent=0 // pred_check_branch
    %522 = sbr.rel (%p520) target = $region33
  $region32: #{_lambda_.17} parent=0 // pred_region
    %v523 = vld [vmem:[#allocation2] sm:$0xff]
    %v524 = vld [vmem:[#allocation2 + $0x8] sm:$0xff]
    %v525 = vld [vmem:[#allocation2 + $0x10] sm:$0xff]
    %v526 = vld [vmem:[#allocation2 + $0x18] sm:$0xff]
    %v527 = vld [vmem:[#allocation2 + $0x20] sm:$0xff]
    %v528 = vld [vmem:[#allocation2 + $0x28] sm:$0xff]
    %v529 = vld [vmem:[#allocation2 + $0x30] sm:$0xff]
    %v530 = vld [vmem:[#allocation2 + $0x38] sm:$0xff]
    %v531 = vld [vmem:[#allocation2 + $0x40] sm:$0xff]
    %v532 = vld [vmem:[#allocation2 + $0x48] sm:$0xff]
    %v533 = vld [vmem:[#allocation2 + $0x50] sm:$0xff]
    %v534 = vld [vmem:[#allocation2 + $0x58] sm:$0xff]
    %v535 = vld [vmem:[#allocation2 + $0x60] sm:$0xff]
    %v536 = vld [vmem:[#allocation2 + $0x68] sm:$0xff]
    %v537 = vld [vmem:[#allocation2 + $0x70] sm:$0xff]
    %v538 = vld [vmem:[#allocation2 + $0x78] sm:$0xff]
    %v539 = vld [vmem:[#allocation2 + $0x80] sm:$0xff]
    %v540 = vld [vmem:[#allocation2 + $0x88] sm:$0xff]
    %v541 = vld [vmem:[#allocation2 + $0x90] sm:$0xff]
    %v542 = vld [vmem:[#allocation2 + $0x98] sm:$0xff]
    %v543 = vld [vmem:[#allocation2 + $0xa0] sm:$0xff]
    %v544 = vld [vmem:[#allocation2 + $0xa8] sm:$0xff]
    %v545 = vld [vmem:[#allocation2 + $0xb0] sm:$0xff]
    %v546 = vld [vmem:[#allocation2 + $0xb8] sm:$0xff]
    %v547 = vld [vmem:[#allocation2 + $0xc0] sm:$0xff]
    %v548 = vld [vmem:[#allocation2 + $0xc8] sm:$0xff]
    %v549 = vld [vmem:[#allocation2 + $0xd0] sm:$0xff]
    %v550 = vld [vmem:[#allocation2 + $0xd8] sm:$0xff]
    %v551 = vld [vmem:[#allocation2 + $0xe0] sm:$0xff]
    %v552 = vld [vmem:[#allocation2 + $0xe8] sm:$0xff]
    %v553 = vld [vmem:[#allocation2 + $0xf0] sm:$0xff]
    %v554 = vld [vmem:[#allocation2 + $0xf8] sm:$0xff]
    %v555 = vld [vmem:[#allocation2 + $0x100] sm:$0xff]
    %v556 = vld [vmem:[#allocation2 + $0x108] sm:$0xff]
    %v557 = vld [vmem:[#allocation2 + $0x110] sm:$0xff]
    %v558 = vld [vmem:[#allocation2 + $0x118] sm:$0xff]
    %v559 = vld [vmem:[%s2] sm:$0x1]
    %v561 = vlaneseq
    %v562 = vshrl.u32 %v561, 7
    %v563 = vsub.s32 0, %v562
    %v564 = vrot.slane %v559, %v563
    %v566 = vadd.f32 %v523, %v564
    %v567 = vadd.f32 %v524, %v564
    %v568 = vadd.f32 %v525, %v564
    %v569 = vadd.f32 %v526, %v564
    %v570 = vadd.f32 %v527, %v564
    %v571 = vadd.f32 %v528, %v564
    %v572 = vadd.f32 %v529, %v564
    %v573 = vadd.f32 %v530, %v564
    %v574 = vadd.f32 %v531, %v564
    %v575 = vadd.f32 %v532, %v564
    %v576 = vadd.f32 %v533, %v564
    %v577 = vadd.f32 %v534, %v564
    %v578 = vadd.f32 %v535, %v564
    %v579 = vadd.f32 %v536, %v564
    %v580 = vadd.f32 %v537, %v564
    %v581 = vadd.f32 %v538, %v564
    %v582 = vadd.f32 %v539, %v564
    %v583 = vadd.f32 %v540, %v564
    %v584 = vadd.f32 %v541, %v564
    %v585 = vadd.f32 %v542, %v564
    %v586 = vadd.f32 %v543, %v564
    %v587 = vadd.f32 %v544, %v564
    %v588 = vadd.f32 %v545, %v564
    %v589 = vadd.f32 %v546, %v564
    %v590 = vadd.f32 %v547, %v564
    %v591 = vadd.f32 %v548, %v564
    %v592 = vadd.f32 %v549, %v564
    %v593 = vadd.f32 %v550, %v564
    %v594 = vadd.f32 %v551, %v564
    %v595 = vadd.f32 %v552, %v564
    %v596 = vadd.f32 %v553, %v564
    %v597 = vadd.f32 %v554, %v564
    %v598 = vadd.f32 %v555, %v564
    %v599 = vadd.f32 %v556, %v564
    %v600 = vadd.f32 %v557, %v564
    %v601 = vadd.f32 %v558, %v564
    %v602 = vld [vmem:[%s5] sm:$0xff]
    %v603 = vld [vmem:[%s5 + $0x8] sm:$0xff]
    %v604 = vld [vmem:[%s5 + $0x10] sm:$0xff]
    %v605 = vld [vmem:[%s5 + $0x18] sm:$0xff]
    %v606 = vld [vmem:[%s5 + $0x20] sm:$0xff]
    %v607 = vld [vmem:[%s5 + $0x28] sm:$0xff]
    %v608 = vld [vmem:[%s5 + $0x30] sm:$0xff]
    %v609 = vld [vmem:[%s5 + $0x38] sm:$0xff]
    %v610 = vld [vmem:[%s5 + $0x40] sm:$0xff]
    %v611 = vld [vmem:[%s5 + $0x48] sm:$0xff]
    %v612 = vld [vmem:[%s5 + $0x50] sm:$0xff]
    %v613 = vld [vmem:[%s5 + $0x58] sm:$0xff]
    %v614 = vld [vmem:[%s5 + $0x60] sm:$0xff]
    %v615 = vld [vmem:[%s5 + $0x68] sm:$0xff]
    %v616 = vld [vmem:[%s5 + $0x70] sm:$0xff]
    %v617 = vld [vmem:[%s5 + $0x78] sm:$0xff]
    %v618 = vld [vmem:[%s5 + $0x80] sm:$0xff]
    %v619 = vld [vmem:[%s5 + $0x88] sm:$0xff]
    %v620 = vld [vmem:[%s5 + $0x90] sm:$0xff]
    %v621 = vld [vmem:[%s5 + $0x98] sm:$0xff]
    %v622 = vld [vmem:[%s5 + $0xa0] sm:$0xff]
    %v623 = vld [vmem:[%s5 + $0xa8] sm:$0xff]
    %v624 = vld [vmem:[%s5 + $0xb0] sm:$0xff]
    %v625 = vld [vmem:[%s5 + $0xb8] sm:$0xff]
    %v626 = vld [vmem:[%s5 + $0xc0] sm:$0xff]
    %v627 = vld [vmem:[%s5 + $0xc8] sm:$0xff]
    %v628 = vld [vmem:[%s5 + $0xd0] sm:$0xff]
    %v629 = vld [vmem:[%s5 + $0xd8] sm:$0xff]
    %v630 = vld [vmem:[%s5 + $0xe0] sm:$0xff]
    %v631 = vld [vmem:[%s5 + $0xe8] sm:$0xff]
    %v632 = vld [vmem:[%s5 + $0xf0] sm:$0xff]
    %v633 = vld [vmem:[%s5 + $0xf8] sm:$0xff]
    %v634 = vld [vmem:[%s5 + $0x100] sm:$0xff]
    %v635 = vld [vmem:[%s5 + $0x108] sm:$0xff]
    %v636 = vld [vmem:[%s5 + $0x110] sm:$0xff]
    %v637 = vld [vmem:[%s5 + $0x118] sm:$0xff]
    %v638 = vadd.f32 %v566, %v602
    %v639 = vadd.f32 %v567, %v603
    %v640 = vadd.f32 %v568, %v604
    %v641 = vadd.f32 %v569, %v605
    %v642 = vadd.f32 %v570, %v606
    %v643 = vadd.f32 %v571, %v607
    %v644 = vadd.f32 %v572, %v608
    %v645 = vadd.f32 %v573, %v609
    %v646 = vadd.f32 %v574, %v610
    %v647 = vadd.f32 %v575, %v611
    %v648 = vadd.f32 %v576, %v612
    %v649 = vadd.f32 %v577, %v613
    %v650 = vadd.f32 %v578, %v614
    %v651 = vadd.f32 %v579, %v615
    %v652 = vadd.f32 %v580, %v616
    %v653 = vadd.f32 %v581, %v617
    %v654 = vadd.f32 %v582, %v618
    %v655 = vadd.f32 %v583, %v619
    %v656 = vadd.f32 %v584, %v620
    %v657 = vadd.f32 %v585, %v621
    %v658 = vadd.f32 %v586, %v622
    %v659 = vadd.f32 %v587, %v623
    %v660 = vadd.f32 %v588, %v624
    %v661 = vadd.f32 %v589, %v625
    %v662 = vadd.f32 %v590, %v626
    %v663 = vadd.f32 %v591, %v627
    %v664 = vadd.f32 %v592, %v628
    %v665 = vadd.f32 %v593, %v629
    %v666 = vadd.f32 %v594, %v630
    %v667 = vadd.f32 %v595, %v631
    %v668 = vadd.f32 %v596, %v632
    %v669 = vadd.f32 %v597, %v633
    %v670 = vadd.f32 %v598, %v634
    %v671 = vadd.f32 %v599, %v635
    %v672 = vadd.f32 %v600, %v636
    %v673 = vadd.f32 %v601, %v637
    %v674 = vld [vmem:[%s3] sm:$0x1]
    %v676 = vlaneseq
    %v677 = vshrl.u32 %v676, 7
    %v678 = vsub.s32 0, %v677
    %v679 = vrot.slane %v674, %v678
    %v681 = vmul.f32 %v638, %v679
    %v682 = vmul.f32 %v639, %v679
    %v683 = vmul.f32 %v640, %v679
    %v684 = vmul.f32 %v641, %v679
    %v685 = vmul.f32 %v642, %v679
    %v686 = vmul.f32 %v643, %v679
    %v687 = vmul.f32 %v644, %v679
    %v688 = vmul.f32 %v645, %v679
    %v689 = vmul.f32 %v646, %v679
    %v690 = vmul.f32 %v647, %v679
    %v691 = vmul.f32 %v648, %v679
    %v692 = vmul.f32 %v649, %v679
    %v693 = vmul.f32 %v650, %v679
    %v694 = vmul.f32 %v651, %v679
    %v695 = vmul.f32 %v652, %v679
    %v696 = vmul.f32 %v653, %v679
    %v697 = vmul.f32 %v654, %v679
    %v698 = vmul.f32 %v655, %v679
    %v699 = vmul.f32 %v656, %v679
    %v700 = vmul.f32 %v657, %v679
    %v701 = vmul.f32 %v658, %v679
    %v702 = vmul.f32 %v659, %v679
    %v703 = vmul.f32 %v660, %v679
    %v704 = vmul.f32 %v661, %v679
    %v705 = vmul.f32 %v662, %v679
    %v706 = vmul.f32 %v663, %v679
    %v707 = vmul.f32 %v664, %v679
    %v708 = vmul.f32 %v665, %v679
    %v709 = vmul.f32 %v666, %v679
    %v710 = vmul.f32 %v667, %v679
    %v711 = vmul.f32 %v668, %v679
    %v712 = vmul.f32 %v669, %v679
    %v713 = vmul.f32 %v670, %v679
    %v714 = vmul.f32 %v671, %v679
    %v715 = vmul.f32 %v672, %v679
    %v716 = vmul.f32 %v673, %v679
    %v717 = vld [vmem:[%s4] sm:$0x1]
    %v719 = vlaneseq
    %v720 = vshrl.u32 %v719, 7
    %v721 = vsub.s32 0, %v720
    %v722 = vrot.slane %v717, %v721
    %v724 = vadd.f32 %v681, %v722
    %v725 = vadd.f32 %v682, %v722
    %v726 = vadd.f32 %v683, %v722
    %v727 = vadd.f32 %v684, %v722
    %v728 = vadd.f32 %v685, %v722
    %v729 = vadd.f32 %v686, %v722
    %v730 = vadd.f32 %v687, %v722
    %v731 = vadd.f32 %v688, %v722
    %v732 = vadd.f32 %v689, %v722
    %v733 = vadd.f32 %v690, %v722
    %v734 = vadd.f32 %v691, %v722
    %v735 = vadd.f32 %v692, %v722
    %v736 = vadd.f32 %v693, %v722
    %v737 = vadd.f32 %v694, %v722
    %v738 = vadd.f32 %v695, %v722
    %v739 = vadd.f32 %v696, %v722
    %v740 = vadd.f32 %v697, %v722
    %v741 = vadd.f32 %v698, %v722
    %v742 = vadd.f32 %v699, %v722
    %v743 = vadd.f32 %v700, %v722
    %v744 = vadd.f32 %v701, %v722
    %v745 = vadd.f32 %v702, %v722
    %v746 = vadd.f32 %v703, %v722
    %v747 = vadd.f32 %v704, %v722
    %v748 = vadd.f32 %v705, %v722
    %v749 = vadd.f32 %v706, %v722
    %v750 = vadd.f32 %v707, %v722
    %v751 = vadd.f32 %v708, %v722
    %v752 = vadd.f32 %v709, %v722
    %v753 = vadd.f32 %v710, %v722
    %v754 = vadd.f32 %v711, %v722
    %v755 = vadd.f32 %v712, %v722
    %v756 = vadd.f32 %v713, %v722
    %v757 = vadd.f32 %v714, %v722
    %v758 = vadd.f32 %v715, %v722
    %v759 = vadd.f32 %v716, %v722
    %760 = vst [vmem:[%s6] sm:$0xff] %v724
    %761 = vst [vmem:[%s6 + $0x8] sm:$0xff] %v725
    %762 = vst [vmem:[%s6 + $0x10] sm:$0xff] %v726
    %763 = vst [vmem:[%s6 + $0x18] sm:$0xff] %v727
    %764 = vst [vmem:[%s6 + $0x20] sm:$0xff] %v728
    %765 = vst [vmem:[%s6 + $0x28] sm:$0xff] %v729
    %766 = vst [vmem:[%s6 + $0x30] sm:$0xff] %v730
    %767 = vst [vmem:[%s6 + $0x38] sm:$0xff] %v731
    %768 = vst [vmem:[%s6 + $0x40] sm:$0xff] %v732
    %769 = vst [vmem:[%s6 + $0x48] sm:$0xff] %v733
    %770 = vst [vmem:[%s6 + $0x50] sm:$0xff] %v734
    %771 = vst [vmem:[%s6 + $0x58] sm:$0xff] %v735
    %772 = vst [vmem:[%s6 + $0x60] sm:$0xff] %v736
    %773 = vst [vmem:[%s6 + $0x68] sm:$0xff] %v737
    %774 = vst [vmem:[%s6 + $0x70] sm:$0xff] %v738
    %775 = vst [vmem:[%s6 + $0x78] sm:$0xff] %v739
    %776 = vst [vmem:[%s6 + $0x80] sm:$0xff] %v740
    %777 = vst [vmem:[%s6 + $0x88] sm:$0xff] %v741
    %778 = vst [vmem:[%s6 + $0x90] sm:$0xff] %v742
    %779 = vst [vmem:[%s6 + $0x98] sm:$0xff] %v743
    %780 = vst [vmem:[%s6 + $0xa0] sm:$0xff] %v744
    %781 = vst [vmem:[%s6 + $0xa8] sm:$0xff] %v745
    %782 = vst [vmem:[%s6 + $0xb0] sm:$0xff] %v746
    %783 = vst [vmem:[%s6 + $0xb8] sm:$0xff] %v747
    %784 = vst [vmem:[%s6 + $0xc0] sm:$0xff] %v748
    %785 = vst [vmem:[%s6 + $0xc8] sm:$0xff] %v749
    %786 = vst [vmem:[%s6 + $0xd0] sm:$0xff] %v750
    %787 = vst [vmem:[%s6 + $0xd8] sm:$0xff] %v751
    %788 = vst [vmem:[%s6 + $0xe0] sm:$0xff] %v752
    %789 = vst [vmem:[%s6 + $0xe8] sm:$0xff] %v753
    %790 = vst [vmem:[%s6 + $0xf0] sm:$0xff] %v754
    %791 = vst [vmem:[%s6 + $0xf8] sm:$0xff] %v755
    %792 = vst [vmem:[%s6 + $0x100] sm:$0xff] %v756
    %793 = vst [vmem:[%s6 + $0x108] sm:$0xff] %v757
    %794 = vst [vmem:[%s6 + $0x110] sm:$0xff] %v758
    %795 = vst [vmem:[%s6 + $0x118] sm:$0xff] %v759
  $region33: #{_lambda_.17} parent=0 // pred_fallthru
    _
  // Predicated region
  $region34: #{_lambda_.17} parent=0 // pred_check
    _
  $region35: #{_lambda_.17} parent=0 // pred_check_branch
    %797 = sbr.rel (0) target = $region37
  $region36: #{_lambda_.17} parent=0 // pred_region
    _
  $region37: #{_lambda_.17} parent=0 // pred_fallthru
    _
  // Predicated region
  $region38: #{_lambda_.17} parent=0 // pred_check
    _
  $region39: #{_lambda_.17} parent=0 // pred_check_branch
    %799 = sbr.rel (0) target = $region41
  $region40: #{_lambda_.17} parent=0 // pred_region
    _
  $region41: #{_lambda_.17} parent=0 // pred_fallthru
    _

// kernel: _lambda_.19
$region0: #{_lambda_.19}
  #allocation0 [shape = 'u32[]', space=smem, size = 0x4, offset = 0x4, fixed_abs, tag = 'smem constant byte address 0x4 - core index']
  #allocation1 [shape = 'u32[144,128]{1,0:T(1,128)}', space=vmem, size = 0x12000, scoped, tag = 'internal scratch']
  #allocation2 [shape = 'f32[32,128]{1,0:T(8,128)}', space=vmem, size = 0x4000, scoped, tag = 'scratch operand']
  %s0 = inlined_call_operand.vmem [shape: f32[32,128], index: 0, kind: input, shape index: {}]
  %s1 = inlined_call_operand.vmem [shape: f32[128,128], index: 1, kind: input, shape index: {}]
  %s2 = inlined_call_operand.vmem [shape: f32[1,128], index: 2, kind: input, shape index: {}]
  %s3 = inlined_call_operand.vmem [shape: f32[32,128], index: 3, kind: output, shape index: {}]
  %s4 = sld [smem:[#allocation0]]
  $region30: #{_lambda_.19} parent=0
    _
  %s6 = ssub.s32 1, %s4
  %s7 = scalar_select 0, %s6, %s4
  // Predicated region
  $region2: #{_lambda_.19} parent=0 // pred_check
    _
  $region3: #{_lambda_.19} parent=0 // pred_check_branch
    %9 = sbr.rel (0) target = $region5
  $region4: #{_lambda_.19} parent=0 // pred_region
    _
  $region5: #{_lambda_.19} parent=0 // pred_fallthru
    _
  // Predicated region
  $region6: #{_lambda_.19} parent=0 // pred_check
    _
  $region7: #{_lambda_.19} parent=0 // pred_check_branch
    %11 = sbr.rel (0) target = $region9
  $region8: #{_lambda_.19} parent=0 // pred_region
    _
  $region9: #{_lambda_.19} parent=0 // pred_fallthru
    _
  // Predicated region
  $region10: #{_lambda_.19} parent=0 // pred_check
    _
  $region11: #{_lambda_.19} parent=0 // pred_check_branch
    %13 = sbr.rel (0) target = $region13
  $region12: #{_lambda_.19} parent=0 // pred_region
    _
  $region13: #{_lambda_.19} parent=0 // pred_fallthru
    _
  %p14 = scmp.eq.s32.totalorder 0, 0
  // Predicated region
  $region14: #{_lambda_.19} parent=0 // pred_check
    %p15 = pneg %p14
  $region15: #{_lambda_.19} parent=0 // pred_check_branch
    %17 = sbr.rel (%p15) target = $region17
  $region16: #{_lambda_.19} parent=0 // pred_region
    %18 = vst [vmem:[#allocation2] sm:$0xff] 0.0
    %19 = vst [vmem:[#allocation2 + $0x8] sm:$0xff] 0.0
    %20 = vst [vmem:[#allocation2 + $0x10] sm:$0xff] 0.0
    %21 = vst [vmem:[#allocation2 + $0x18] sm:$0xff] 0.0
  $region17: #{_lambda_.19} parent=0 // pred_fallthru
    _
  %v22 = vld [vmem:[%s0] sm:$0xff]
  %v23 = vld [vmem:[%s0 + $0x8] sm:$0xff]
  %v24 = vld [vmem:[%s0 + $0x10] sm:$0xff]
  %v25 = vld [vmem:[%s0 + $0x18] sm:$0xff]
  %v26 = vld [vmem:[#allocation2] sm:$0xff]
  %v27 = vld [vmem:[#allocation2 + $0x8] sm:$0xff]
  %v28 = vld [vmem:[#allocation2 + $0x10] sm:$0xff]
  %v29 = vld [vmem:[#allocation2 + $0x18] sm:$0xff]
  %v30 = vld [vmem:[%s1] sm:$0xff]
  %v31 = vld [vmem:[%s1 + $0x8] sm:$0xff]
  %v32 = vld [vmem:[%s1 + $0x10] sm:$0xff]
  %v33 = vld [vmem:[%s1 + $0x18] sm:$0xff]
  %v34 = vld [vmem:[%s1 + $0x20] sm:$0xff]
  %v35 = vld [vmem:[%s1 + $0x28] sm:$0xff]
  %v36 = vld [vmem:[%s1 + $0x30] sm:$0xff]
  %v37 = vld [vmem:[%s1 + $0x38] sm:$0xff]
  %v38 = vld [vmem:[%s1 + $0x40] sm:$0xff]
  %v39 = vld [vmem:[%s1 + $0x48] sm:$0xff]
  %v40 = vld [vmem:[%s1 + $0x50] sm:$0xff]
  %v41 = vld [vmem:[%s1 + $0x58] sm:$0xff]
  %v42 = vld [vmem:[%s1 + $0x60] sm:$0xff]
  %v43 = vld [vmem:[%s1 + $0x68] sm:$0xff]
  %v44 = vld [vmem:[%s1 + $0x70] sm:$0xff]
  %v45 = vld [vmem:[%s1 + $0x78] sm:$0xff]
  %46 = vmatprep.subr.mxu0 0.0
  %47 = vmatpush1.msra.mxu0 %v45
  %48 = vmatprep.subr.mxu0 0.0
  %49 = vmatpush1.msra.mxu0 %v44
  %50 = vmatprep.subr.mxu0 0.0
  %51 = vmatpush1.msra.mxu0 %v43
  %52 = vmatprep.subr.mxu0 0.0
  %53 = vmatpush1.msra.mxu0 %v42
  %54 = vmatprep.subr.mxu0 0.0
  %55 = vmatpush1.msra.mxu0 %v41
  %56 = vmatprep.subr.mxu0 0.0
  %57 = vmatpush1.msra.mxu0 %v40
  %58 = vmatprep.subr.mxu0 0.0
  %59 = vmatpush1.msra.mxu0 %v39
  %60 = vmatprep.subr.mxu0 0.0
  %61 = vmatpush1.msra.mxu0 %v38
  %62 = vmatprep.subr.mxu0 0.0
  %63 = vmatpush1.msra.mxu0 %v37
  %64 = vmatprep.subr.mxu0 0.0
  %65 = vmatpush1.msra.mxu0 %v36
  %66 = vmatprep.subr.mxu0 0.0
  %67 = vmatpush1.msra.mxu0 %v35
  %68 = vmatprep.subr.mxu0 0.0
  %69 = vmatpush1.msra.mxu0 %v34
  %70 = vmatprep.subr.mxu0 0.0
  %71 = vmatpush1.msra.mxu0 %v33
  %72 = vmatprep.subr.mxu0 0.0
  %73 = vmatpush1.msra.mxu0 %v32
  %74 = vmatprep.subr.mxu0 0.0
  %75 = vmatpush1.msra.mxu0 %v31
  %76 = vmatprep.subr.mxu0 0.0
  %77 = vmatpush1.msra.mxu0 %v30
  %78 = vmatprep.subr.mxu0 0.0
  %79 = vmatpush2.msra.mxu0 0.0
  %80 = vmatprep.subr.mxu0 0.0
  %81 = vmatpush2.msra.mxu0 0.0
  %82 = vmatprep.subr.mxu0 0.0
  %83 = vmatpush2.msra.mxu0 0.0
  %84 = vmatprep.subr.mxu0 0.0
  %85 = vmatpush2.msra.mxu0 0.0
  %86 = vmatprep.subr.mxu0 0.0
  %87 = vmatpush2.msra.mxu0 0.0
  %88 = vmatprep.subr.mxu0 0.0
  %89 = vmatpush2.msra.mxu0 0.0
  %90 = vmatprep.subr.mxu0 0.0
  %91 = vmatpush2.msra.mxu0 0.0
  %92 = vmatprep.subr.mxu0 0.0
  %93 = vmatpush2.msra.mxu0 0.0
  %94 = vmatprep.subr.mxu0 0.0
  %95 = vmatpush2.msra.mxu0 0.0
  %96 = vmatprep.subr.mxu0 0.0
  %97 = vmatpush2.msra.mxu0 0.0
  %98 = vmatprep.subr.mxu0 0.0
  %99 = vmatpush2.msra.mxu0 0.0
  %100 = vmatprep.subr.mxu0 0.0
  %101 = vmatpush2.msra.mxu0 0.0
  %102 = vmatprep.subr.mxu0 0.0
  %103 = vmatpush2.msra.mxu0 0.0
  %104 = vmatprep.subr.mxu0 0.0
  %105 = vmatpush2.msra.mxu0 0.0
  %106 = vmatprep.subr.mxu0 0.0
  %107 = vmatpush2.msra.mxu0 0.0
  %108 = vmatprep.subr.mxu0 0.0
  %109 = vmatpush2.msra.mxu0 0.0
  %110 = vmatprep.mubr.f32.mxu0 0.0
  %111 = vmatmul.mubr.f32.gmra.mxu0 %v22
  %v112 = vpop.f32.mrf.mxu0
  %v113 = vadd.f32 0.0, %v112
  %v114 = vpop.f32.mrf.mxu0
  %115 = vmatprep.mubr.f32.mxu0 0.0
  %116 = vmatmul.mubr.f32.gmra.mxu0 %v23
  %v117 = vpop.f32.mrf.mxu0
  %v118 = vadd.f32 0.0, %v117
  %v119 = vpop.f32.mrf.mxu0
  %120 = vmatprep.mubr.f32.mxu0 0.0
  %121 = vmatmul.mubr.f32.gmra.mxu0 %v24
  %v122 = vpop.f32.mrf.mxu0
  %v123 = vadd.f32 0.0, %v122
  %v124 = vpop.f32.mrf.mxu0
  %125 = vmatprep.mubr.f32.mxu0 0.0
  %126 = vmatmul.mubr.f32.gmra.mxu0 %v25
  %v127 = vpop.f32.mrf.mxu0
  %v128 = vadd.f32 0.0, %v127
  %v129 = vpop.f32.mrf.mxu0
  %130 = vdwg.mxu0
  %v131 = vadd.f32 %v26, %v113
  %v132 = vadd.f32 %v27, %v118
  %v133 = vadd.f32 %v28, %v123
  %v134 = vadd.f32 %v29, %v128
  %135 = vst [vmem:[#allocation2] sm:$0xff] %v131
  %136 = vst [vmem:[#allocation2 + $0x8] sm:$0xff] %v132
  %137 = vst [vmem:[#allocation2 + $0x10] sm:$0xff] %v133
  %138 = vst [vmem:[#allocation2 + $0x18] sm:$0xff] %v134
  // Predicated region
  $region18: #{_lambda_.19} parent=0 // pred_check
    %p139 = pneg %p14
  $region19: #{_lambda_.19} parent=0 // pred_check_branch
    %141 = sbr.rel (%p139) target = $region21
  $region20: #{_lambda_.19} parent=0 // pred_region
    %v142 = vld [vmem:[#allocation2] sm:$0xff]
    %v143 = vld [vmem:[#allocation2 + $0x8] sm:$0xff]
    %v144 = vld [vmem:[#allocation2 + $0x10] sm:$0xff]
    %v145 = vld [vmem:[#allocation2 + $0x18] sm:$0xff]
    %v146 = vld [vmem:[%s2] sm:$0x1]
    %v148 = vlaneseq
    %v149 = vshrl.u32 %v148, 7
    %v150 = vsub.s32 0, %v149
    %v151 = vrot.slane %v146, %v150
    %v153 = vadd.f32 %v142, %v151
    %v154 = vadd.f32 %v143, %v151
    %v155 = vadd.f32 %v144, %v151
    %v156 = vadd.f32 %v145, %v151
    %157 = vst [vmem:[%s3] sm:$0xff] %v153
    %158 = vst [vmem:[%s3 + $0x8] sm:$0xff] %v154
    %159 = vst [vmem:[%s3 + $0x10] sm:$0xff] %v155
    %160 = vst [vmem:[%s3 + $0x18] sm:$0xff] %v156
  $region21: #{_lambda_.19} parent=0 // pred_fallthru
    _
  // Predicated region
  $region22: #{_lambda_.19} parent=0 // pred_check
    _
  $region23: #{_lambda_.19} parent=0 // pred_check_branch
    %162 = sbr.rel (0) target = $region25
  $region24: #{_lambda_.19} parent=0 // pred_region
    _
  $region25: #{_lambda_.19} parent=0 // pred_fallthru
    _
  // Predicated region
  $region26: #{_lambda_.19} parent=0 // pred_check
    _
  $region27: #{_lambda_.19} parent=0 // pred_check_branch
    %164 = sbr.rel (0) target = $region29
  $region28: #{_lambda_.19} parent=0 // pred_region
    _
  $region29: #{_lambda_.19} parent=0 // pred_fallthru
    _

// kernel: _lambda_.18
$region0: #{_lambda_.18}
  #allocation0 [shape = 'u32[]', space=smem, size = 0x4, offset = 0x4, fixed_abs, tag = 'smem constant byte address 0x4 - core index']
  #allocation1 [shape = 'u32[144,128]{1,0:T(1,128)}', space=vmem, size = 0x12000, scoped, tag = 'internal scratch']
  %s0 = inlined_call_operand.vmem [shape: f32[9,8,1024], index: 0, kind: input, shape index: {}]
  %s1 = inlined_call_operand.vmem [shape: f32[8,1024], index: 1, kind: output, shape index: {}]
  %s2 = sld [smem:[#allocation0]]
  $region14: #{_lambda_.18} parent=0
    _
  %s4 = ssub.s32 1, %s2
  %s5 = scalar_select 0, %s4, %s2
  // Predicated region
  $region2: #{_lambda_.18} parent=0 // pred_check
    _
  $region3: #{_lambda_.18} parent=0 // pred_check_branch
    %7 = sbr.rel (0) target = $region5
  $region4: #{_lambda_.18} parent=0 // pred_region
    _
  $region5: #{_lambda_.18} parent=0 // pred_fallthru
    _
  %v8 = vld [vmem:[%s0] sm:$0xff]
  %v9 = vld [vmem:[%s0 + $0x8] sm:$0xff]
  %v10 = vld [vmem:[%s0 + $0x10] sm:$0xff]
  %v11 = vld [vmem:[%s0 + $0x18] sm:$0xff]
  %v12 = vld [vmem:[%s0 + $0x20] sm:$0xff]
  %v13 = vld [vmem:[%s0 + $0x28] sm:$0xff]
  %v14 = vld [vmem:[%s0 + $0x30] sm:$0xff]
  %v15 = vld [vmem:[%s0 + $0x38] sm:$0xff]
  %s16 = scalar_lea.vmem %s0, 64
  %v17 = vld [vmem:[%s16] sm:$0xff]
  %v18 = vld [vmem:[%s16 + $0x8] sm:$0xff]
  %v19 = vld [vmem:[%s16 + $0x10] sm:$0xff]
  %v20 = vld [vmem:[%s16 + $0x18] sm:$0xff]
  %v21 = vld [vmem:[%s16 + $0x20] sm:$0xff]
  %v22 = vld [vmem:[%s16 + $0x28] sm:$0xff]
  %v23 = vld [vmem:[%s16 + $0x30] sm:$0xff]
  %v24 = vld [vmem:[%s16 + $0x38] sm:$0xff]
  %v25 = vmax.f32 %v8, %v17
  %v26 = vmax.f32 %v9, %v18
  %v27 = vmax.f32 %v10, %v19
  %v28 = vmax.f32 %v11, %v20
  %v29 = vmax.f32 %v12, %v21
  %v30 = vmax.f32 %v13, %v22
  %v31 = vmax.f32 %v14, %v23
  %v32 = vmax.f32 %v15, %v24
  %s33 = scalar_lea.vmem %s0, 128
  %v34 = vld [vmem:[%s33] sm:$0xff]
  %v35 = vld [vmem:[%s33 + $0x8] sm:$0xff]
  %v36 = vld [vmem:[%s33 + $0x10] sm:$0xff]
  %v37 = vld [vmem:[%s33 + $0x18] sm:$0xff]
  %v38 = vld [vmem:[%s33 + $0x20] sm:$0xff]
  %v39 = vld [vmem:[%s33 + $0x28] sm:$0xff]
  %v40 = vld [vmem:[%s33 + $0x30] sm:$0xff]
  %v41 = vld [vmem:[%s33 + $0x38] sm:$0xff]
  %v42 = vmax.f32 %v25, %v34
  %v43 = vmax.f32 %v26, %v35
  %v44 = vmax.f32 %v27, %v36
  %v45 = vmax.f32 %v28, %v37
  %v46 = vmax.f32 %v29, %v38
  %v47 = vmax.f32 %v30, %v39
  %v48 = vmax.f32 %v31, %v40
  %v49 = vmax.f32 %v32, %v41
  %s50 = scalar_lea.vmem %s0, 192
  %v51 = vld [vmem:[%s50] sm:$0xff]
  %v52 = vld [vmem:[%s50 + $0x8] sm:$0xff]
  %v53 = vld [vmem:[%s50 + $0x10] sm:$0xff]
  %v54 = vld [vmem:[%s50 + $0x18] sm:$0xff]
  %v55 = vld [vmem:[%s50 + $0x20] sm:$0xff]
  %v56 = vld [vmem:[%s50 + $0x28] sm:$0xff]
  %v57 = vld [vmem:[%s50 + $0x30] sm:$0xff]
  %v58 = vld [vmem:[%s50 + $0x38] sm:$0xff]
  %v59 = vmax.f32 %v42, %v51
  %v60 = vmax.f32 %v43, %v52
  %v61 = vmax.f32 %v44, %v53
  %v62 = vmax.f32 %v45, %v54
  %v63 = vmax.f32 %v46, %v55
  %v64 = vmax.f32 %v47, %v56
  %v65 = vmax.f32 %v48, %v57
  %v66 = vmax.f32 %v49, %v58
  %s67 = scalar_lea.vmem %s0, 256
  %v68 = vld [vmem:[%s67] sm:$0xff]
  %v69 = vld [vmem:[%s67 + $0x8] sm:$0xff]
  %v70 = vld [vmem:[%s67 + $0x10] sm:$0xff]
  %v71 = vld [vmem:[%s67 + $0x18] sm:$0xff]
  %v72 = vld [vmem:[%s67 + $0x20] sm:$0xff]
  %v73 = vld [vmem:[%s67 + $0x28] sm:$0xff]
  %v74 = vld [vmem:[%s67 + $0x30] sm:$0xff]
  %v75 = vld [vmem:[%s67 + $0x38] sm:$0xff]
  %v76 = vmax.f32 %v59, %v68
  %v77 = vmax.f32 %v60, %v69
  %v78 = vmax.f32 %v61, %v70
  %v79 = vmax.f32 %v62, %v71
  %v80 = vmax.f32 %v63, %v72
  %v81 = vmax.f32 %v64, %v73
  %v82 = vmax.f32 %v65, %v74
  %v83 = vmax.f32 %v66, %v75
  %s84 = scalar_lea.vmem %s0, 320
  %v85 = vld [vmem:[%s84] sm:$0xff]
  %v86 = vld [vmem:[%s84 + $0x8] sm:$0xff]
  %v87 = vld [vmem:[%s84 + $0x10] sm:$0xff]
  %v88 = vld [vmem:[%s84 + $0x18] sm:$0xff]
  %v89 = vld [vmem:[%s84 + $0x20] sm:$0xff]
  %v90 = vld [vmem:[%s84 + $0x28] sm:$0xff]
  %v91 = vld [vmem:[%s84 + $0x30] sm:$0xff]
  %v92 = vld [vmem:[%s84 + $0x38] sm:$0xff]
  %v93 = vmax.f32 %v76, %v85
  %v94 = vmax.f32 %v77, %v86
  %v95 = vmax.f32 %v78, %v87
  %v96 = vmax.f32 %v79, %v88
  %v97 = vmax.f32 %v80, %v89
  %v98 = vmax.f32 %v81, %v90
  %v99 = vmax.f32 %v82, %v91
  %v100 = vmax.f32 %v83, %v92
  %s101 = scalar_lea.vmem %s0, 384
  %v102 = vld [vmem:[%s101] sm:$0xff]
  %v103 = vld [vmem:[%s101 + $0x8] sm:$0xff]
  %v104 = vld [vmem:[%s101 + $0x10] sm:$0xff]
  %v105 = vld [vmem:[%s101 + $0x18] sm:$0xff]
  %v106 = vld [vmem:[%s101 + $0x20] sm:$0xff]
  %v107 = vld [vmem:[%s101 + $0x28] sm:$0xff]
  %v108 = vld [vmem:[%s101 + $0x30] sm:$0xff]
  %v109 = vld [vmem:[%s101 + $0x38] sm:$0xff]
  %v110 = vmax.f32 %v93, %v102
  %v111 = vmax.f32 %v94, %v103
  %v112 = vmax.f32 %v95, %v104
  %v113 = vmax.f32 %v96, %v105
  %v114 = vmax.f32 %v97, %v106
  %v115 = vmax.f32 %v98, %v107
  %v116 = vmax.f32 %v99, %v108
  %v117 = vmax.f32 %v100, %v109
  %s118 = scalar_lea.vmem %s0, 448
  %v119 = vld [vmem:[%s118] sm:$0xff]
  %v120 = vld [vmem:[%s118 + $0x8] sm:$0xff]
  %v121 = vld [vmem:[%s118 + $0x10] sm:$0xff]
  %v122 = vld [vmem:[%s118 + $0x18] sm:$0xff]
  %v123 = vld [vmem:[%s118 + $0x20] sm:$0xff]
  %v124 = vld [vmem:[%s118 + $0x28] sm:$0xff]
  %v125 = vld [vmem:[%s118 + $0x30] sm:$0xff]
  %v126 = vld [vmem:[%s118 + $0x38] sm:$0xff]
  %v127 = vmax.f32 %v110, %v119
  %v128 = vmax.f32 %v111, %v120
  %v129 = vmax.f32 %v112, %v121
  %v130 = vmax.f32 %v113, %v122
  %v131 = vmax.f32 %v114, %v123
  %v132 = vmax.f32 %v115, %v124
  %v133 = vmax.f32 %v116, %v125
  %v134 = vmax.f32 %v117, %v126
  %s135 = scalar_lea.vmem %s0, 512
  %v136 = vld [vmem:[%s135] sm:$0xff]
  %v137 = vld [vmem:[%s135 + $0x8] sm:$0xff]
  %v138 = vld [vmem:[%s135 + $0x10] sm:$0xff]
  %v139 = vld [vmem:[%s135 + $0x18] sm:$0xff]
  %v140 = vld [vmem:[%s135 + $0x20] sm:$0xff]
  %v141 = vld [vmem:[%s135 + $0x28] sm:$0xff]
  %v142 = vld [vmem:[%s135 + $0x30] sm:$0xff]
  %v143 = vld [vmem:[%s135 + $0x38] sm:$0xff]
  %v144 = vmax.f32 %v127, %v136
  %v145 = vmax.f32 %v128, %v137
  %v146 = vmax.f32 %v129, %v138
  %v147 = vmax.f32 %v130, %v139
  %v148 = vmax.f32 %v131, %v140
  %v149 = vmax.f32 %v132, %v141
  %v150 = vmax.f32 %v133, %v142
  %v151 = vmax.f32 %v134, %v143
  %152 = vst [vmem:[%s1] sm:$0xff] %v144
  %153 = vst [vmem:[%s1 + $0x8] sm:$0xff] %v145
  %154 = vst [vmem:[%s1 + $0x10] sm:$0xff] %v146
  %155 = vst [vmem:[%s1 + $0x18] sm:$0xff] %v147
  %156 = vst [vmem:[%s1 + $0x20] sm:$0xff] %v148
  %157 = vst [vmem:[%s1 + $0x28] sm:$0xff] %v149
  %158 = vst [vmem:[%s1 + $0x30] sm:$0xff] %v150
  %159 = vst [vmem:[%s1 + $0x38] sm:$0xff] %v151
  // Predicated region
  $region6: #{_lambda_.18} parent=0 // pred_check
    _
  $region7: #{_lambda_.18} parent=0 // pred_check_branch
    %161 = sbr.rel (0) target = $region9
  $region8: #{_lambda_.18} parent=0 // pred_region
    _
  $region9: #{_lambda_.18} parent=0 // pred_fallthru
    _
  // Predicated region
  $region10: #{_lambda_.18} parent=0 // pred_check
    _
  $region11: #{_lambda_.18} parent=0 // pred_check_branch
    %163 = sbr.rel (0) target = $region13
  $region12: #{_lambda_.18} parent=0 // pred_region
    _
  $region13: #{_lambda_.18} parent=0 // pred_fallthru
    _

// kernel: _lambda_.20
$region0: #{_lambda_.20}
  #allocation0 [shape = 'u32[]', space=smem, size = 0x4, offset = 0x4, fixed_abs, tag = 'smem constant byte address 0x4 - core index']
  #allocation1 [shape = 'u32[144,128]{1,0:T(1,128)}', space=vmem, size = 0x12000, scoped, tag = 'internal scratch']
  #allocation2 [shape = 'f32[32,128]{1,0:T(8,128)}', space=vmem, size = 0x4000, scoped, tag = 'scratch operand']
  %s0 = inlined_call_operand.vmem [shape: f32[32,128], index: 0, kind: input, shape index: {}]
  %s1 = inlined_call_operand.vmem [shape: f32[128,128], index: 1, kind: input, shape index: {}]
  %s2 = inlined_call_operand.vmem [shape: f32[1,128], index: 2, kind: input, shape index: {}]
  %s3 = inlined_call_operand.vmem [shape: f32[1,128], index: 3, kind: input, shape index: {}]
  %s4 = inlined_call_operand.vmem [shape: f32[1,128], index: 4, kind: input, shape index: {}]
  %s5 = inlined_call_operand.vmem [shape: f32[1,128], index: 5, kind: input, shape index: {}]
  %s6 = inlined_call_operand.vmem [shape: f32[1,128], index: 6, kind: input, shape index: {}]
  %s7 = inlined_call_operand.vmem [shape: f32[32,128], index: 7, kind: output, shape index: {}]
  %s8 = sld [smem:[#allocation0]]
  $region46: #{_lambda_.20} parent=0
    _
  %s10 = ssub.s32 1, %s8
  %s11 = scalar_select 0, %s10, %s8
  // Predicated region
  $region2: #{_lambda_.20} parent=0 // pred_check
    _
  $region3: #{_lambda_.20} parent=0 // pred_check_branch
    %13 = sbr.rel (0) target = $region5
  $region4: #{_lambda_.20} parent=0 // pred_region
    _
  $region5: #{_lambda_.20} parent=0 // pred_fallthru
    _
  // Predicated region
  $region6: #{_lambda_.20} parent=0 // pred_check
    _
  $region7: #{_lambda_.20} parent=0 // pred_check_branch
    %15 = sbr.rel (0) target = $region9
  $region8: #{_lambda_.20} parent=0 // pred_region
    _
  $region9: #{_lambda_.20} parent=0 // pred_fallthru
    _
  // Predicated region
  $region10: #{_lambda_.20} parent=0 // pred_check
    _
  $region11: #{_lambda_.20} parent=0 // pred_check_branch
    %17 = sbr.rel (0) target = $region13
  $region12: #{_lambda_.20} parent=0 // pred_region
    _
  $region13: #{_lambda_.20} parent=0 // pred_fallthru
    _
  // Predicated region
  $region14: #{_lambda_.20} parent=0 // pred_check
    _
  $region15: #{_lambda_.20} parent=0 // pred_check_branch
    %19 = sbr.rel (0) target = $region17
  $region16: #{_lambda_.20} parent=0 // pred_region
    _
  $region17: #{_lambda_.20} parent=0 // pred_fallthru
    _
  // Predicated region
  $region18: #{_lambda_.20} parent=0 // pred_check
    _
  $region19: #{_lambda_.20} parent=0 // pred_check_branch
    %21 = sbr.rel (0) target = $region21
  $region20: #{_lambda_.20} parent=0 // pred_region
    _
  $region21: #{_lambda_.20} parent=0 // pred_fallthru
    _
  // Predicated region
  $region22: #{_lambda_.20} parent=0 // pred_check
    _
  $region23: #{_lambda_.20} parent=0 // pred_check_branch
    %23 = sbr.rel (0) target = $region25
  $region24: #{_lambda_.20} parent=0 // pred_region
    _
  $region25: #{_lambda_.20} parent=0 // pred_fallthru
    _
  // Predicated region
  $region26: #{_lambda_.20} parent=0 // pred_check
    _
  $region27: #{_lambda_.20} parent=0 // pred_check_branch
    %25 = sbr.rel (0) target = $region29
  $region28: #{_lambda_.20} parent=0 // pred_region
    _
  $region29: #{_lambda_.20} parent=0 // pred_fallthru
    _
  %p26 = scmp.eq.s32.totalorder 0, 0
  // Predicated region
  $region30: #{_lambda_.20} parent=0 // pred_check
    %p27 = pneg %p26
  $region31: #{_lambda_.20} parent=0 // pred_check_branch
    %29 = sbr.rel (%p27) target = $region33
  $region32: #{_lambda_.20} parent=0 // pred_region
    %30 = vst [vmem:[#allocation2] sm:$0xff] 0.0
    %31 = vst [vmem:[#allocation2 + $0x8] sm:$0xff] 0.0
    %32 = vst [vmem:[#allocation2 + $0x10] sm:$0xff] 0.0
    %33 = vst [vmem:[#allocation2 + $0x18] sm:$0xff] 0.0
  $region33: #{_lambda_.20} parent=0 // pred_fallthru
    _
  %v34 = vld [vmem:[%s0] sm:$0xff]
  %v35 = vld [vmem:[%s0 + $0x8] sm:$0xff]
  %v36 = vld [vmem:[%s0 + $0x10] sm:$0xff]
  %v37 = vld [vmem:[%s0 + $0x18] sm:$0xff]
  %v38 = vld [vmem:[%s3] sm:$0x1]
  %v40 = vlaneseq
  %v41 = vshrl.u32 %v40, 7
  %v42 = vsub.s32 0, %v41
  %v43 = vrot.slane %v38, %v42
  %v45 = vmul.f32 %v34, %v43
  %v46 = vmul.f32 %v35, %v43
  %v47 = vmul.f32 %v36, %v43
  %v48 = vmul.f32 %v37, %v43
  %v49 = vld [vmem:[%s4] sm:$0x1]
  %v51 = vlaneseq
  %v52 = vshrl.u32 %v51, 7
  %v53 = vsub.s32 0, %v52
  %v54 = vrot.slane %v49, %v53
  %v56 = vadd.f32 %v45, %v54
  %v57 = vadd.f32 %v46, %v54
  %v58 = vadd.f32 %v47, %v54
  %v59 = vadd.f32 %v48, %v54
  %v60 = vmax.f32 %v56, 0.0
  %v61 = vmax.f32 %v57, 0.0
  %v62 = vmax.f32 %v58, 0.0
  %v63 = vmax.f32 %v59, 0.0
  %v64 = vld [vmem:[#allocation2] sm:$0xff]
  %v65 = vld [vmem:[#allocation2 + $0x8] sm:$0xff]
  %v66 = vld [vmem:[#allocation2 + $0x10] sm:$0xff]
  %v67 = vld [vmem:[#allocation2 + $0x18] sm:$0xff]
  %v68 = vld [vmem:[%s1] sm:$0xff]
  %v69 = vld [vmem:[%s1 + $0x8] sm:$0xff]
  %v70 = vld [vmem:[%s1 + $0x10] sm:$0xff]
  %v71 = vld [vmem:[%s1 + $0x18] sm:$0xff]
  %v72 = vld [vmem:[%s1 + $0x20] sm:$0xff]
  %v73 = vld [vmem:[%s1 + $0x28] sm:$0xff]
  %v74 = vld [vmem:[%s1 + $0x30] sm:$0xff]
  %v75 = vld [vmem:[%s1 + $0x38] sm:$0xff]
  %v76 = vld [vmem:[%s1 + $0x40] sm:$0xff]
  %v77 = vld [vmem:[%s1 + $0x48] sm:$0xff]
  %v78 = vld [vmem:[%s1 + $0x50] sm:$0xff]
  %v79 = vld [vmem:[%s1 + $0x58] sm:$0xff]
  %v80 = vld [vmem:[%s1 + $0x60] sm:$0xff]
  %v81 = vld [vmem:[%s1 + $0x68] sm:$0xff]
  %v82 = vld [vmem:[%s1 + $0x70] sm:$0xff]
  %v83 = vld [vmem:[%s1 + $0x78] sm:$0xff]
  %84 = vmatprep.subr.mxu0 0.0
  %85 = vmatpush1.msra.mxu0 %v83
  %86 = vmatprep.subr.mxu0 0.0
  %87 = vmatpush1.msra.mxu0 %v82
  %88 = vmatprep.subr.mxu0 0.0
  %89 = vmatpush1.msra.mxu0 %v81
  %90 = vmatprep.subr.mxu0 0.0
  %91 = vmatpush1.msra.mxu0 %v80
  %92 = vmatprep.subr.mxu0 0.0
  %93 = vmatpush1.msra.mxu0 %v79
  %94 = vmatprep.subr.mxu0 0.0
  %95 = vmatpush1.msra.mxu0 %v78
  %96 = vmatprep.subr.mxu0 0.0
  %97 = vmatpush1.msra.mxu0 %v77
  %98 = vmatprep.subr.mxu0 0.0
  %99 = vmatpush1.msra.mxu0 %v76
  %100 = vmatprep.subr.mxu0 0.0
  %101 = vmatpush1.msra.mxu0 %v75
  %102 = vmatprep.subr.mxu0 0.0
  %103 = vmatpush1.msra.mxu0 %v74
  %104 = vmatprep.subr.mxu0 0.0
  %105 = vmatpush1.msra.mxu0 %v73
  %106 = vmatprep.subr.mxu0 0.0
  %107 = vmatpush1.msra.mxu0 %v72
  %108 = vmatprep.subr.mxu0 0.0
  %109 = vmatpush1.msra.mxu0 %v71
  %110 = vmatprep.subr.mxu0 0.0
  %111 = vmatpush1.msra.mxu0 %v70
  %112 = vmatprep.subr.mxu0 0.0
  %113 = vmatpush1.msra.mxu0 %v69
  %114 = vmatprep.subr.mxu0 0.0
  %115 = vmatpush1.msra.mxu0 %v68
  %116 = vmatprep.subr.mxu0 0.0
  %117 = vmatpush2.msra.mxu0 0.0
  %118 = vmatprep.subr.mxu0 0.0
  %119 = vmatpush2.msra.mxu0 0.0
  %120 = vmatprep.subr.mxu0 0.0
  %121 = vmatpush2.msra.mxu0 0.0
  %122 = vmatprep.subr.mxu0 0.0
  %123 = vmatpush2.msra.mxu0 0.0
  %124 = vmatprep.subr.mxu0 0.0
  %125 = vmatpush2.msra.mxu0 0.0
  %126 = vmatprep.subr.mxu0 0.0
  %127 = vmatpush2.msra.mxu0 0.0
  %128 = vmatprep.subr.mxu0 0.0
  %129 = vmatpush2.msra.mxu0 0.0
  %130 = vmatprep.subr.mxu0 0.0
  %131 = vmatpush2.msra.mxu0 0.0
  %132 = vmatprep.subr.mxu0 0.0
  %133 = vmatpush2.msra.mxu0 0.0
  %134 = vmatprep.subr.mxu0 0.0
  %135 = vmatpush2.msra.mxu0 0.0
  %136 = vmatprep.subr.mxu0 0.0
  %137 = vmatpush2.msra.mxu0 0.0
  %138 = vmatprep.subr.mxu0 0.0
  %139 = vmatpush2.msra.mxu0 0.0
  %140 = vmatprep.subr.mxu0 0.0
  %141 = vmatpush2.msra.mxu0 0.0
  %142 = vmatprep.subr.mxu0 0.0
  %143 = vmatpush2.msra.mxu0 0.0
  %144 = vmatprep.subr.mxu0 0.0
  %145 = vmatpush2.msra.mxu0 0.0
  %146 = vmatprep.subr.mxu0 0.0
  %147 = vmatpush2.msra.mxu0 0.0
  %148 = vmatprep.mubr.f32.mxu0 0.0
  %149 = vmatmul.mubr.f32.gmra.mxu0 %v60
  %v150 = vpop.f32.mrf.mxu0
  %v151 = vadd.f32 0.0, %v150
  %v152 = vpop.f32.mrf.mxu0
  %153 = vmatprep.mubr.f32.mxu0 0.0
  %154 = vmatmul.mubr.f32.gmra.mxu0 %v61
  %v155 = vpop.f32.mrf.mxu0
  %v156 = vadd.f32 0.0, %v155
  %v157 = vpop.f32.mrf.mxu0
  %158 = vmatprep.mubr.f32.mxu0 0.0
  %159 = vmatmul.mubr.f32.gmra.mxu0 %v62
  %v160 = vpop.f32.mrf.mxu0
  %v161 = vadd.f32 0.0, %v160
  %v162 = vpop.f32.mrf.mxu0
  %163 = vmatprep.mubr.f32.mxu0 0.0
  %164 = vmatmul.mubr.f32.gmra.mxu0 %v63
  %v165 = vpop.f32.mrf.mxu0
  %v166 = vadd.f32 0.0, %v165
  %v167 = vpop.f32.mrf.mxu0
  %168 = vdwg.mxu0
  %v169 = vadd.f32 %v64, %v151
  %v170 = vadd.f32 %v65, %v156
  %v171 = vadd.f32 %v66, %v161
  %v172 = vadd.f32 %v67, %v166
  %173 = vst [vmem:[#allocation2] sm:$0xff] %v169
  %174 = vst [vmem:[#allocation2 + $0x8] sm:$0xff] %v170
  %175 = vst [vmem:[#allocation2 + $0x10] sm:$0xff] %v171
  %176 = vst [vmem:[#allocation2 + $0x18] sm:$0xff] %v172
  // Predicated region
  $region34: #{_lambda_.20} parent=0 // pred_check
    %p177 = pneg %p26
  $region35: #{_lambda_.20} parent=0 // pred_check_branch
    %179 = sbr.rel (%p177) target = $region37
  $region36: #{_lambda_.20} parent=0 // pred_region
    %v180 = vld [vmem:[#allocation2] sm:$0xff]
    %v181 = vld [vmem:[#allocation2 + $0x8] sm:$0xff]
    %v182 = vld [vmem:[#allocation2 + $0x10] sm:$0xff]
    %v183 = vld [vmem:[#allocation2 + $0x18] sm:$0xff]
    %v184 = vld [vmem:[%s2] sm:$0x1]
    %v186 = vlaneseq
    %v187 = vshrl.u32 %v186, 7
    %v188 = vsub.s32 0, %v187
    %v189 = vrot.slane %v184, %v188
    %v191 = vadd.f32 %v180, %v189
    %v192 = vadd.f32 %v181, %v189
    %v193 = vadd.f32 %v182, %v189
    %v194 = vadd.f32 %v183, %v189
    %v195 = vld [vmem:[%s5] sm:$0x1]
    %v197 = vlaneseq
    %v198 = vshrl.u32 %v197, 7
    %v199 = vsub.s32 0, %v198
    %v200 = vrot.slane %v195, %v199
    %v202 = vmul.f32 %v191, %v200
    %v203 = vmul.f32 %v192, %v200
    %v204 = vmul.f32 %v193, %v200
    %v205 = vmul.f32 %v194, %v200
    %v206 = vld [vmem:[%s6] sm:$0x1]
    %v208 = vlaneseq
    %v209 = vshrl.u32 %v208, 7
    %v210 = vsub.s32 0, %v209
    %v211 = vrot.slane %v206, %v210
    %v213 = vadd.f32 %v202, %v211
    %v214 = vadd.f32 %v203, %v211
    %v215 = vadd.f32 %v204, %v211
    %v216 = vadd.f32 %v205, %v211
    %v217 = vmax.f32 %v213, 0.0
    %v218 = vmax.f32 %v214, 0.0
    %v219 = vmax.f32 %v215, 0.0
    %v220 = vmax.f32 %v216, 0.0
    %221 = vst [vmem:[%s7] sm:$0xff] %v217
    %222 = vst [vmem:[%s7 + $0x8] sm:$0xff] %v218
    %223 = vst [vmem:[%s7 + $0x10] sm:$0xff] %v219
    %224 = vst [vmem:[%s7 + $0x18] sm:$0xff] %v220
  $region37: #{_lambda_.20} parent=0 // pred_fallthru
    _
  // Predicated region
  $region38: #{_lambda_.20} parent=0 // pred_check
    _
  $region39: #{_lambda_.20} parent=0 // pred_check_branch
    %226 = sbr.rel (0) target = $region41
  $region40: #{_lambda_.20} parent=0 // pred_region
    _
  $region41: #{_lambda_.20} parent=0 // pred_fallthru
    _
  // Predicated region
  $region42: #{_lambda_.20} parent=0 // pred_check
    _
  $region43: #{_lambda_.20} parent=0 // pred_check_branch
    %228 = sbr.rel (0) target = $region45
  $region44: #{_lambda_.20} parent=0 // pred_region
    _
  $region45: #{_lambda_.20} parent=0 // pred_fallthru
    _

// kernel: _lambda_.21
$region0: #{_lambda_.21}
  #allocation0 [shape = 'u32[]', space=smem, size = 0x4, offset = 0x4, fixed_abs, tag = 'smem constant byte address 0x4 - core index']
  #allocation1 [shape = 'u32[144,128]{1,0:T(1,128)}', space=vmem, size = 0x12000, scoped, tag = 'internal scratch']
  #allocation2 [shape = 'f32[32,128]{1,0:T(8,128)}', space=vmem, size = 0x4000, scoped, tag = 'scratch operand']
  %s0 = inlined_call_operand.vmem [shape: f32[32,128], index: 0, kind: input, shape index: {}]
  %s1 = inlined_call_operand.vmem [shape: f32[128,128], index: 1, kind: input, shape index: {}]
  %s2 = inlined_call_operand.vmem [shape: f32[1,128], index: 2, kind: input, shape index: {}]
  %s3 = inlined_call_operand.vmem [shape: f32[1,128], index: 3, kind: input, shape index: {}]
  %s4 = inlined_call_operand.vmem [shape: f32[1,128], index: 4, kind: input, shape index: {}]
  %s5 = inlined_call_operand.vmem [shape: f32[32,128], index: 5, kind: input, shape index: {}]
  %s6 = inlined_call_operand.vmem [shape: f32[32,128], index: 6, kind: output, shape index: {}]
  %s7 = sld [smem:[#allocation0]]
  $region42: #{_lambda_.21} parent=0
    _
  %s9 = ssub.s32 1, %s7
  %s10 = scalar_select 0, %s9, %s7
  // Predicated region
  $region2: #{_lambda_.21} parent=0 // pred_check
    _
  $region3: #{_lambda_.21} parent=0 // pred_check_branch
    %12 = sbr.rel (0) target = $region5
  $region4: #{_lambda_.21} parent=0 // pred_region
    _
  $region5: #{_lambda_.21} parent=0 // pred_fallthru
    _
  // Predicated region
  $region6: #{_lambda_.21} parent=0 // pred_check
    _
  $region7: #{_lambda_.21} parent=0 // pred_check_branch
    %14 = sbr.rel (0) target = $region9
  $region8: #{_lambda_.21} parent=0 // pred_region
    _
  $region9: #{_lambda_.21} parent=0 // pred_fallthru
    _
  // Predicated region
  $region10: #{_lambda_.21} parent=0 // pred_check
    _
  $region11: #{_lambda_.21} parent=0 // pred_check_branch
    %16 = sbr.rel (0) target = $region13
  $region12: #{_lambda_.21} parent=0 // pred_region
    _
  $region13: #{_lambda_.21} parent=0 // pred_fallthru
    _
  // Predicated region
  $region14: #{_lambda_.21} parent=0 // pred_check
    _
  $region15: #{_lambda_.21} parent=0 // pred_check_branch
    %18 = sbr.rel (0) target = $region17
  $region16: #{_lambda_.21} parent=0 // pred_region
    _
  $region17: #{_lambda_.21} parent=0 // pred_fallthru
    _
  // Predicated region
  $region18: #{_lambda_.21} parent=0 // pred_check
    _
  $region19: #{_lambda_.21} parent=0 // pred_check_branch
    %20 = sbr.rel (0) target = $region21
  $region20: #{_lambda_.21} parent=0 // pred_region
    _
  $region21: #{_lambda_.21} parent=0 // pred_fallthru
    _
  // Predicated region
  $region22: #{_lambda_.21} parent=0 // pred_check
    _
  $region23: #{_lambda_.21} parent=0 // pred_check_branch
    %22 = sbr.rel (0) target = $region25
  $region24: #{_lambda_.21} parent=0 // pred_region
    _
  $region25: #{_lambda_.21} parent=0 // pred_fallthru
    _
  %p23 = scmp.eq.s32.totalorder 0, 0
  // Predicated region
  $region26: #{_lambda_.21} parent=0 // pred_check
    %p24 = pneg %p23
  $region27: #{_lambda_.21} parent=0 // pred_check_branch
    %26 = sbr.rel (%p24) target = $region29
  $region28: #{_lambda_.21} parent=0 // pred_region
    %27 = vst [vmem:[#allocation2] sm:$0xff] 0.0
    %28 = vst [vmem:[#allocation2 + $0x8] sm:$0xff] 0.0
    %29 = vst [vmem:[#allocation2 + $0x10] sm:$0xff] 0.0
    %30 = vst [vmem:[#allocation2 + $0x18] sm:$0xff] 0.0
  $region29: #{_lambda_.21} parent=0 // pred_fallthru
    _
  %v31 = vld [vmem:[%s0] sm:$0xff]
  %v32 = vld [vmem:[%s0 + $0x8] sm:$0xff]
  %v33 = vld [vmem:[%s0 + $0x10] sm:$0xff]
  %v34 = vld [vmem:[%s0 + $0x18] sm:$0xff]
  %v35 = vld [vmem:[#allocation2] sm:$0xff]
  %v36 = vld [vmem:[#allocation2 + $0x8] sm:$0xff]
  %v37 = vld [vmem:[#allocation2 + $0x10] sm:$0xff]
  %v38 = vld [vmem:[#allocation2 + $0x18] sm:$0xff]
  %v39 = vld [vmem:[%s1] sm:$0xff]
  %v40 = vld [vmem:[%s1 + $0x8] sm:$0xff]
  %v41 = vld [vmem:[%s1 + $0x10] sm:$0xff]
  %v42 = vld [vmem:[%s1 + $0x18] sm:$0xff]
  %v43 = vld [vmem:[%s1 + $0x20] sm:$0xff]
  %v44 = vld [vmem:[%s1 + $0x28] sm:$0xff]
  %v45 = vld [vmem:[%s1 + $0x30] sm:$0xff]
  %v46 = vld [vmem:[%s1 + $0x38] sm:$0xff]
  %v47 = vld [vmem:[%s1 + $0x40] sm:$0xff]
  %v48 = vld [vmem:[%s1 + $0x48] sm:$0xff]
  %v49 = vld [vmem:[%s1 + $0x50] sm:$0xff]
  %v50 = vld [vmem:[%s1 + $0x58] sm:$0xff]
  %v51 = vld [vmem:[%s1 + $0x60] sm:$0xff]
  %v52 = vld [vmem:[%s1 + $0x68] sm:$0xff]
  %v53 = vld [vmem:[%s1 + $0x70] sm:$0xff]
  %v54 = vld [vmem:[%s1 + $0x78] sm:$0xff]
  %55 = vmatprep.subr.mxu0 0.0
  %56 = vmatpush1.msra.mxu0 %v54
  %57 = vmatprep.subr.mxu0 0.0
  %58 = vmatpush1.msra.mxu0 %v53
  %59 = vmatprep.subr.mxu0 0.0
  %60 = vmatpush1.msra.mxu0 %v52
  %61 = vmatprep.subr.mxu0 0.0
  %62 = vmatpush1.msra.mxu0 %v51
  %63 = vmatprep.subr.mxu0 0.0
  %64 = vmatpush1.msra.mxu0 %v50
  %65 = vmatprep.subr.mxu0 0.0
  %66 = vmatpush1.msra.mxu0 %v49
  %67 = vmatprep.subr.mxu0 0.0
  %68 = vmatpush1.msra.mxu0 %v48
  %69 = vmatprep.subr.mxu0 0.0
  %70 = vmatpush1.msra.mxu0 %v47
  %71 = vmatprep.subr.mxu0 0.0
  %72 = vmatpush1.msra.mxu0 %v46
  %73 = vmatprep.subr.mxu0 0.0
  %74 = vmatpush1.msra.mxu0 %v45
  %75 = vmatprep.subr.mxu0 0.0
  %76 = vmatpush1.msra.mxu0 %v44
  %77 = vmatprep.subr.mxu0 0.0
  %78 = vmatpush1.msra.mxu0 %v43
  %79 = vmatprep.subr.mxu0 0.0
  %80 = vmatpush1.msra.mxu0 %v42
  %81 = vmatprep.subr.mxu0 0.0
  %82 = vmatpush1.msra.mxu0 %v41
  %83 = vmatprep.subr.mxu0 0.0
  %84 = vmatpush1.msra.mxu0 %v40
  %85 = vmatprep.subr.mxu0 0.0
  %86 = vmatpush1.msra.mxu0 %v39
  %87 = vmatprep.subr.mxu0 0.0
  %88 = vmatpush2.msra.mxu0 0.0
  %89 = vmatprep.subr.mxu0 0.0
  %90 = vmatpush2.msra.mxu0 0.0
  %91 = vmatprep.subr.mxu0 0.0
  %92 = vmatpush2.msra.mxu0 0.0
  %93 = vmatprep.subr.mxu0 0.0
  %94 = vmatpush2.msra.mxu0 0.0
  %95 = vmatprep.subr.mxu0 0.0
  %96 = vmatpush2.msra.mxu0 0.0
  %97 = vmatprep.subr.mxu0 0.0
  %98 = vmatpush2.msra.mxu0 0.0
  %99 = vmatprep.subr.mxu0 0.0
  %100 = vmatpush2.msra.mxu0 0.0
  %101 = vmatprep.subr.mxu0 0.0
  %102 = vmatpush2.msra.mxu0 0.0
  %103 = vmatprep.subr.mxu0 0.0
  %104 = vmatpush2.msra.mxu0 0.0
  %105 = vmatprep.subr.mxu0 0.0
  %106 = vmatpush2.msra.mxu0 0.0
  %107 = vmatprep.subr.mxu0 0.0
  %108 = vmatpush2.msra.mxu0 0.0
  %109 = vmatprep.subr.mxu0 0.0
  %110 = vmatpush2.msra.mxu0 0.0
  %111 = vmatprep.subr.mxu0 0.0
  %112 = vmatpush2.msra.mxu0 0.0
  %113 = vmatprep.subr.mxu0 0.0
  %114 = vmatpush2.msra.mxu0 0.0
  %115 = vmatprep.subr.mxu0 0.0
  %116 = vmatpush2.msra.mxu0 0.0
  %117 = vmatprep.subr.mxu0 0.0
  %118 = vmatpush2.msra.mxu0 0.0
  %119 = vmatprep.mubr.f32.mxu0 0.0
  %120 = vmatmul.mubr.f32.gmra.mxu0 %v31
  %v121 = vpop.f32.mrf.mxu0
  %v122 = vadd.f32 0.0, %v121
  %v123 = vpop.f32.mrf.mxu0
  %124 = vmatprep.mubr.f32.mxu0 0.0
  %125 = vmatmul.mubr.f32.gmra.mxu0 %v32
  %v126 = vpop.f32.mrf.mxu0
  %v127 = vadd.f32 0.0, %v126
  %v128 = vpop.f32.mrf.mxu0
  %129 = vmatprep.mubr.f32.mxu0 0.0
  %130 = vmatmul.mubr.f32.gmra.mxu0 %v33
  %v131 = vpop.f32.mrf.mxu0
  %v132 = vadd.f32 0.0, %v131
  %v133 = vpop.f32.mrf.mxu0
  %134 = vmatprep.mubr.f32.mxu0 0.0
  %135 = vmatmul.mubr.f32.gmra.mxu0 %v34
  %v136 = vpop.f32.mrf.mxu0
  %v137 = vadd.f32 0.0, %v136
  %v138 = vpop.f32.mrf.mxu0
  %139 = vdwg.mxu0
  %v140 = vadd.f32 %v35, %v122
  %v141 = vadd.f32 %v36, %v127
  %v142 = vadd.f32 %v37, %v132
  %v143 = vadd.f32 %v38, %v137
  %144 = vst [vmem:[#allocation2] sm:$0xff] %v140
  %145 = vst [vmem:[#allocation2 + $0x8] sm:$0xff] %v141
  %146 = vst [vmem:[#allocation2 + $0x10] sm:$0xff] %v142
  %147 = vst [vmem:[#allocation2 + $0x18] sm:$0xff] %v143
  // Predicated region
  $region30: #{_lambda_.21} parent=0 // pred_check
    %p148 = pneg %p23
  $region31: #{_lambda_.21} parent=0 // pred_check_branch
    %150 = sbr.rel (%p148) target = $region33
  $region32: #{_lambda_.21} parent=0 // pred_region
    %v151 = vld [vmem:[#allocation2] sm:$0xff]
    %v152 = vld [vmem:[#allocation2 + $0x8] sm:$0xff]
    %v153 = vld [vmem:[#allocation2 + $0x10] sm:$0xff]
    %v154 = vld [vmem:[#allocation2 + $0x18] sm:$0xff]
    %v155 = vld [vmem:[%s2] sm:$0x1]
    %v157 = vlaneseq
    %v158 = vshrl.u32 %v157, 7
    %v159 = vsub.s32 0, %v158
    %v160 = vrot.slane %v155, %v159
    %v162 = vadd.f32 %v151, %v160
    %v163 = vadd.f32 %v152, %v160
    %v164 = vadd.f32 %v153, %v160
    %v165 = vadd.f32 %v154, %v160
    %v166 = vld [vmem:[%s5] sm:$0xff]
    %v167 = vld [vmem:[%s5 + $0x8] sm:$0xff]
    %v168 = vld [vmem:[%s5 + $0x10] sm:$0xff]
    %v169 = vld [vmem:[%s5 + $0x18] sm:$0xff]
    %v170 = vadd.f32 %v162, %v166
    %v171 = vadd.f32 %v163, %v167
    %v172 = vadd.f32 %v164, %v168
    %v173 = vadd.f32 %v165, %v169
    %v174 = vld [vmem:[%s3] sm:$0x1]
    %v176 = vlaneseq
    %v177 = vshrl.u32 %v176, 7
    %v178 = vsub.s32 0, %v177
    %v179 = vrot.slane %v174, %v178
    %v181 = vmul.f32 %v170, %v179
    %v182 = vmul.f32 %v171, %v179
    %v183 = vmul.f32 %v172, %v179
    %v184 = vmul.f32 %v173, %v179
    %v185 = vld [vmem:[%s4] sm:$0x1]
    %v187 = vlaneseq
    %v188 = vshrl.u32 %v187, 7
    %v189 = vsub.s32 0, %v188
    %v190 = vrot.slane %v185, %v189
    %v192 = vadd.f32 %v181, %v190
    %v193 = vadd.f32 %v182, %v190
    %v194 = vadd.f32 %v183, %v190
    %v195 = vadd.f32 %v184, %v190
    %196 = vst [vmem:[%s6] sm:$0xff] %v192
    %197 = vst [vmem:[%s6 + $0x8] sm:$0xff] %v193
    %198 = vst [vmem:[%s6 + $0x10] sm:$0xff] %v194
    %199 = vst [vmem:[%s6 + $0x18] sm:$0xff] %v195
  $region33: #{_lambda_.21} parent=0 // pred_fallthru
    _
  // Predicated region
  $region34: #{_lambda_.21} parent=0 // pred_check
    _
  $region35: #{_lambda_.21} parent=0 // pred_check_branch
    %201 = sbr.rel (0) target = $region37
  $region36: #{_lambda_.21} parent=0 // pred_region
    _
  $region37: #{_lambda_.21} parent=0 // pred_fallthru
    _
  // Predicated region
  $region38: #{_lambda_.21} parent=0 // pred_check
    _
  $region39: #{_lambda_.21} parent=0 // pred_check_branch
    %203 = sbr.rel (0) target = $region41
  $region40: #{_lambda_.21} parent=0 // pred_region
    _
  $region41: #{_lambda_.21} parent=0 // pred_fallthru
    _

</llo_original>
